<compile_context>
chip_gen: v7x
topology: tpu7x:2x2x1
jax: 0.10.0
libtpu: 0.0.40
codegen_flags: <defaults>
</compile_context>

<pallas_src>
import math

import jax
import jax.numpy as jnp
from jax.experimental import pallas as pl
from jax.experimental.pallas import tpu as pltpu

# --- tiny BERT config (synthetic, deterministic init) ---
VOCAB = 100
TYPE_VOCAB = 2
MAX_POS = 16
HIDDEN = 32
LAYERS = 2
HEADS = 4
HEAD_DIM = HIDDEN // HEADS
INTERMEDIATE = 64
EPS = 1e-12
BATCH = 2
SEQ = 8
BS = BATCH * SEQ


def _layer_norm(x, g, b):
    mu = jnp.mean(x, axis=-1, keepdims=True)
    xc = x - mu
    var = jnp.mean(xc * xc, axis=-1, keepdims=True)
    return xc * jax.lax.rsqrt(var + EPS) * g + b


def _gelu_exact(x):
    # HF BERT default: exact erf GELU (lowers to the EUP).
    return 0.5 * x * (1.0 + jax.lax.erf(x * (1.0 / math.sqrt(2.0))))


def _bert_kernel(ids_ref, tt_ref, mask_ref,
                 wemb_ref, pemb_ref, temb_ref, eg_ref, eb_ref,
                 wqkv_ref, bqkv_ref, wo_ref, bo_ref,
                 ln1g_ref, ln1b_ref, w1_ref, b1_ref,
                 w2_ref, b2_ref, ln2g_ref, ln2b_ref,
                 o_ref):
    # ---------- embeddings, fused in-kernel (one-hot gather on the MXU) -----
    ids = ids_ref[...]                                            # [BS, 1] i32
    tts = tt_ref[...]                                             # [BS, 1] i32
    word_oh = (ids == jax.lax.broadcasted_iota(jnp.int32, (BS, VOCAB), 1)
               ).astype(jnp.float32)                              # [BS, V]
    type_oh = (tts == jax.lax.broadcasted_iota(jnp.int32, (BS, TYPE_VOCAB), 1)
               ).astype(jnp.float32)                              # [BS, 2]
    word = jnp.dot(word_oh, wemb_ref[...], preferred_element_type=jnp.float32)
    typ = jnp.dot(type_oh, temb_ref[...], preferred_element_type=jnp.float32)
    pos = jnp.concatenate([pemb_ref[0:SEQ, :]] * BATCH, axis=0)   # [BS, H]
    h = _layer_norm(word + typ + pos, eg_ref[...], eb_ref[...])   # [BS, H]

    # ---------- additive attention mask, hoisted & pre-broadcast ------------
    mask_f = mask_ref[...].astype(jnp.float32)                    # [B, S]
    add_masks = []
    for b in range(BATCH):
        m = (1.0 - mask_f[b:b + 1, :]) * -10000.0                 # [1, S]
        add_masks.append(jnp.broadcast_to(m, (SEQ, SEQ)))         # [S, S]

    # ---------- encoder layers (static unroll, L=2) --------------------------
    for l in range(LAYERS):
        # fused QKV projection, one [BS,H] x [H,3H] matmul
        # (the 1/sqrt(head_dim) score scale is pre-folded into the Q weights)
        qkv = jnp.dot(h, wqkv_ref[l],
                      preferred_element_type=jnp.float32) + bqkv_ref[l]  # [BS, 3H]

        ctx_rows = []
        for b in range(BATCH):                                    # static unroll
            r0 = b * SEQ
            ctx_heads = []
            for hd in range(HEADS):                               # static unroll
                c0 = hd * HEAD_DIM
                q = qkv[r0:r0 + SEQ, c0:c0 + HEAD_DIM]
                k = qkv[r0:r0 + SEQ, HIDDEN + c0:HIDDEN + c0 + HEAD_DIM]
                v = qkv[r0:r0 + SEQ, 2 * HIDDEN + c0:2 * HIDDEN + c0 + HEAD_DIM]
                # contract over head_dim directly (no transpose of K)
                s = jax.lax.dot_general(q, k, (((1,), (1,)), ((), ())),
                                        preferred_element_type=jnp.float32)
                s = s + add_masks[b]
                s = s - jnp.max(s, axis=-1, keepdims=True)
                p = jnp.exp(s)
                p = p / jnp.sum(p, axis=-1, keepdims=True)
                ctx_heads.append(jnp.dot(p, v,
                                         preferred_element_type=jnp.float32))
            ctx_rows.append(jnp.concatenate(ctx_heads, axis=1))   # [S, H]
        ctx = jnp.concatenate(ctx_rows, axis=0)                   # [BS, H]

        # head-merge folded into ONE output projection matmul
        attn = jnp.dot(ctx, wo_ref[l],
                       preferred_element_type=jnp.float32) + bo_ref[l]
        h = _layer_norm(attn + h, ln1g_ref[l], ln1b_ref[l])

        # feed-forward with fused exact gelu and add+LN epilogue
        ffn = _gelu_exact(jnp.dot(h, w1_ref[l],
                                  preferred_element_type=jnp.float32) + b1_ref[l])
        ffn = jnp.dot(ffn, w2_ref[l],
                      preferred_element_type=jnp.float32) + b2_ref[l]
        h = _layer_norm(ffn + h, ln2g_ref[l], ln2b_ref[l])

    for b in range(BATCH):
        o_ref[b, :, :] = h[b * SEQ:(b + 1) * SEQ, :]


# ------------------------------ params & glue ------------------------------ #

def init_params(key):
    keys = jax.random.split(key, 3 + LAYERS * 6)
    it = iter(keys)

    def nrm(shape, scale=0.02):
        return (scale * jax.random.normal(next(it), shape)).astype(jnp.float32)

    params = {
        "word_emb": nrm((VOCAB, HIDDEN)),
        "pos_emb": nrm((MAX_POS, HIDDEN)),
        "type_emb": nrm((TYPE_VOCAB, HIDDEN)),
        "emb_ln_g": jnp.ones((1, HIDDEN), jnp.float32),
        "emb_ln_b": jnp.zeros((1, HIDDEN), jnp.float32),
    }
    score_scale = 1.0 / math.sqrt(HEAD_DIM)
    wqkv, wo, w1, w2 = [], [], [], []
    for _ in range(LAYERS):
        wq, wk, wv = (nrm((HIDDEN, HIDDEN)), nrm((HIDDEN, HIDDEN)),
                      nrm((HIDDEN, HIDDEN)))
        # fold the 1/sqrt(head_dim) attention-score scale into the Q weights
        wqkv.append(jnp.concatenate([wq * score_scale, wk, wv], axis=1))
        wo.append(nrm((HIDDEN, HIDDEN)))
        w1.append(nrm((HIDDEN, INTERMEDIATE)))
        w2.append(nrm((INTERMEDIATE, HIDDEN)))
    params.update({
        "wqkv": jnp.stack(wqkv),                                  # [L, H, 3H]
        "bqkv": jnp.zeros((LAYERS, 1, 3 * HIDDEN), jnp.float32),
        "wo": jnp.stack(wo),
        "bo": jnp.zeros((LAYERS, 1, HIDDEN), jnp.float32),
        "ln1_g": jnp.ones((LAYERS, 1, HIDDEN), jnp.float32),
        "ln1_b": jnp.zeros((LAYERS, 1, HIDDEN), jnp.float32),
        "w1": jnp.stack(w1),
        "b1": jnp.zeros((LAYERS, 1, INTERMEDIATE), jnp.float32),
        "w2": jnp.stack(w2),
        "b2": jnp.zeros((LAYERS, 1, HIDDEN), jnp.float32),
        "ln2_g": jnp.ones((LAYERS, 1, HIDDEN), jnp.float32),
        "ln2_b": jnp.zeros((LAYERS, 1, HIDDEN), jnp.float32),
    })
    return params


def bert_forward(params, x, attention_mask, token_type_ids):
    B, S = x.shape
    assert B == BATCH and S == SEQ
    ids = x.reshape(B * S, 1).astype(jnp.int32)
    tts = token_type_ids.reshape(B * S, 1).astype(jnp.int32)
    mask = attention_mask.astype(jnp.int32)

    spec2 = lambda sh: pl.BlockSpec(sh, lambda i: (0, 0))
    spec3 = lambda sh: pl.BlockSpec(sh, lambda i: (0, 0, 0))

    return pl.pallas_call(
        _bert_kernel,
        out_shape=jax.ShapeDtypeStruct((B, S, HIDDEN), jnp.float32),
        grid=(1,),                                                # single fused step
        in_specs=[
            spec2((B * S, 1)),                                    # token ids
            spec2((B * S, 1)),                                    # token type ids
            spec2((B, S)),                                        # attention mask
            spec2((VOCAB, HIDDEN)),                               # word_emb
            spec2((MAX_POS, HIDDEN)),                             # pos_emb
            spec2((TYPE_VOCAB, HIDDEN)),                          # type_emb
            spec2((1, HIDDEN)),                                   # emb_ln_g
            spec2((1, HIDDEN)),                                   # emb_ln_b
            spec3((LAYERS, HIDDEN, 3 * HIDDEN)),                  # wqkv
            spec3((LAYERS, 1, 3 * HIDDEN)),                       # bqkv
            spec3((LAYERS, HIDDEN, HIDDEN)),                      # wo
            spec3((LAYERS, 1, HIDDEN)),                           # bo
            spec3((LAYERS, 1, HIDDEN)),                           # ln1_g
            spec3((LAYERS, 1, HIDDEN)),                           # ln1_b
            spec3((LAYERS, HIDDEN, INTERMEDIATE)),                # w1
            spec3((LAYERS, 1, INTERMEDIATE)),                     # b1
            spec3((LAYERS, INTERMEDIATE, HIDDEN)),                # w2
            spec3((LAYERS, 1, HIDDEN)),                           # b2
            spec3((LAYERS, 1, HIDDEN)),                           # ln2_g
            spec3((LAYERS, 1, HIDDEN)),                           # ln2_b
        ],
        out_specs=spec3((B, S, HIDDEN)),
        compiler_params=pltpu.CompilerParams(
            dimension_semantics=("arbitrary",)),
    )(ids, tts, mask,
      params["word_emb"], params["pos_emb"], params["type_emb"],
      params["emb_ln_g"], params["emb_ln_b"],
      params["wqkv"], params["bqkv"], params["wo"], params["bo"],
      params["ln1_g"], params["ln1_b"],
      params["w1"], params["b1"], params["w2"], params["b2"],
      params["ln2_g"], params["ln2_b"])


if __name__ == "__main__":
    B, S = BATCH, SEQ
    key = jax.random.PRNGKey(0)
    k_par, k_ids, k_typ = jax.random.split(key, 3)

    params = init_params(k_par)
    x = jax.random.randint(k_ids, (B, S), 0, VOCAB, dtype=jnp.int32)
    attention_mask = jnp.array(
        [[1, 1, 1, 1, 1, 1, 1, 1],
         [1, 1, 1, 1, 1, 0, 0, 0]], dtype=jnp.int32)
    token_type_ids = jax.random.randint(k_typ, (B, S), 0, TYPE_VOCAB,
                                        dtype=jnp.int32)

    fwd = jax.jit(bert_forward)
    out = jax.block_until_ready(fwd(params, x, attention_mask, token_type_ids))
    assert out.shape == (B, S, HIDDEN) and out.dtype == jnp.float32
    assert bool(jnp.all(jnp.isfinite(out)))
    print("KERNEL_OK")
</pallas_src>

<mosaic_0001>
module attributes {stable_mosaic.version = 11 : i64} {
  func.func @_bert_kernel(%arg0: i32, %arg1: memref<16x1xi32, #tpu.memory_space<vmem>>, %arg2: memref<16x1xi32, #tpu.memory_space<vmem>>, %arg3: memref<2x8xi32, #tpu.memory_space<vmem>>, %arg4: memref<100x32xf32, #tpu.memory_space<vmem>>, %arg5: memref<16x32xf32, #tpu.memory_space<vmem>>, %arg6: memref<2x32xf32, #tpu.memory_space<vmem>>, %arg7: memref<1x32xf32, #tpu.memory_space<vmem>>, %arg8: memref<1x32xf32, #tpu.memory_space<vmem>>, %arg9: memref<2x32x96xf32, #tpu.memory_space<vmem>>, %arg10: memref<2x1x96xf32, #tpu.memory_space<vmem>>, %arg11: memref<2x32x32xf32, #tpu.memory_space<vmem>>, %arg12: memref<2x1x32xf32, #tpu.memory_space<vmem>>, %arg13: memref<2x1x32xf32, #tpu.memory_space<vmem>>, %arg14: memref<2x1x32xf32, #tpu.memory_space<vmem>>, %arg15: memref<2x32x64xf32, #tpu.memory_space<vmem>>, %arg16: memref<2x1x64xf32, #tpu.memory_space<vmem>>, %arg17: memref<2x64x32xf32, #tpu.memory_space<vmem>>, %arg18: memref<2x1x32xf32, #tpu.memory_space<vmem>>, %arg19: memref<2x1x32xf32, #tpu.memory_space<vmem>>, %arg20: memref<2x1x32xf32, #tpu.memory_space<vmem>>, %arg21: memref<2x8x32xf32, #tpu.memory_space<vmem>>) attributes {dimension_semantics = [#tpu.dimension_semantics<arbitrary>], iteration_bounds = array<i64: 1>, scalar_prefetch = 0 : i64, scratch_operands = 0 : i64, tpu.core_type = #tpu.core_type<tc>, window_params = [{pipeline_mode = #tpu.pipeline_mode<synchronous>, transform_indices = @transform_0, window_bounds = array<i64: 16, 1>}, {pipeline_mode = #tpu.pipeline_mode<synchronous>, transform_indices = @transform_1, window_bounds = array<i64: 16, 1>}, {pipeline_mode = #tpu.pipeline_mode<synchronous>, transform_indices = @transform_2, window_bounds = array<i64: 2, 8>}, {pipeline_mode = #tpu.pipeline_mode<synchronous>, transform_indices = @transform_3, window_bounds = array<i64: 100, 32>}, {pipeline_mode = #tpu.pipeline_mode<synchronous>, transform_indices = @transform_4, window_bounds = array<i64: 16, 32>}, {pipeline_mode = #tpu.pipeline_mode<synchronous>, transform_indices = @transform_5, window_bounds = array<i64: 2, 32>}, {pipeline_mode = #tpu.pipeline_mode<synchronous>, transform_indices = @transform_6, window_bounds = array<i64: 1, 32>}, {pipeline_mode = #tpu.pipeline_mode<synchronous>, transform_indices = @transform_7, window_bounds = array<i64: 1, 32>}, {pipeline_mode = #tpu.pipeline_mode<synchronous>, transform_indices = @transform_8, window_bounds = array<i64: 2, 32, 96>}, {pipeline_mode = #tpu.pipeline_mode<synchronous>, transform_indices = @transform_9, window_bounds = array<i64: 2, 1, 96>}, {pipeline_mode = #tpu.pipeline_mode<synchronous>, transform_indices = @transform_10, window_bounds = array<i64: 2, 32, 32>}, {pipeline_mode = #tpu.pipeline_mode<synchronous>, transform_indices = @transform_11, window_bounds = array<i64: 2, 1, 32>}, {pipeline_mode = #tpu.pipeline_mode<synchronous>, transform_indices = @transform_12, window_bounds = array<i64: 2, 1, 32>}, {pipeline_mode = #tpu.pipeline_mode<synchronous>, transform_indices = @transform_13, window_bounds = array<i64: 2, 1, 32>}, {pipeline_mode = #tpu.pipeline_mode<synchronous>, transform_indices = @transform_14, window_bounds = array<i64: 2, 32, 64>}, {pipeline_mode = #tpu.pipeline_mode<synchronous>, transform_indices = @transform_15, window_bounds = array<i64: 2, 1, 64>}, {pipeline_mode = #tpu.pipeline_mode<synchronous>, transform_indices = @transform_16, window_bounds = array<i64: 2, 64, 32>}, {pipeline_mode = #tpu.pipeline_mode<synchronous>, transform_indices = @transform_17, window_bounds = array<i64: 2, 1, 32>}, {pipeline_mode = #tpu.pipeline_mode<synchronous>, transform_indices = @transform_18, window_bounds = array<i64: 2, 1, 32>}, {pipeline_mode = #tpu.pipeline_mode<synchronous>, transform_indices = @transform_19, window_bounds = array<i64: 2, 1, 32>}, {pipeline_mode = #tpu.pipeline_mode<synchronous>, transform_indices = @transform_20, window_bounds = array<i64: 2, 8, 32>}]} {
    %c0 = arith.constant 0 : index
    %c0_0 = arith.constant 0 : index
    %0 = vector.load %arg1[%c0, %c0_0] : memref<16x1xi32, #tpu.memory_space<vmem>>, vector<16x1xi32>
    %c0_1 = arith.constant 0 : index
    %c0_2 = arith.constant 0 : index
    %1 = vector.load %arg2[%c0_1, %c0_2] : memref<16x1xi32, #tpu.memory_space<vmem>>, vector<16x1xi32>
    %2 = tpu.iota {dimensions = array<i32: 1>} : vector<16x100xi32>
    %3 = vector.broadcast %0 : vector<16x1xi32> to vector<16x100xi32>
    %4 = arith.cmpi eq, %3, %2 : vector<16x100xi32>
    %5 = arith.extui %4 : vector<16x100xi1> to vector<16x100xi32>
    %6 = arith.sitofp %5 : vector<16x100xi32> to vector<16x100xf32>
    %7 = tpu.iota {dimensions = array<i32: 1>} : vector<16x2xi32>
    %8 = vector.broadcast %1 : vector<16x1xi32> to vector<16x2xi32>
    %9 = arith.cmpi eq, %8, %7 : vector<16x2xi32>
    %10 = arith.extui %9 : vector<16x2xi1> to vector<16x2xi32>
    %11 = arith.sitofp %10 : vector<16x2xi32> to vector<16x2xf32>
    %c0_3 = arith.constant 0 : index
    %c0_4 = arith.constant 0 : index
    %12 = vector.load %arg4[%c0_3, %c0_4] : memref<100x32xf32, #tpu.memory_space<vmem>>, vector<100x32xf32>
    %cst = arith.constant dense<0.000000e+00> : vector<16x32xf32>
    %13 = tpu.matmul %6, %12, %cst {dimension_numbers = #tpu.dot_dimension_numbers<[1], [0], [0], [1], [0, 0, 1, 1], [], []>} : vector<16x100xf32>, vector<100x32xf32>, vector<16x32xf32> -> vector<16x32xf32>
    %c0_5 = arith.constant 0 : index
    %c0_6 = arith.constant 0 : index
    %14 = vector.load %arg6[%c0_5, %c0_6] : memref<2x32xf32, #tpu.memory_space<vmem>>, vector<2x32xf32>
    %cst_7 = arith.constant dense<0.000000e+00> : vector<16x32xf32>
    %15 = tpu.matmul %11, %14, %cst_7 {dimension_numbers = #tpu.dot_dimension_numbers<[1], [0], [0], [1], [0, 0, 1, 1], [], []>} : vector<16x2xf32>, vector<2x32xf32>, vector<16x32xf32> -> vector<16x32xf32>
    %c0_8 = arith.constant 0 : index
    %c0_9 = arith.constant 0 : index
    %16 = vector.load %arg5[%c0_8, %c0_9] : memref<16x32xf32, #tpu.memory_space<vmem>>, vector<8x32xf32>
    %17 = tpu.concatenate %16, %16 in 0 : vector<8x32xf32>, vector<8x32xf32> -> vector<16x32xf32>
    %18 = arith.addf %13, %15 : vector<16x32xf32>
    %19 = arith.addf %18, %17 : vector<16x32xf32>
    %c0_10 = arith.constant 0 : index
    %c0_11 = arith.constant 0 : index
    %20 = vector.load %arg7[%c0_10, %c0_11] : memref<1x32xf32, #tpu.memory_space<vmem>>, vector<1x32xf32>
    %c0_12 = arith.constant 0 : index
    %c0_13 = arith.constant 0 : index
    %21 = vector.load %arg8[%c0_12, %c0_13] : memref<1x32xf32, #tpu.memory_space<vmem>>, vector<1x32xf32>
    %cst_14 = arith.constant dense<0.000000e+00> : vector<16xf32>
    %22 = vector.multi_reduction <add>, %19, %cst_14 [1] : vector<16x32xf32> to vector<16xf32>
    %23 = vector.shape_cast %22 : vector<16xf32> to vector<16x1xf32>
    %cst_15 = arith.constant 3.200000e+01 : f32
    %24 = vector.broadcast %cst_15 : f32 to vector<16x1xf32>
    %25 = arith.divf %23, %24 : vector<16x1xf32>
    %26 = vector.broadcast %25 : vector<16x1xf32> to vector<16x32xf32>
    %27 = arith.subf %19, %26 : vector<16x32xf32>
    %28 = arith.mulf %27, %27 : vector<16x32xf32>
    %cst_16 = arith.constant dense<0.000000e+00> : vector<16xf32>
    %29 = vector.multi_reduction <add>, %28, %cst_16 [1] : vector<16x32xf32> to vector<16xf32>
    %30 = vector.shape_cast %29 : vector<16xf32> to vector<16x1xf32>
    %cst_17 = arith.constant 3.200000e+01 : f32
    %31 = vector.broadcast %cst_17 : f32 to vector<16x1xf32>
    %32 = arith.divf %30, %31 : vector<16x1xf32>
    %cst_18 = arith.constant 9.99999996E-13 : f32
    %33 = vector.broadcast %cst_18 : f32 to vector<16x1xf32>
    %34 = arith.addf %32, %33 : vector<16x1xf32>
    %35 = math.rsqrt %34 : vector<16x1xf32>
    %36 = vector.broadcast %35 : vector<16x1xf32> to vector<16x32xf32>
    %37 = arith.mulf %27, %36 : vector<16x32xf32>
    %38 = vector.broadcast %20 : vector<1x32xf32> to vector<16x32xf32>
    %39 = arith.mulf %37, %38 : vector<16x32xf32>
    %40 = vector.broadcast %21 : vector<1x32xf32> to vector<16x32xf32>
    %41 = arith.addf %39, %40 : vector<16x32xf32>
    %c0_19 = arith.constant 0 : index
    %c0_20 = arith.constant 0 : index
    %42 = vector.load %arg3[%c0_19, %c0_20] : memref<2x8xi32, #tpu.memory_space<vmem>>, vector<2x8xi32>
    %43 = arith.sitofp %42 : vector<2x8xi32> to vector<2x8xf32>
    %44 = vector.extract_strided_slice %43 {offsets = [0, 0], sizes = [1, 8], strides = [1, 1]} : vector<2x8xf32> to vector<1x8xf32>
    %cst_21 = arith.constant 1.000000e+00 : f32
    %45 = vector.broadcast %cst_21 : f32 to vector<1x8xf32>
    %46 = arith.subf %45, %44 : vector<1x8xf32>
    %cst_22 = arith.constant -1.000000e+04 : f32
    %47 = vector.broadcast %cst_22 : f32 to vector<1x8xf32>
    %48 = arith.mulf %46, %47 : vector<1x8xf32>
    %49 = vector.shape_cast %48 : vector<1x8xf32> to vector<1x8xf32>
    %50 = vector.broadcast %49 : vector<1x8xf32> to vector<8x8xf32>
    %51 = vector.extract_strided_slice %43 {offsets = [1, 0], sizes = [1, 8], strides = [1, 1]} : vector<2x8xf32> to vector<1x8xf32>
    %cst_23 = arith.constant 1.000000e+00 : f32
    %52 = vector.broadcast %cst_23 : f32 to vector<1x8xf32>
    %53 = arith.subf %52, %51 : vector<1x8xf32>
    %cst_24 = arith.constant -1.000000e+04 : f32
    %54 = vector.broadcast %cst_24 : f32 to vector<1x8xf32>
    %55 = arith.mulf %53, %54 : vector<1x8xf32>
    %56 = vector.shape_cast %55 : vector<1x8xf32> to vector<1x8xf32>
    %57 = vector.broadcast %56 : vector<1x8xf32> to vector<8x8xf32>
    %c0_25 = arith.constant 0 : index
    %c0_26 = arith.constant 0 : index
    %c0_27 = arith.constant 0 : index
    %58 = vector.load %arg9[%c0_25, %c0_26, %c0_27] : memref<2x32x96xf32, #tpu.memory_space<vmem>>, vector<1x32x96xf32>
    %59 = vector.shape_cast %58 : vector<1x32x96xf32> to vector<32x96xf32>
    %cst_28 = arith.constant dense<0.000000e+00> : vector<16x96xf32>
    %60 = tpu.matmul %41, %59, %cst_28 {dimension_numbers = #tpu.dot_dimension_numbers<[1], [0], [0], [1], [0, 0, 1, 1], [], []>} : vector<16x32xf32>, vector<32x96xf32>, vector<16x96xf32> -> vector<16x96xf32>
    %c0_29 = arith.constant 0 : index
    %c0_30 = arith.constant 0 : index
    %c0_31 = arith.constant 0 : index
    %61 = vector.load %arg10[%c0_29, %c0_30, %c0_31] : memref<2x1x96xf32, #tpu.memory_space<vmem>>, vector<1x1x96xf32>
    %62 = vector.shape_cast %61 : vector<1x1x96xf32> to vector<1x96xf32>
    %63 = vector.broadcast %62 : vector<1x96xf32> to vector<16x96xf32>
    %64 = arith.addf %60, %63 : vector<16x96xf32>
    %65 = vector.extract_strided_slice %64 {offsets = [0, 0], sizes = [8, 8], strides = [1, 1]} : vector<16x96xf32> to vector<8x8xf32>
    %66 = vector.extract_strided_slice %64 {offsets = [0, 32], sizes = [8, 8], strides = [1, 1]} : vector<16x96xf32> to vector<8x8xf32>
    %67 = vector.extract_strided_slice %64 {offsets = [0, 64], sizes = [8, 8], strides = [1, 1]} : vector<16x96xf32> to vector<8x8xf32>
    %cst_32 = arith.constant dense<0.000000e+00> : vector<8x8xf32>
    %68 = tpu.matmul %65, %66, %cst_32 {dimension_numbers = #tpu.dot_dimension_numbers<[1], [1], [0], [0], [0, 0, 1, 0], [], []>} : vector<8x8xf32>, vector<8x8xf32>, vector<8x8xf32> -> vector<8x8xf32>
    %69 = arith.addf %68, %50 : vector<8x8xf32>
    %cst_33 = arith.constant dense<0xFF800000> : vector<8xf32>
    %70 = vector.multi_reduction <maximumf>, %69, %cst_33 [1] : vector<8x8xf32> to vector<8xf32>
    %71 = vector.shape_cast %70 : vector<8xf32> to vector<8x1xf32>
    %72 = vector.broadcast %71 : vector<8x1xf32> to vector<8x8xf32>
    %73 = arith.subf %69, %72 : vector<8x8xf32>
    %74 = math.exp %73 : vector<8x8xf32>
    %cst_34 = arith.constant dense<0.000000e+00> : vector<8xf32>
    %75 = vector.multi_reduction <add>, %74, %cst_34 [1] : vector<8x8xf32> to vector<8xf32>
    %76 = vector.shape_cast %75 : vector<8xf32> to vector<8x1xf32>
    %77 = vector.broadcast %76 : vector<8x1xf32> to vector<8x8xf32>
    %78 = arith.divf %74, %77 : vector<8x8xf32>
    %cst_35 = arith.constant dense<0.000000e+00> : vector<8x8xf32>
    %79 = tpu.matmul %78, %67, %cst_35 {dimension_numbers = #tpu.dot_dimension_numbers<[1], [0], [0], [1], [0, 0, 1, 1], [], []>} : vector<8x8xf32>, vector<8x8xf32>, vector<8x8xf32> -> vector<8x8xf32>
    %80 = vector.extract_strided_slice %64 {offsets = [0, 8], sizes = [8, 8], strides = [1, 1]} : vector<16x96xf32> to vector<8x8xf32>
    %81 = vector.extract_strided_slice %64 {offsets = [0, 40], sizes = [8, 8], strides = [1, 1]} : vector<16x96xf32> to vector<8x8xf32>
    %82 = vector.extract_strided_slice %64 {offsets = [0, 72], sizes = [8, 8], strides = [1, 1]} : vector<16x96xf32> to vector<8x8xf32>
    %cst_36 = arith.constant dense<0.000000e+00> : vector<8x8xf32>
    %83 = tpu.matmul %80, %81, %cst_36 {dimension_numbers = #tpu.dot_dimension_numbers<[1], [1], [0], [0], [0, 0, 1, 0], [], []>} : vector<8x8xf32>, vector<8x8xf32>, vector<8x8xf32> -> vector<8x8xf32>
    %84 = arith.addf %83, %50 : vector<8x8xf32>
    %cst_37 = arith.constant dense<0xFF800000> : vector<8xf32>
    %85 = vector.multi_reduction <maximumf>, %84, %cst_37 [1] : vector<8x8xf32> to vector<8xf32>
    %86 = vector.shape_cast %85 : vector<8xf32> to vector<8x1xf32>
    %87 = vector.broadcast %86 : vector<8x1xf32> to vector<8x8xf32>
    %88 = arith.subf %84, %87 : vector<8x8xf32>
    %89 = math.exp %88 : vector<8x8xf32>
    %cst_38 = arith.constant dense<0.000000e+00> : vector<8xf32>
    %90 = vector.multi_reduction <add>, %89, %cst_38 [1] : vector<8x8xf32> to vector<8xf32>
    %91 = vector.shape_cast %90 : vector<8xf32> to vector<8x1xf32>
    %92 = vector.broadcast %91 : vector<8x1xf32> to vector<8x8xf32>
    %93 = arith.divf %89, %92 : vector<8x8xf32>
    %cst_39 = arith.constant dense<0.000000e+00> : vector<8x8xf32>
    %94 = tpu.matmul %93, %82, %cst_39 {dimension_numbers = #tpu.dot_dimension_numbers<[1], [0], [0], [1], [0, 0, 1, 1], [], []>} : vector<8x8xf32>, vector<8x8xf32>, vector<8x8xf32> -> vector<8x8xf32>
    %95 = vector.extract_strided_slice %64 {offsets = [0, 16], sizes = [8, 8], strides = [1, 1]} : vector<16x96xf32> to vector<8x8xf32>
    %96 = vector.extract_strided_slice %64 {offsets = [0, 48], sizes = [8, 8], strides = [1, 1]} : vector<16x96xf32> to vector<8x8xf32>
    %97 = vector.extract_strided_slice %64 {offsets = [0, 80], sizes = [8, 8], strides = [1, 1]} : vector<16x96xf32> to vector<8x8xf32>
    %cst_40 = arith.constant dense<0.000000e+00> : vector<8x8xf32>
    %98 = tpu.matmul %95, %96, %cst_40 {dimension_numbers = #tpu.dot_dimension_numbers<[1], [1], [0], [0], [0, 0, 1, 0], [], []>} : vector<8x8xf32>, vector<8x8xf32>, vector<8x8xf32> -> vector<8x8xf32>
    %99 = arith.addf %98, %50 : vector<8x8xf32>
    %cst_41 = arith.constant dense<0xFF800000> : vector<8xf32>
    %100 = vector.multi_reduction <maximumf>, %99, %cst_41 [1] : vector<8x8xf32> to vector<8xf32>
    %101 = vector.shape_cast %100 : vector<8xf32> to vector<8x1xf32>
    %102 = vector.broadcast %101 : vector<8x1xf32> to vector<8x8xf32>
    %103 = arith.subf %99, %102 : vector<8x8xf32>
    %104 = math.exp %103 : vector<8x8xf32>
    %cst_42 = arith.constant dense<0.000000e+00> : vector<8xf32>
    %105 = vector.multi_reduction <add>, %104, %cst_42 [1] : vector<8x8xf32> to vector<8xf32>
    %106 = vector.shape_cast %105 : vector<8xf32> to vector<8x1xf32>
    %107 = vector.broadcast %106 : vector<8x1xf32> to vector<8x8xf32>
    %108 = arith.divf %104, %107 : vector<8x8xf32>
    %cst_43 = arith.constant dense<0.000000e+00> : vector<8x8xf32>
    %109 = tpu.matmul %108, %97, %cst_43 {dimension_numbers = #tpu.dot_dimension_numbers<[1], [0], [0], [1], [0, 0, 1, 1], [], []>} : vector<8x8xf32>, vector<8x8xf32>, vector<8x8xf32> -> vector<8x8xf32>
    %110 = vector.extract_strided_slice %64 {offsets = [0, 24], sizes = [8, 8], strides = [1, 1]} : vector<16x96xf32> to vector<8x8xf32>
    %111 = vector.extract_strided_slice %64 {offsets = [0, 56], sizes = [8, 8], strides = [1, 1]} : vector<16x96xf32> to vector<8x8xf32>
    %112 = vector.extract_strided_slice %64 {offsets = [0, 88], sizes = [8, 8], strides = [1, 1]} : vector<16x96xf32> to vector<8x8xf32>
    %cst_44 = arith.constant dense<0.000000e+00> : vector<8x8xf32>
    %113 = tpu.matmul %110, %111, %cst_44 {dimension_numbers = #tpu.dot_dimension_numbers<[1], [1], [0], [0], [0, 0, 1, 0], [], []>} : vector<8x8xf32>, vector<8x8xf32>, vector<8x8xf32> -> vector<8x8xf32>
    %114 = arith.addf %113, %50 : vector<8x8xf32>
    %cst_45 = arith.constant dense<0xFF800000> : vector<8xf32>
    %115 = vector.multi_reduction <maximumf>, %114, %cst_45 [1] : vector<8x8xf32> to vector<8xf32>
    %116 = vector.shape_cast %115 : vector<8xf32> to vector<8x1xf32>
    %117 = vector.broadcast %116 : vector<8x1xf32> to vector<8x8xf32>
    %118 = arith.subf %114, %117 : vector<8x8xf32>
    %119 = math.exp %118 : vector<8x8xf32>
    %cst_46 = arith.constant dense<0.000000e+00> : vector<8xf32>
    %120 = vector.multi_reduction <add>, %119, %cst_46 [1] : vector<8x8xf32> to vector<8xf32>
    %121 = vector.shape_cast %120 : vector<8xf32> to vector<8x1xf32>
    %122 = vector.broadcast %121 : vector<8x1xf32> to vector<8x8xf32>
    %123 = arith.divf %119, %122 : vector<8x8xf32>
    %cst_47 = arith.constant dense<0.000000e+00> : vector<8x8xf32>
    %124 = tpu.matmul %123, %112, %cst_47 {dimension_numbers = #tpu.dot_dimension_numbers<[1], [0], [0], [1], [0, 0, 1, 1], [], []>} : vector<8x8xf32>, vector<8x8xf32>, vector<8x8xf32> -> vector<8x8xf32>
    %125 = tpu.concatenate %79, %94, %109, %124 in 1 : vector<8x8xf32>, vector<8x8xf32>, vector<8x8xf32>, vector<8x8xf32> -> vector<8x32xf32>
    %126 = vector.extract_strided_slice %64 {offsets = [8, 0], sizes = [8, 8], strides = [1, 1]} : vector<16x96xf32> to vector<8x8xf32>
    %127 = vector.extract_strided_slice %64 {offsets = [8, 32], sizes = [8, 8], strides = [1, 1]} : vector<16x96xf32> to vector<8x8xf32>
    %128 = vector.extract_strided_slice %64 {offsets = [8, 64], sizes = [8, 8], strides = [1, 1]} : vector<16x96xf32> to vector<8x8xf32>
    %cst_48 = arith.constant dense<0.000000e+00> : vector<8x8xf32>
    %129 = tpu.matmul %126, %127, %cst_48 {dimension_numbers = #tpu.dot_dimension_numbers<[1], [1], [0], [0], [0, 0, 1, 0], [], []>} : vector<8x8xf32>, vector<8x8xf32>, vector<8x8xf32> -> vector<8x8xf32>
    %130 = arith.addf %129, %57 : vector<8x8xf32>
    %cst_49 = arith.constant dense<0xFF800000> : vector<8xf32>
    %131 = vector.multi_reduction <maximumf>, %130, %cst_49 [1] : vector<8x8xf32> to vector<8xf32>
    %132 = vector.shape_cast %131 : vector<8xf32> to vector<8x1xf32>
    %133 = vector.broadcast %132 : vector<8x1xf32> to vector<8x8xf32>
    %134 = arith.subf %130, %133 : vector<8x8xf32>
    %135 = math.exp %134 : vector<8x8xf32>
    %cst_50 = arith.constant dense<0.000000e+00> : vector<8xf32>
    %136 = vector.multi_reduction <add>, %135, %cst_50 [1] : vector<8x8xf32> to vector<8xf32>
    %137 = vector.shape_cast %136 : vector<8xf32> to vector<8x1xf32>
    %138 = vector.broadcast %137 : vector<8x1xf32> to vector<8x8xf32>
    %139 = arith.divf %135, %138 : vector<8x8xf32>
    %cst_51 = arith.constant dense<0.000000e+00> : vector<8x8xf32>
    %140 = tpu.matmul %139, %128, %cst_51 {dimension_numbers = #tpu.dot_dimension_numbers<[1], [0], [0], [1], [0, 0, 1, 1], [], []>} : vector<8x8xf32>, vector<8x8xf32>, vector<8x8xf32> -> vector<8x8xf32>
    %141 = vector.extract_strided_slice %64 {offsets = [8, 8], sizes = [8, 8], strides = [1, 1]} : vector<16x96xf32> to vector<8x8xf32>
    %142 = vector.extract_strided_slice %64 {offsets = [8, 40], sizes = [8, 8], strides = [1, 1]} : vector<16x96xf32> to vector<8x8xf32>
    %143 = vector.extract_strided_slice %64 {offsets = [8, 72], sizes = [8, 8], strides = [1, 1]} : vector<16x96xf32> to vector<8x8xf32>
    %cst_52 = arith.constant dense<0.000000e+00> : vector<8x8xf32>
    %144 = tpu.matmul %141, %142, %cst_52 {dimension_numbers = #tpu.dot_dimension_numbers<[1], [1], [0], [0], [0, 0, 1, 0], [], []>} : vector<8x8xf32>, vector<8x8xf32>, vector<8x8xf32> -> vector<8x8xf32>
    %145 = arith.addf %144, %57 : vector<8x8xf32>
    %cst_53 = arith.constant dense<0xFF800000> : vector<8xf32>
    %146 = vector.multi_reduction <maximumf>, %145, %cst_53 [1] : vector<8x8xf32> to vector<8xf32>
    %147 = vector.shape_cast %146 : vector<8xf32> to vector<8x1xf32>
    %148 = vector.broadcast %147 : vector<8x1xf32> to vector<8x8xf32>
    %149 = arith.subf %145, %148 : vector<8x8xf32>
    %150 = math.exp %149 : vector<8x8xf32>
    %cst_54 = arith.constant dense<0.000000e+00> : vector<8xf32>
    %151 = vector.multi_reduction <add>, %150, %cst_54 [1] : vector<8x8xf32> to vector<8xf32>
    %152 = vector.shape_cast %151 : vector<8xf32> to vector<8x1xf32>
    %153 = vector.broadcast %152 : vector<8x1xf32> to vector<8x8xf32>
    %154 = arith.divf %150, %153 : vector<8x8xf32>
    %cst_55 = arith.constant dense<0.000000e+00> : vector<8x8xf32>
    %155 = tpu.matmul %154, %143, %cst_55 {dimension_numbers = #tpu.dot_dimension_numbers<[1], [0], [0], [1], [0, 0, 1, 1], [], []>} : vector<8x8xf32>, vector<8x8xf32>, vector<8x8xf32> -> vector<8x8xf32>
    %156 = vector.extract_strided_slice %64 {offsets = [8, 16], sizes = [8, 8], strides = [1, 1]} : vector<16x96xf32> to vector<8x8xf32>
    %157 = vector.extract_strided_slice %64 {offsets = [8, 48], sizes = [8, 8], strides = [1, 1]} : vector<16x96xf32> to vector<8x8xf32>
    %158 = vector.extract_strided_slice %64 {offsets = [8, 80], sizes = [8, 8], strides = [1, 1]} : vector<16x96xf32> to vector<8x8xf32>
    %cst_56 = arith.constant dense<0.000000e+00> : vector<8x8xf32>
    %159 = tpu.matmul %156, %157, %cst_56 {dimension_numbers = #tpu.dot_dimension_numbers<[1], [1], [0], [0], [0, 0, 1, 0], [], []>} : vector<8x8xf32>, vector<8x8xf32>, vector<8x8xf32> -> vector<8x8xf32>
    %160 = arith.addf %159, %57 : vector<8x8xf32>
    %cst_57 = arith.constant dense<0xFF800000> : vector<8xf32>
    %161 = vector.multi_reduction <maximumf>, %160, %cst_57 [1] : vector<8x8xf32> to vector<8xf32>
    %162 = vector.shape_cast %161 : vector<8xf32> to vector<8x1xf32>
    %163 = vector.broadcast %162 : vector<8x1xf32> to vector<8x8xf32>
    %164 = arith.subf %160, %163 : vector<8x8xf32>
    %165 = math.exp %164 : vector<8x8xf32>
    %cst_58 = arith.constant dense<0.000000e+00> : vector<8xf32>
    %166 = vector.multi_reduction <add>, %165, %cst_58 [1] : vector<8x8xf32> to vector<8xf32>
    %167 = vector.shape_cast %166 : vector<8xf32> to vector<8x1xf32>
    %168 = vector.broadcast %167 : vector<8x1xf32> to vector<8x8xf32>
    %169 = arith.divf %165, %168 : vector<8x8xf32>
    %cst_59 = arith.constant dense<0.000000e+00> : vector<8x8xf32>
    %170 = tpu.matmul %169, %158, %cst_59 {dimension_numbers = #tpu.dot_dimension_numbers<[1], [0], [0], [1], [0, 0, 1, 1], [], []>} : vector<8x8xf32>, vector<8x8xf32>, vector<8x8xf32> -> vector<8x8xf32>
    %171 = vector.extract_strided_slice %64 {offsets = [8, 24], sizes = [8, 8], strides = [1, 1]} : vector<16x96xf32> to vector<8x8xf32>
    %172 = vector.extract_strided_slice %64 {offsets = [8, 56], sizes = [8, 8], strides = [1, 1]} : vector<16x96xf32> to vector<8x8xf32>
    %173 = vector.extract_strided_slice %64 {offsets = [8, 88], sizes = [8, 8], strides = [1, 1]} : vector<16x96xf32> to vector<8x8xf32>
    %cst_60 = arith.constant dense<0.000000e+00> : vector<8x8xf32>
    %174 = tpu.matmul %171, %172, %cst_60 {dimension_numbers = #tpu.dot_dimension_numbers<[1], [1], [0], [0], [0, 0, 1, 0], [], []>} : vector<8x8xf32>, vector<8x8xf32>, vector<8x8xf32> -> vector<8x8xf32>
    %175 = arith.addf %174, %57 : vector<8x8xf32>
    %cst_61 = arith.constant dense<0xFF800000> : vector<8xf32>
    %176 = vector.multi_reduction <maximumf>, %175, %cst_61 [1] : vector<8x8xf32> to vector<8xf32>
    %177 = vector.shape_cast %176 : vector<8xf32> to vector<8x1xf32>
    %178 = vector.broadcast %177 : vector<8x1xf32> to vector<8x8xf32>
    %179 = arith.subf %175, %178 : vector<8x8xf32>
    %180 = math.exp %179 : vector<8x8xf32>
    %cst_62 = arith.constant dense<0.000000e+00> : vector<8xf32>
    %181 = vector.multi_reduction <add>, %180, %cst_62 [1] : vector<8x8xf32> to vector<8xf32>
    %182 = vector.shape_cast %181 : vector<8xf32> to vector<8x1xf32>
    %183 = vector.broadcast %182 : vector<8x1xf32> to vector<8x8xf32>
    %184 = arith.divf %180, %183 : vector<8x8xf32>
    %cst_63 = arith.constant dense<0.000000e+00> : vector<8x8xf32>
    %185 = tpu.matmul %184, %173, %cst_63 {dimension_numbers = #tpu.dot_dimension_numbers<[1], [0], [0], [1], [0, 0, 1, 1], [], []>} : vector<8x8xf32>, vector<8x8xf32>, vector<8x8xf32> -> vector<8x8xf32>
    %186 = tpu.concatenate %140, %155, %170, %185 in 1 : vector<8x8xf32>, vector<8x8xf32>, vector<8x8xf32>, vector<8x8xf32> -> vector<8x32xf32>
    %187 = tpu.concatenate %125, %186 in 0 : vector<8x32xf32>, vector<8x32xf32> -> vector<16x32xf32>
    %c0_64 = arith.constant 0 : index
    %c0_65 = arith.constant 0 : index
    %c0_66 = arith.constant 0 : index
    %188 = vector.load %arg11[%c0_64, %c0_65, %c0_66] : memref<2x32x32xf32, #tpu.memory_space<vmem>>, vector<1x32x32xf32>
    %189 = vector.shape_cast %188 : vector<1x32x32xf32> to vector<32x32xf32>
    %cst_67 = arith.constant dense<0.000000e+00> : vector<16x32xf32>
    %190 = tpu.matmul %187, %189, %cst_67 {dimension_numbers = #tpu.dot_dimension_numbers<[1], [0], [0], [1], [0, 0, 1, 1], [], []>} : vector<16x32xf32>, vector<32x32xf32>, vector<16x32xf32> -> vector<16x32xf32>
    %c0_68 = arith.constant 0 : index
    %c0_69 = arith.constant 0 : index
    %c0_70 = arith.constant 0 : index
    %191 = vector.load %arg12[%c0_68, %c0_69, %c0_70] : memref<2x1x32xf32, #tpu.memory_space<vmem>>, vector<1x1x32xf32>
    %192 = vector.shape_cast %191 : vector<1x1x32xf32> to vector<1x32xf32>
    %193 = vector.broadcast %192 : vector<1x32xf32> to vector<16x32xf32>
    %194 = arith.addf %190, %193 : vector<16x32xf32>
    %195 = arith.addf %194, %41 : vector<16x32xf32>
    %c0_71 = arith.constant 0 : index
    %c0_72 = arith.constant 0 : index
    %c0_73 = arith.constant 0 : index
    %196 = vector.load %arg13[%c0_71, %c0_72, %c0_73] : memref<2x1x32xf32, #tpu.memory_space<vmem>>, vector<1x1x32xf32>
    %197 = vector.shape_cast %196 : vector<1x1x32xf32> to vector<1x32xf32>
    %c0_74 = arith.constant 0 : index
    %c0_75 = arith.constant 0 : index
    %c0_76 = arith.constant 0 : index
    %198 = vector.load %arg14[%c0_74, %c0_75, %c0_76] : memref<2x1x32xf32, #tpu.memory_space<vmem>>, vector<1x1x32xf32>
    %199 = vector.shape_cast %198 : vector<1x1x32xf32> to vector<1x32xf32>
    %cst_77 = arith.constant dense<0.000000e+00> : vector<16xf32>
    %200 = vector.multi_reduction <add>, %195, %cst_77 [1] : vector<16x32xf32> to vector<16xf32>
    %201 = vector.shape_cast %200 : vector<16xf32> to vector<16x1xf32>
    %cst_78 = arith.constant 3.200000e+01 : f32
    %202 = vector.broadcast %cst_78 : f32 to vector<16x1xf32>
    %203 = arith.divf %201, %202 : vector<16x1xf32>
    %204 = vector.broadcast %203 : vector<16x1xf32> to vector<16x32xf32>
    %205 = arith.subf %195, %204 : vector<16x32xf32>
    %206 = arith.mulf %205, %205 : vector<16x32xf32>
    %cst_79 = arith.constant dense<0.000000e+00> : vector<16xf32>
    %207 = vector.multi_reduction <add>, %206, %cst_79 [1] : vector<16x32xf32> to vector<16xf32>
    %208 = vector.shape_cast %207 : vector<16xf32> to vector<16x1xf32>
    %cst_80 = arith.constant 3.200000e+01 : f32
    %209 = vector.broadcast %cst_80 : f32 to vector<16x1xf32>
    %210 = arith.divf %208, %209 : vector<16x1xf32>
    %cst_81 = arith.constant 9.99999996E-13 : f32
    %211 = vector.broadcast %cst_81 : f32 to vector<16x1xf32>
    %212 = arith.addf %210, %211 : vector<16x1xf32>
    %213 = math.rsqrt %212 : vector<16x1xf32>
    %214 = vector.broadcast %213 : vector<16x1xf32> to vector<16x32xf32>
    %215 = arith.mulf %205, %214 : vector<16x32xf32>
    %216 = vector.broadcast %197 : vector<1x32xf32> to vector<16x32xf32>
    %217 = arith.mulf %215, %216 : vector<16x32xf32>
    %218 = vector.broadcast %199 : vector<1x32xf32> to vector<16x32xf32>
    %219 = arith.addf %217, %218 : vector<16x32xf32>
    %c0_82 = arith.constant 0 : index
    %c0_83 = arith.constant 0 : index
    %c0_84 = arith.constant 0 : index
    %220 = vector.load %arg15[%c0_82, %c0_83, %c0_84] : memref<2x32x64xf32, #tpu.memory_space<vmem>>, vector<1x32x64xf32>
    %221 = vector.shape_cast %220 : vector<1x32x64xf32> to vector<32x64xf32>
    %cst_85 = arith.constant dense<0.000000e+00> : vector<16x64xf32>
    %222 = tpu.matmul %219, %221, %cst_85 {dimension_numbers = #tpu.dot_dimension_numbers<[1], [0], [0], [1], [0, 0, 1, 1], [], []>} : vector<16x32xf32>, vector<32x64xf32>, vector<16x64xf32> -> vector<16x64xf32>
    %c0_86 = arith.constant 0 : index
    %c0_87 = arith.constant 0 : index
    %c0_88 = arith.constant 0 : index
    %223 = vector.load %arg16[%c0_86, %c0_87, %c0_88] : memref<2x1x64xf32, #tpu.memory_space<vmem>>, vector<1x1x64xf32>
    %224 = vector.shape_cast %223 : vector<1x1x64xf32> to vector<1x64xf32>
    %225 = vector.broadcast %224 : vector<1x64xf32> to vector<16x64xf32>
    %226 = arith.addf %222, %225 : vector<16x64xf32>
    %cst_89 = arith.constant 5.000000e-01 : f32
    %227 = vector.broadcast %cst_89 : f32 to vector<16x64xf32>
    %228 = arith.mulf %227, %226 : vector<16x64xf32>
    %cst_90 = arith.constant 0.707106769 : f32
    %229 = vector.broadcast %cst_90 : f32 to vector<16x64xf32>
    %230 = arith.mulf %226, %229 : vector<16x64xf32>
    %231 = math.erf %230 : vector<16x64xf32>
    %cst_91 = arith.constant 1.000000e+00 : f32
    %232 = vector.broadcast %cst_91 : f32 to vector<16x64xf32>
    %233 = arith.addf %232, %231 : vector<16x64xf32>
    %234 = arith.mulf %228, %233 : vector<16x64xf32>
    %c0_92 = arith.constant 0 : index
    %c0_93 = arith.constant 0 : index
    %c0_94 = arith.constant 0 : index
    %235 = vector.load %arg17[%c0_92, %c0_93, %c0_94] : memref<2x64x32xf32, #tpu.memory_space<vmem>>, vector<1x64x32xf32>
    %236 = vector.shape_cast %235 : vector<1x64x32xf32> to vector<64x32xf32>
    %cst_95 = arith.constant dense<0.000000e+00> : vector<16x32xf32>
    %237 = tpu.matmul %234, %236, %cst_95 {dimension_numbers = #tpu.dot_dimension_numbers<[1], [0], [0], [1], [0, 0, 1, 1], [], []>} : vector<16x64xf32>, vector<64x32xf32>, vector<16x32xf32> -> vector<16x32xf32>
    %c0_96 = arith.constant 0 : index
    %c0_97 = arith.constant 0 : index
    %c0_98 = arith.constant 0 : index
    %238 = vector.load %arg18[%c0_96, %c0_97, %c0_98] : memref<2x1x32xf32, #tpu.memory_space<vmem>>, vector<1x1x32xf32>
    %239 = vector.shape_cast %238 : vector<1x1x32xf32> to vector<1x32xf32>
    %240 = vector.broadcast %239 : vector<1x32xf32> to vector<16x32xf32>
    %241 = arith.addf %237, %240 : vector<16x32xf32>
    %242 = arith.addf %241, %219 : vector<16x32xf32>
    %c0_99 = arith.constant 0 : index
    %c0_100 = arith.constant 0 : index
    %c0_101 = arith.constant 0 : index
    %243 = vector.load %arg19[%c0_99, %c0_100, %c0_101] : memref<2x1x32xf32, #tpu.memory_space<vmem>>, vector<1x1x32xf32>
    %244 = vector.shape_cast %243 : vector<1x1x32xf32> to vector<1x32xf32>
    %c0_102 = arith.constant 0 : index
    %c0_103 = arith.constant 0 : index
    %c0_104 = arith.constant 0 : index
    %245 = vector.load %arg20[%c0_102, %c0_103, %c0_104] : memref<2x1x32xf32, #tpu.memory_space<vmem>>, vector<1x1x32xf32>
    %246 = vector.shape_cast %245 : vector<1x1x32xf32> to vector<1x32xf32>
    %cst_105 = arith.constant dense<0.000000e+00> : vector<16xf32>
    %247 = vector.multi_reduction <add>, %242, %cst_105 [1] : vector<16x32xf32> to vector<16xf32>
    %248 = vector.shape_cast %247 : vector<16xf32> to vector<16x1xf32>
    %cst_106 = arith.constant 3.200000e+01 : f32
    %249 = vector.broadcast %cst_106 : f32 to vector<16x1xf32>
    %250 = arith.divf %248, %249 : vector<16x1xf32>
    %251 = vector.broadcast %250 : vector<16x1xf32> to vector<16x32xf32>
    %252 = arith.subf %242, %251 : vector<16x32xf32>
    %253 = arith.mulf %252, %252 : vector<16x32xf32>
    %cst_107 = arith.constant dense<0.000000e+00> : vector<16xf32>
    %254 = vector.multi_reduction <add>, %253, %cst_107 [1] : vector<16x32xf32> to vector<16xf32>
    %255 = vector.shape_cast %254 : vector<16xf32> to vector<16x1xf32>
    %cst_108 = arith.constant 3.200000e+01 : f32
    %256 = vector.broadcast %cst_108 : f32 to vector<16x1xf32>
    %257 = arith.divf %255, %256 : vector<16x1xf32>
    %cst_109 = arith.constant 9.99999996E-13 : f32
    %258 = vector.broadcast %cst_109 : f32 to vector<16x1xf32>
    %259 = arith.addf %257, %258 : vector<16x1xf32>
    %260 = math.rsqrt %259 : vector<16x1xf32>
    %261 = vector.broadcast %260 : vector<16x1xf32> to vector<16x32xf32>
    %262 = arith.mulf %252, %261 : vector<16x32xf32>
    %263 = vector.broadcast %244 : vector<1x32xf32> to vector<16x32xf32>
    %264 = arith.mulf %262, %263 : vector<16x32xf32>
    %265 = vector.broadcast %246 : vector<1x32xf32> to vector<16x32xf32>
    %266 = arith.addf %264, %265 : vector<16x32xf32>
    %c1 = arith.constant 1 : index
    %c0_110 = arith.constant 0 : index
    %c0_111 = arith.constant 0 : index
    %267 = vector.load %arg9[%c1, %c0_110, %c0_111] : memref<2x32x96xf32, #tpu.memory_space<vmem>>, vector<1x32x96xf32>
    %268 = vector.shape_cast %267 : vector<1x32x96xf32> to vector<32x96xf32>
    %cst_112 = arith.constant dense<0.000000e+00> : vector<16x96xf32>
    %269 = tpu.matmul %266, %268, %cst_112 {dimension_numbers = #tpu.dot_dimension_numbers<[1], [0], [0], [1], [0, 0, 1, 1], [], []>} : vector<16x32xf32>, vector<32x96xf32>, vector<16x96xf32> -> vector<16x96xf32>
    %c1_113 = arith.constant 1 : index
    %c0_114 = arith.constant 0 : index
    %c0_115 = arith.constant 0 : index
    %270 = vector.load %arg10[%c1_113, %c0_114, %c0_115] : memref<2x1x96xf32, #tpu.memory_space<vmem>>, vector<1x1x96xf32>
    %271 = vector.shape_cast %270 : vector<1x1x96xf32> to vector<1x96xf32>
    %272 = vector.broadcast %271 : vector<1x96xf32> to vector<16x96xf32>
    %273 = arith.addf %269, %272 : vector<16x96xf32>
    %274 = vector.extract_strided_slice %273 {offsets = [0, 0], sizes = [8, 8], strides = [1, 1]} : vector<16x96xf32> to vector<8x8xf32>
    %275 = vector.extract_strided_slice %273 {offsets = [0, 32], sizes = [8, 8], strides = [1, 1]} : vector<16x96xf32> to vector<8x8xf32>
    %276 = vector.extract_strided_slice %273 {offsets = [0, 64], sizes = [8, 8], strides = [1, 1]} : vector<16x96xf32> to vector<8x8xf32>
    %cst_116 = arith.constant dense<0.000000e+00> : vector<8x8xf32>
    %277 = tpu.matmul %274, %275, %cst_116 {dimension_numbers = #tpu.dot_dimension_numbers<[1], [1], [0], [0], [0, 0, 1, 0], [], []>} : vector<8x8xf32>, vector<8x8xf32>, vector<8x8xf32> -> vector<8x8xf32>
    %278 = arith.addf %277, %50 : vector<8x8xf32>
    %cst_117 = arith.constant dense<0xFF800000> : vector<8xf32>
    %279 = vector.multi_reduction <maximumf>, %278, %cst_117 [1] : vector<8x8xf32> to vector<8xf32>
    %280 = vector.shape_cast %279 : vector<8xf32> to vector<8x1xf32>
    %281 = vector.broadcast %280 : vector<8x1xf32> to vector<8x8xf32>
    %282 = arith.subf %278, %281 : vector<8x8xf32>
    %283 = math.exp %282 : vector<8x8xf32>
    %cst_118 = arith.constant dense<0.000000e+00> : vector<8xf32>
    %284 = vector.multi_reduction <add>, %283, %cst_118 [1] : vector<8x8xf32> to vector<8xf32>
    %285 = vector.shape_cast %284 : vector<8xf32> to vector<8x1xf32>
    %286 = vector.broadcast %285 : vector<8x1xf32> to vector<8x8xf32>
    %287 = arith.divf %283, %286 : vector<8x8xf32>
    %cst_119 = arith.constant dense<0.000000e+00> : vector<8x8xf32>
    %288 = tpu.matmul %287, %276, %cst_119 {dimension_numbers = #tpu.dot_dimension_numbers<[1], [0], [0], [1], [0, 0, 1, 1], [], []>} : vector<8x8xf32>, vector<8x8xf32>, vector<8x8xf32> -> vector<8x8xf32>
    %289 = vector.extract_strided_slice %273 {offsets = [0, 8], sizes = [8, 8], strides = [1, 1]} : vector<16x96xf32> to vector<8x8xf32>
    %290 = vector.extract_strided_slice %273 {offsets = [0, 40], sizes = [8, 8], strides = [1, 1]} : vector<16x96xf32> to vector<8x8xf32>
    %291 = vector.extract_strided_slice %273 {offsets = [0, 72], sizes = [8, 8], strides = [1, 1]} : vector<16x96xf32> to vector<8x8xf32>
    %cst_120 = arith.constant dense<0.000000e+00> : vector<8x8xf32>
    %292 = tpu.matmul %289, %290, %cst_120 {dimension_numbers = #tpu.dot_dimension_numbers<[1], [1], [0], [0], [0, 0, 1, 0], [], []>} : vector<8x8xf32>, vector<8x8xf32>, vector<8x8xf32> -> vector<8x8xf32>
    %293 = arith.addf %292, %50 : vector<8x8xf32>
    %cst_121 = arith.constant dense<0xFF800000> : vector<8xf32>
    %294 = vector.multi_reduction <maximumf>, %293, %cst_121 [1] : vector<8x8xf32> to vector<8xf32>
    %295 = vector.shape_cast %294 : vector<8xf32> to vector<8x1xf32>
    %296 = vector.broadcast %295 : vector<8x1xf32> to vector<8x8xf32>
    %297 = arith.subf %293, %296 : vector<8x8xf32>
    %298 = math.exp %297 : vector<8x8xf32>
    %cst_122 = arith.constant dense<0.000000e+00> : vector<8xf32>
    %299 = vector.multi_reduction <add>, %298, %cst_122 [1] : vector<8x8xf32> to vector<8xf32>
    %300 = vector.shape_cast %299 : vector<8xf32> to vector<8x1xf32>
    %301 = vector.broadcast %300 : vector<8x1xf32> to vector<8x8xf32>
    %302 = arith.divf %298, %301 : vector<8x8xf32>
    %cst_123 = arith.constant dense<0.000000e+00> : vector<8x8xf32>
    %303 = tpu.matmul %302, %291, %cst_123 {dimension_numbers = #tpu.dot_dimension_numbers<[1], [0], [0], [1], [0, 0, 1, 1], [], []>} : vector<8x8xf32>, vector<8x8xf32>, vector<8x8xf32> -> vector<8x8xf32>
    %304 = vector.extract_strided_slice %273 {offsets = [0, 16], sizes = [8, 8], strides = [1, 1]} : vector<16x96xf32> to vector<8x8xf32>
    %305 = vector.extract_strided_slice %273 {offsets = [0, 48], sizes = [8, 8], strides = [1, 1]} : vector<16x96xf32> to vector<8x8xf32>
    %306 = vector.extract_strided_slice %273 {offsets = [0, 80], sizes = [8, 8], strides = [1, 1]} : vector<16x96xf32> to vector<8x8xf32>
    %cst_124 = arith.constant dense<0.000000e+00> : vector<8x8xf32>
    %307 = tpu.matmul %304, %305, %cst_124 {dimension_numbers = #tpu.dot_dimension_numbers<[1], [1], [0], [0], [0, 0, 1, 0], [], []>} : vector<8x8xf32>, vector<8x8xf32>, vector<8x8xf32> -> vector<8x8xf32>
    %308 = arith.addf %307, %50 : vector<8x8xf32>
    %cst_125 = arith.constant dense<0xFF800000> : vector<8xf32>
    %309 = vector.multi_reduction <maximumf>, %308, %cst_125 [1] : vector<8x8xf32> to vector<8xf32>
    %310 = vector.shape_cast %309 : vector<8xf32> to vector<8x1xf32>
    %311 = vector.broadcast %310 : vector<8x1xf32> to vector<8x8xf32>
    %312 = arith.subf %308, %311 : vector<8x8xf32>
    %313 = math.exp %312 : vector<8x8xf32>
    %cst_126 = arith.constant dense<0.000000e+00> : vector<8xf32>
    %314 = vector.multi_reduction <add>, %313, %cst_126 [1] : vector<8x8xf32> to vector<8xf32>
    %315 = vector.shape_cast %314 : vector<8xf32> to vector<8x1xf32>
    %316 = vector.broadcast %315 : vector<8x1xf32> to vector<8x8xf32>
    %317 = arith.divf %313, %316 : vector<8x8xf32>
    %cst_127 = arith.constant dense<0.000000e+00> : vector<8x8xf32>
    %318 = tpu.matmul %317, %306, %cst_127 {dimension_numbers = #tpu.dot_dimension_numbers<[1], [0], [0], [1], [0, 0, 1, 1], [], []>} : vector<8x8xf32>, vector<8x8xf32>, vector<8x8xf32> -> vector<8x8xf32>
    %319 = vector.extract_strided_slice %273 {offsets = [0, 24], sizes = [8, 8], strides = [1, 1]} : vector<16x96xf32> to vector<8x8xf32>
    %320 = vector.extract_strided_slice %273 {offsets = [0, 56], sizes = [8, 8], strides = [1, 1]} : vector<16x96xf32> to vector<8x8xf32>
    %321 = vector.extract_strided_slice %273 {offsets = [0, 88], sizes = [8, 8], strides = [1, 1]} : vector<16x96xf32> to vector<8x8xf32>
    %cst_128 = arith.constant dense<0.000000e+00> : vector<8x8xf32>
    %322 = tpu.matmul %319, %320, %cst_128 {dimension_numbers = #tpu.dot_dimension_numbers<[1], [1], [0], [0], [0, 0, 1, 0], [], []>} : vector<8x8xf32>, vector<8x8xf32>, vector<8x8xf32> -> vector<8x8xf32>
    %323 = arith.addf %322, %50 : vector<8x8xf32>
    %cst_129 = arith.constant dense<0xFF800000> : vector<8xf32>
    %324 = vector.multi_reduction <maximumf>, %323, %cst_129 [1] : vector<8x8xf32> to vector<8xf32>
    %325 = vector.shape_cast %324 : vector<8xf32> to vector<8x1xf32>
    %326 = vector.broadcast %325 : vector<8x1xf32> to vector<8x8xf32>
    %327 = arith.subf %323, %326 : vector<8x8xf32>
    %328 = math.exp %327 : vector<8x8xf32>
    %cst_130 = arith.constant dense<0.000000e+00> : vector<8xf32>
    %329 = vector.multi_reduction <add>, %328, %cst_130 [1] : vector<8x8xf32> to vector<8xf32>
    %330 = vector.shape_cast %329 : vector<8xf32> to vector<8x1xf32>
    %331 = vector.broadcast %330 : vector<8x1xf32> to vector<8x8xf32>
    %332 = arith.divf %328, %331 : vector<8x8xf32>
    %cst_131 = arith.constant dense<0.000000e+00> : vector<8x8xf32>
    %333 = tpu.matmul %332, %321, %cst_131 {dimension_numbers = #tpu.dot_dimension_numbers<[1], [0], [0], [1], [0, 0, 1, 1], [], []>} : vector<8x8xf32>, vector<8x8xf32>, vector<8x8xf32> -> vector<8x8xf32>
    %334 = tpu.concatenate %288, %303, %318, %333 in 1 : vector<8x8xf32>, vector<8x8xf32>, vector<8x8xf32>, vector<8x8xf32> -> vector<8x32xf32>
    %335 = vector.extract_strided_slice %273 {offsets = [8, 0], sizes = [8, 8], strides = [1, 1]} : vector<16x96xf32> to vector<8x8xf32>
    %336 = vector.extract_strided_slice %273 {offsets = [8, 32], sizes = [8, 8], strides = [1, 1]} : vector<16x96xf32> to vector<8x8xf32>
    %337 = vector.extract_strided_slice %273 {offsets = [8, 64], sizes = [8, 8], strides = [1, 1]} : vector<16x96xf32> to vector<8x8xf32>
    %cst_132 = arith.constant dense<0.000000e+00> : vector<8x8xf32>
    %338 = tpu.matmul %335, %336, %cst_132 {dimension_numbers = #tpu.dot_dimension_numbers<[1], [1], [0], [0], [0, 0, 1, 0], [], []>} : vector<8x8xf32>, vector<8x8xf32>, vector<8x8xf32> -> vector<8x8xf32>
    %339 = arith.addf %338, %57 : vector<8x8xf32>
    %cst_133 = arith.constant dense<0xFF800000> : vector<8xf32>
    %340 = vector.multi_reduction <maximumf>, %339, %cst_133 [1] : vector<8x8xf32> to vector<8xf32>
    %341 = vector.shape_cast %340 : vector<8xf32> to vector<8x1xf32>
    %342 = vector.broadcast %341 : vector<8x1xf32> to vector<8x8xf32>
    %343 = arith.subf %339, %342 : vector<8x8xf32>
    %344 = math.exp %343 : vector<8x8xf32>
    %cst_134 = arith.constant dense<0.000000e+00> : vector<8xf32>
    %345 = vector.multi_reduction <add>, %344, %cst_134 [1] : vector<8x8xf32> to vector<8xf32>
    %346 = vector.shape_cast %345 : vector<8xf32> to vector<8x1xf32>
    %347 = vector.broadcast %346 : vector<8x1xf32> to vector<8x8xf32>
    %348 = arith.divf %344, %347 : vector<8x8xf32>
    %cst_135 = arith.constant dense<0.000000e+00> : vector<8x8xf32>
    %349 = tpu.matmul %348, %337, %cst_135 {dimension_numbers = #tpu.dot_dimension_numbers<[1], [0], [0], [1], [0, 0, 1, 1], [], []>} : vector<8x8xf32>, vector<8x8xf32>, vector<8x8xf32> -> vector<8x8xf32>
    %350 = vector.extract_strided_slice %273 {offsets = [8, 8], sizes = [8, 8], strides = [1, 1]} : vector<16x96xf32> to vector<8x8xf32>
    %351 = vector.extract_strided_slice %273 {offsets = [8, 40], sizes = [8, 8], strides = [1, 1]} : vector<16x96xf32> to vector<8x8xf32>
    %352 = vector.extract_strided_slice %273 {offsets = [8, 72], sizes = [8, 8], strides = [1, 1]} : vector<16x96xf32> to vector<8x8xf32>
    %cst_136 = arith.constant dense<0.000000e+00> : vector<8x8xf32>
    %353 = tpu.matmul %350, %351, %cst_136 {dimension_numbers = #tpu.dot_dimension_numbers<[1], [1], [0], [0], [0, 0, 1, 0], [], []>} : vector<8x8xf32>, vector<8x8xf32>, vector<8x8xf32> -> vector<8x8xf32>
    %354 = arith.addf %353, %57 : vector<8x8xf32>
    %cst_137 = arith.constant dense<0xFF800000> : vector<8xf32>
    %355 = vector.multi_reduction <maximumf>, %354, %cst_137 [1] : vector<8x8xf32> to vector<8xf32>
    %356 = vector.shape_cast %355 : vector<8xf32> to vector<8x1xf32>
    %357 = vector.broadcast %356 : vector<8x1xf32> to vector<8x8xf32>
    %358 = arith.subf %354, %357 : vector<8x8xf32>
    %359 = math.exp %358 : vector<8x8xf32>
    %cst_138 = arith.constant dense<0.000000e+00> : vector<8xf32>
    %360 = vector.multi_reduction <add>, %359, %cst_138 [1] : vector<8x8xf32> to vector<8xf32>
    %361 = vector.shape_cast %360 : vector<8xf32> to vector<8x1xf32>
    %362 = vector.broadcast %361 : vector<8x1xf32> to vector<8x8xf32>
    %363 = arith.divf %359, %362 : vector<8x8xf32>
    %cst_139 = arith.constant dense<0.000000e+00> : vector<8x8xf32>
    %364 = tpu.matmul %363, %352, %cst_139 {dimension_numbers = #tpu.dot_dimension_numbers<[1], [0], [0], [1], [0, 0, 1, 1], [], []>} : vector<8x8xf32>, vector<8x8xf32>, vector<8x8xf32> -> vector<8x8xf32>
    %365 = vector.extract_strided_slice %273 {offsets = [8, 16], sizes = [8, 8], strides = [1, 1]} : vector<16x96xf32> to vector<8x8xf32>
    %366 = vector.extract_strided_slice %273 {offsets = [8, 48], sizes = [8, 8], strides = [1, 1]} : vector<16x96xf32> to vector<8x8xf32>
    %367 = vector.extract_strided_slice %273 {offsets = [8, 80], sizes = [8, 8], strides = [1, 1]} : vector<16x96xf32> to vector<8x8xf32>
    %cst_140 = arith.constant dense<0.000000e+00> : vector<8x8xf32>
    %368 = tpu.matmul %365, %366, %cst_140 {dimension_numbers = #tpu.dot_dimension_numbers<[1], [1], [0], [0], [0, 0, 1, 0], [], []>} : vector<8x8xf32>, vector<8x8xf32>, vector<8x8xf32> -> vector<8x8xf32>
    %369 = arith.addf %368, %57 : vector<8x8xf32>
    %cst_141 = arith.constant dense<0xFF800000> : vector<8xf32>
    %370 = vector.multi_reduction <maximumf>, %369, %cst_141 [1] : vector<8x8xf32> to vector<8xf32>
    %371 = vector.shape_cast %370 : vector<8xf32> to vector<8x1xf32>
    %372 = vector.broadcast %371 : vector<8x1xf32> to vector<8x8xf32>
    %373 = arith.subf %369, %372 : vector<8x8xf32>
    %374 = math.exp %373 : vector<8x8xf32>
    %cst_142 = arith.constant dense<0.000000e+00> : vector<8xf32>
    %375 = vector.multi_reduction <add>, %374, %cst_142 [1] : vector<8x8xf32> to vector<8xf32>
    %376 = vector.shape_cast %375 : vector<8xf32> to vector<8x1xf32>
    %377 = vector.broadcast %376 : vector<8x1xf32> to vector<8x8xf32>
    %378 = arith.divf %374, %377 : vector<8x8xf32>
    %cst_143 = arith.constant dense<0.000000e+00> : vector<8x8xf32>
    %379 = tpu.matmul %378, %367, %cst_143 {dimension_numbers = #tpu.dot_dimension_numbers<[1], [0], [0], [1], [0, 0, 1, 1], [], []>} : vector<8x8xf32>, vector<8x8xf32>, vector<8x8xf32> -> vector<8x8xf32>
    %380 = vector.extract_strided_slice %273 {offsets = [8, 24], sizes = [8, 8], strides = [1, 1]} : vector<16x96xf32> to vector<8x8xf32>
    %381 = vector.extract_strided_slice %273 {offsets = [8, 56], sizes = [8, 8], strides = [1, 1]} : vector<16x96xf32> to vector<8x8xf32>
    %382 = vector.extract_strided_slice %273 {offsets = [8, 88], sizes = [8, 8], strides = [1, 1]} : vector<16x96xf32> to vector<8x8xf32>
    %cst_144 = arith.constant dense<0.000000e+00> : vector<8x8xf32>
    %383 = tpu.matmul %380, %381, %cst_144 {dimension_numbers = #tpu.dot_dimension_numbers<[1], [1], [0], [0], [0, 0, 1, 0], [], []>} : vector<8x8xf32>, vector<8x8xf32>, vector<8x8xf32> -> vector<8x8xf32>
    %384 = arith.addf %383, %57 : vector<8x8xf32>
    %cst_145 = arith.constant dense<0xFF800000> : vector<8xf32>
    %385 = vector.multi_reduction <maximumf>, %384, %cst_145 [1] : vector<8x8xf32> to vector<8xf32>
    %386 = vector.shape_cast %385 : vector<8xf32> to vector<8x1xf32>
    %387 = vector.broadcast %386 : vector<8x1xf32> to vector<8x8xf32>
    %388 = arith.subf %384, %387 : vector<8x8xf32>
    %389 = math.exp %388 : vector<8x8xf32>
    %cst_146 = arith.constant dense<0.000000e+00> : vector<8xf32>
    %390 = vector.multi_reduction <add>, %389, %cst_146 [1] : vector<8x8xf32> to vector<8xf32>
    %391 = vector.shape_cast %390 : vector<8xf32> to vector<8x1xf32>
    %392 = vector.broadcast %391 : vector<8x1xf32> to vector<8x8xf32>
    %393 = arith.divf %389, %392 : vector<8x8xf32>
    %cst_147 = arith.constant dense<0.000000e+00> : vector<8x8xf32>
    %394 = tpu.matmul %393, %382, %cst_147 {dimension_numbers = #tpu.dot_dimension_numbers<[1], [0], [0], [1], [0, 0, 1, 1], [], []>} : vector<8x8xf32>, vector<8x8xf32>, vector<8x8xf32> -> vector<8x8xf32>
    %395 = tpu.concatenate %349, %364, %379, %394 in 1 : vector<8x8xf32>, vector<8x8xf32>, vector<8x8xf32>, vector<8x8xf32> -> vector<8x32xf32>
    %396 = tpu.concatenate %334, %395 in 0 : vector<8x32xf32>, vector<8x32xf32> -> vector<16x32xf32>
    %c1_148 = arith.constant 1 : index
    %c0_149 = arith.constant 0 : index
    %c0_150 = arith.constant 0 : index
    %397 = vector.load %arg11[%c1_148, %c0_149, %c0_150] : memref<2x32x32xf32, #tpu.memory_space<vmem>>, vector<1x32x32xf32>
    %398 = vector.shape_cast %397 : vector<1x32x32xf32> to vector<32x32xf32>
    %cst_151 = arith.constant dense<0.000000e+00> : vector<16x32xf32>
    %399 = tpu.matmul %396, %398, %cst_151 {dimension_numbers = #tpu.dot_dimension_numbers<[1], [0], [0], [1], [0, 0, 1, 1], [], []>} : vector<16x32xf32>, vector<32x32xf32>, vector<16x32xf32> -> vector<16x32xf32>
    %c1_152 = arith.constant 1 : index
    %c0_153 = arith.constant 0 : index
    %c0_154 = arith.constant 0 : index
    %400 = vector.load %arg12[%c1_152, %c0_153, %c0_154] : memref<2x1x32xf32, #tpu.memory_space<vmem>>, vector<1x1x32xf32>
    %401 = vector.shape_cast %400 : vector<1x1x32xf32> to vector<1x32xf32>
    %402 = vector.broadcast %401 : vector<1x32xf32> to vector<16x32xf32>
    %403 = arith.addf %399, %402 : vector<16x32xf32>
    %404 = arith.addf %403, %266 : vector<16x32xf32>
    %c1_155 = arith.constant 1 : index
    %c0_156 = arith.constant 0 : index
    %c0_157 = arith.constant 0 : index
    %405 = vector.load %arg13[%c1_155, %c0_156, %c0_157] : memref<2x1x32xf32, #tpu.memory_space<vmem>>, vector<1x1x32xf32>
    %406 = vector.shape_cast %405 : vector<1x1x32xf32> to vector<1x32xf32>
    %c1_158 = arith.constant 1 : index
    %c0_159 = arith.constant 0 : index
    %c0_160 = arith.constant 0 : index
    %407 = vector.load %arg14[%c1_158, %c0_159, %c0_160] : memref<2x1x32xf32, #tpu.memory_space<vmem>>, vector<1x1x32xf32>
    %408 = vector.shape_cast %407 : vector<1x1x32xf32> to vector<1x32xf32>
    %cst_161 = arith.constant dense<0.000000e+00> : vector<16xf32>
    %409 = vector.multi_reduction <add>, %404, %cst_161 [1] : vector<16x32xf32> to vector<16xf32>
    %410 = vector.shape_cast %409 : vector<16xf32> to vector<16x1xf32>
    %cst_162 = arith.constant 3.200000e+01 : f32
    %411 = vector.broadcast %cst_162 : f32 to vector<16x1xf32>
    %412 = arith.divf %410, %411 : vector<16x1xf32>
    %413 = vector.broadcast %412 : vector<16x1xf32> to vector<16x32xf32>
    %414 = arith.subf %404, %413 : vector<16x32xf32>
    %415 = arith.mulf %414, %414 : vector<16x32xf32>
    %cst_163 = arith.constant dense<0.000000e+00> : vector<16xf32>
    %416 = vector.multi_reduction <add>, %415, %cst_163 [1] : vector<16x32xf32> to vector<16xf32>
    %417 = vector.shape_cast %416 : vector<16xf32> to vector<16x1xf32>
    %cst_164 = arith.constant 3.200000e+01 : f32
    %418 = vector.broadcast %cst_164 : f32 to vector<16x1xf32>
    %419 = arith.divf %417, %418 : vector<16x1xf32>
    %cst_165 = arith.constant 9.99999996E-13 : f32
    %420 = vector.broadcast %cst_165 : f32 to vector<16x1xf32>
    %421 = arith.addf %419, %420 : vector<16x1xf32>
    %422 = math.rsqrt %421 : vector<16x1xf32>
    %423 = vector.broadcast %422 : vector<16x1xf32> to vector<16x32xf32>
    %424 = arith.mulf %414, %423 : vector<16x32xf32>
    %425 = vector.broadcast %406 : vector<1x32xf32> to vector<16x32xf32>
    %426 = arith.mulf %424, %425 : vector<16x32xf32>
    %427 = vector.broadcast %408 : vector<1x32xf32> to vector<16x32xf32>
    %428 = arith.addf %426, %427 : vector<16x32xf32>
    %c1_166 = arith.constant 1 : index
    %c0_167 = arith.constant 0 : index
    %c0_168 = arith.constant 0 : index
    %429 = vector.load %arg15[%c1_166, %c0_167, %c0_168] : memref<2x32x64xf32, #tpu.memory_space<vmem>>, vector<1x32x64xf32>
    %430 = vector.shape_cast %429 : vector<1x32x64xf32> to vector<32x64xf32>
    %cst_169 = arith.constant dense<0.000000e+00> : vector<16x64xf32>
    %431 = tpu.matmul %428, %430, %cst_169 {dimension_numbers = #tpu.dot_dimension_numbers<[1], [0], [0], [1], [0, 0, 1, 1], [], []>} : vector<16x32xf32>, vector<32x64xf32>, vector<16x64xf32> -> vector<16x64xf32>
    %c1_170 = arith.constant 1 : index
    %c0_171 = arith.constant 0 : index
    %c0_172 = arith.constant 0 : index
    %432 = vector.load %arg16[%c1_170, %c0_171, %c0_172] : memref<2x1x64xf32, #tpu.memory_space<vmem>>, vector<1x1x64xf32>
    %433 = vector.shape_cast %432 : vector<1x1x64xf32> to vector<1x64xf32>
    %434 = vector.broadcast %433 : vector<1x64xf32> to vector<16x64xf32>
    %435 = arith.addf %431, %434 : vector<16x64xf32>
    %cst_173 = arith.constant 5.000000e-01 : f32
    %436 = vector.broadcast %cst_173 : f32 to vector<16x64xf32>
    %437 = arith.mulf %436, %435 : vector<16x64xf32>
    %cst_174 = arith.constant 0.707106769 : f32
    %438 = vector.broadcast %cst_174 : f32 to vector<16x64xf32>
    %439 = arith.mulf %435, %438 : vector<16x64xf32>
    %440 = math.erf %439 : vector<16x64xf32>
    %cst_175 = arith.constant 1.000000e+00 : f32
    %441 = vector.broadcast %cst_175 : f32 to vector<16x64xf32>
    %442 = arith.addf %441, %440 : vector<16x64xf32>
    %443 = arith.mulf %437, %442 : vector<16x64xf32>
    %c1_176 = arith.constant 1 : index
    %c0_177 = arith.constant 0 : index
    %c0_178 = arith.constant 0 : index
    %444 = vector.load %arg17[%c1_176, %c0_177, %c0_178] : memref<2x64x32xf32, #tpu.memory_space<vmem>>, vector<1x64x32xf32>
    %445 = vector.shape_cast %444 : vector<1x64x32xf32> to vector<64x32xf32>
    %cst_179 = arith.constant dense<0.000000e+00> : vector<16x32xf32>
    %446 = tpu.matmul %443, %445, %cst_179 {dimension_numbers = #tpu.dot_dimension_numbers<[1], [0], [0], [1], [0, 0, 1, 1], [], []>} : vector<16x64xf32>, vector<64x32xf32>, vector<16x32xf32> -> vector<16x32xf32>
    %c1_180 = arith.constant 1 : index
    %c0_181 = arith.constant 0 : index
    %c0_182 = arith.constant 0 : index
    %447 = vector.load %arg18[%c1_180, %c0_181, %c0_182] : memref<2x1x32xf32, #tpu.memory_space<vmem>>, vector<1x1x32xf32>
    %448 = vector.shape_cast %447 : vector<1x1x32xf32> to vector<1x32xf32>
    %449 = vector.broadcast %448 : vector<1x32xf32> to vector<16x32xf32>
    %450 = arith.addf %446, %449 : vector<16x32xf32>
    %451 = arith.addf %450, %428 : vector<16x32xf32>
    %c1_183 = arith.constant 1 : index
    %c0_184 = arith.constant 0 : index
    %c0_185 = arith.constant 0 : index
    %452 = vector.load %arg19[%c1_183, %c0_184, %c0_185] : memref<2x1x32xf32, #tpu.memory_space<vmem>>, vector<1x1x32xf32>
    %453 = vector.shape_cast %452 : vector<1x1x32xf32> to vector<1x32xf32>
    %c1_186 = arith.constant 1 : index
    %c0_187 = arith.constant 0 : index
    %c0_188 = arith.constant 0 : index
    %454 = vector.load %arg20[%c1_186, %c0_187, %c0_188] : memref<2x1x32xf32, #tpu.memory_space<vmem>>, vector<1x1x32xf32>
    %455 = vector.shape_cast %454 : vector<1x1x32xf32> to vector<1x32xf32>
    %cst_189 = arith.constant dense<0.000000e+00> : vector<16xf32>
    %456 = vector.multi_reduction <add>, %451, %cst_189 [1] : vector<16x32xf32> to vector<16xf32>
    %457 = vector.shape_cast %456 : vector<16xf32> to vector<16x1xf32>
    %cst_190 = arith.constant 3.200000e+01 : f32
    %458 = vector.broadcast %cst_190 : f32 to vector<16x1xf32>
    %459 = arith.divf %457, %458 : vector<16x1xf32>
    %460 = vector.broadcast %459 : vector<16x1xf32> to vector<16x32xf32>
    %461 = arith.subf %451, %460 : vector<16x32xf32>
    %462 = arith.mulf %461, %461 : vector<16x32xf32>
    %cst_191 = arith.constant dense<0.000000e+00> : vector<16xf32>
    %463 = vector.multi_reduction <add>, %462, %cst_191 [1] : vector<16x32xf32> to vector<16xf32>
    %464 = vector.shape_cast %463 : vector<16xf32> to vector<16x1xf32>
    %cst_192 = arith.constant 3.200000e+01 : f32
    %465 = vector.broadcast %cst_192 : f32 to vector<16x1xf32>
    %466 = arith.divf %464, %465 : vector<16x1xf32>
    %cst_193 = arith.constant 9.99999996E-13 : f32
    %467 = vector.broadcast %cst_193 : f32 to vector<16x1xf32>
    %468 = arith.addf %466, %467 : vector<16x1xf32>
    %469 = math.rsqrt %468 : vector<16x1xf32>
    %470 = vector.broadcast %469 : vector<16x1xf32> to vector<16x32xf32>
    %471 = arith.mulf %461, %470 : vector<16x32xf32>
    %472 = vector.broadcast %453 : vector<1x32xf32> to vector<16x32xf32>
    %473 = arith.mulf %471, %472 : vector<16x32xf32>
    %474 = vector.broadcast %455 : vector<1x32xf32> to vector<16x32xf32>
    %475 = arith.addf %473, %474 : vector<16x32xf32>
    %476 = vector.extract_strided_slice %475 {offsets = [0, 0], sizes = [8, 32], strides = [1, 1]} : vector<16x32xf32> to vector<8x32xf32>
    %c0_194 = arith.constant 0 : index
    %c0_195 = arith.constant 0 : index
    %c0_196 = arith.constant 0 : index
    %477 = vector.load %arg21[%c0_194, %c0_195, %c0_196] : memref<2x8x32xf32, #tpu.memory_space<vmem>>, vector<1x8x32xf32>
    %478 = vector.shape_cast %477 : vector<1x8x32xf32> to vector<8x32xf32>
    %479 = vector.shape_cast %476 : vector<8x32xf32> to vector<1x8x32xf32>
    tpu.vector_store %arg21[%c0_194, %c0_195, %c0_196], %479 {strides = array<i32>} : memref<2x8x32xf32, #tpu.memory_space<vmem>>, vector<1x8x32xf32>,
    %480 = vector.extract_strided_slice %475 {offsets = [8, 0], sizes = [8, 32], strides = [1, 1]} : vector<16x32xf32> to vector<8x32xf32>
    %c1_197 = arith.constant 1 : index
    %c0_198 = arith.constant 0 : index
    %c0_199 = arith.constant 0 : index
    %481 = vector.load %arg21[%c1_197, %c0_198, %c0_199] : memref<2x8x32xf32, #tpu.memory_space<vmem>>, vector<1x8x32xf32>
    %482 = vector.shape_cast %481 : vector<1x8x32xf32> to vector<8x32xf32>
    %483 = vector.shape_cast %480 : vector<8x32xf32> to vector<1x8x32xf32>
    tpu.vector_store %arg21[%c1_197, %c0_198, %c0_199], %483 {strides = array<i32>} : memref<2x8x32xf32, #tpu.memory_space<vmem>>, vector<1x8x32xf32>,
    return
  }
  func.func @transform_0(%arg0: i32) -> (i32, i32) {
    %c0_i32 = arith.constant 0 : i32
    %c0_i32_0 = arith.constant 0 : i32
    %c0_i32_1 = arith.constant 0 : i32
    return %c0_i32, %c0_i32_0 : i32, i32
  }
  func.func @transform_1(%arg0: i32) -> (i32, i32) {
    %c0_i32 = arith.constant 0 : i32
    %c0_i32_0 = arith.constant 0 : i32
    %c0_i32_1 = arith.constant 0 : i32
    return %c0_i32, %c0_i32_0 : i32, i32
  }
  func.func @transform_2(%arg0: i32) -> (i32, i32) {
    %c0_i32 = arith.constant 0 : i32
    %c0_i32_0 = arith.constant 0 : i32
    %c0_i32_1 = arith.constant 0 : i32
    return %c0_i32, %c0_i32_0 : i32, i32
  }
  func.func @transform_3(%arg0: i32) -> (i32, i32) {
    %c0_i32 = arith.constant 0 : i32
    %c0_i32_0 = arith.constant 0 : i32
    %c0_i32_1 = arith.constant 0 : i32
    return %c0_i32, %c0_i32_0 : i32, i32
  }
  func.func @transform_4(%arg0: i32) -> (i32, i32) {
    %c0_i32 = arith.constant 0 : i32
    %c0_i32_0 = arith.constant 0 : i32
    %c0_i32_1 = arith.constant 0 : i32
    return %c0_i32, %c0_i32_0 : i32, i32
  }
  func.func @transform_5(%arg0: i32) -> (i32, i32) {
    %c0_i32 = arith.constant 0 : i32
    %c0_i32_0 = arith.constant 0 : i32
    %c0_i32_1 = arith.constant 0 : i32
    return %c0_i32, %c0_i32_0 : i32, i32
  }
  func.func @transform_6(%arg0: i32) -> (i32, i32) {
    %c0_i32 = arith.constant 0 : i32
    %c0_i32_0 = arith.constant 0 : i32
    %c0_i32_1 = arith.constant 0 : i32
    return %c0_i32, %c0_i32_0 : i32, i32
  }
  func.func @transform_7(%arg0: i32) -> (i32, i32) {
    %c0_i32 = arith.constant 0 : i32
    %c0_i32_0 = arith.constant 0 : i32
    %c0_i32_1 = arith.constant 0 : i32
    return %c0_i32, %c0_i32_0 : i32, i32
  }
  func.func @transform_8(%arg0: i32) -> (i32, i32, i32) {
    %c0_i32 = arith.constant 0 : i32
    %c0_i32_0 = arith.constant 0 : i32
    %c0_i32_1 = arith.constant 0 : i32
    %c0_i32_2 = arith.constant 0 : i32
    return %c0_i32, %c0_i32_0, %c0_i32_1 : i32, i32, i32
  }
  func.func @transform_9(%arg0: i32) -> (i32, i32, i32) {
    %c0_i32 = arith.constant 0 : i32
    %c0_i32_0 = arith.constant 0 : i32
    %c0_i32_1 = arith.constant 0 : i32
    %c0_i32_2 = arith.constant 0 : i32
    return %c0_i32, %c0_i32_0, %c0_i32_1 : i32, i32, i32
  }
  func.func @transform_10(%arg0: i32) -> (i32, i32, i32) {
    %c0_i32 = arith.constant 0 : i32
    %c0_i32_0 = arith.constant 0 : i32
    %c0_i32_1 = arith.constant 0 : i32
    %c0_i32_2 = arith.constant 0 : i32
    return %c0_i32, %c0_i32_0, %c0_i32_1 : i32, i32, i32
  }
  func.func @transform_11(%arg0: i32) -> (i32, i32, i32) {
    %c0_i32 = arith.constant 0 : i32
    %c0_i32_0 = arith.constant 0 : i32
    %c0_i32_1 = arith.constant 0 : i32
    %c0_i32_2 = arith.constant 0 : i32
    return %c0_i32, %c0_i32_0, %c0_i32_1 : i32, i32, i32
  }
  func.func @transform_12(%arg0: i32) -> (i32, i32, i32) {
    %c0_i32 = arith.constant 0 : i32
    %c0_i32_0 = arith.constant 0 : i32
    %c0_i32_1 = arith.constant 0 : i32
    %c0_i32_2 = arith.constant 0 : i32
    return %c0_i32, %c0_i32_0, %c0_i32_1 : i32, i32, i32
  }
  func.func @transform_13(%arg0: i32) -> (i32, i32, i32) {
    %c0_i32 = arith.constant 0 : i32
    %c0_i32_0 = arith.constant 0 : i32
    %c0_i32_1 = arith.constant 0 : i32
    %c0_i32_2 = arith.constant 0 : i32
    return %c0_i32, %c0_i32_0, %c0_i32_1 : i32, i32, i32
  }
  func.func @transform_14(%arg0: i32) -> (i32, i32, i32) {
    %c0_i32 = arith.constant 0 : i32
    %c0_i32_0 = arith.constant 0 : i32
    %c0_i32_1 = arith.constant 0 : i32
    %c0_i32_2 = arith.constant 0 : i32
    return %c0_i32, %c0_i32_0, %c0_i32_1 : i32, i32, i32
  }
  func.func @transform_15(%arg0: i32) -> (i32, i32, i32) {
    %c0_i32 = arith.constant 0 : i32
    %c0_i32_0 = arith.constant 0 : i32
    %c0_i32_1 = arith.constant 0 : i32
    %c0_i32_2 = arith.constant 0 : i32
    return %c0_i32, %c0_i32_0, %c0_i32_1 : i32, i32, i32
  }
  func.func @transform_16(%arg0: i32) -> (i32, i32, i32) {
    %c0_i32 = arith.constant 0 : i32
    %c0_i32_0 = arith.constant 0 : i32
    %c0_i32_1 = arith.constant 0 : i32
    %c0_i32_2 = arith.constant 0 : i32
    return %c0_i32, %c0_i32_0, %c0_i32_1 : i32, i32, i32
  }
  func.func @transform_17(%arg0: i32) -> (i32, i32, i32) {
    %c0_i32 = arith.constant 0 : i32
    %c0_i32_0 = arith.constant 0 : i32
    %c0_i32_1 = arith.constant 0 : i32
    %c0_i32_2 = arith.constant 0 : i32
    return %c0_i32, %c0_i32_0, %c0_i32_1 : i32, i32, i32
  }
  func.func @transform_18(%arg0: i32) -> (i32, i32, i32) {
    %c0_i32 = arith.constant 0 : i32
    %c0_i32_0 = arith.constant 0 : i32
    %c0_i32_1 = arith.constant 0 : i32
    %c0_i32_2 = arith.constant 0 : i32
    return %c0_i32, %c0_i32_0, %c0_i32_1 : i32, i32, i32
  }
  func.func @transform_19(%arg0: i32) -> (i32, i32, i32) {
    %c0_i32 = arith.constant 0 : i32
    %c0_i32_0 = arith.constant 0 : i32
    %c0_i32_1 = arith.constant 0 : i32
    %c0_i32_2 = arith.constant 0 : i32
    return %c0_i32, %c0_i32_0, %c0_i32_1 : i32, i32, i32
  }
  func.func @transform_20(%arg0: i32) -> (i32, i32, i32) {
    %c0_i32 = arith.constant 0 : i32
    %c0_i32_0 = arith.constant 0 : i32
    %c0_i32_1 = arith.constant 0 : i32
    %c0_i32_2 = arith.constant 0 : i32
    return %c0_i32, %c0_i32_0, %c0_i32_1 : i32, i32, i32
  }
}

</mosaic_0001>

<llo_original>
// kernel: bert_forward.1
$region0: #{bert_forward.1}
  #allocation0 [shape = 'u32[]', space=smem, size = 0x4, offset = 0x4, fixed_abs, tag = 'smem constant byte address 0x4 - core index']
  #allocation1 [shape = 'u32[144,128]{1,0:T(1,128)}', space=vmem, size = 0x12000, scoped, tag = 'internal scratch']
  %s0 = inlined_call_operand.vmem [shape: s32[16,1], index: 0, kind: input, shape index: {}]
  %s1 = inlined_call_operand.vmem [shape: s32[16,1], index: 1, kind: input, shape index: {}]
  %s2 = inlined_call_operand.vmem [shape: s32[2,8], index: 2, kind: input, shape index: {}]
  %s3 = inlined_call_operand.vmem [shape: f32[100,32], index: 3, kind: input, shape index: {}]
  %s4 = inlined_call_operand.vmem [shape: f32[16,32], index: 4, kind: input, shape index: {}]
  %s5 = inlined_call_operand.vmem [shape: f32[2,32], index: 5, kind: input, shape index: {}]
  %s6 = inlined_call_operand.vmem [shape: f32[1,32], index: 6, kind: input, shape index: {}]
  %s7 = inlined_call_operand.vmem [shape: f32[1,32], index: 7, kind: input, shape index: {}]
  %s8 = inlined_call_operand.vmem [shape: f32[2,32,96], index: 8, kind: input, shape index: {}]
  %s9 = inlined_call_operand.vmem [shape: f32[2,1,96], index: 9, kind: input, shape index: {}]
  %s10 = inlined_call_operand.vmem [shape: f32[2,32,32], index: 10, kind: input, shape index: {}]
  %s11 = inlined_call_operand.vmem [shape: f32[2,1,32], index: 11, kind: input, shape index: {}]
  %s12 = inlined_call_operand.vmem [shape: f32[2,1,32], index: 12, kind: input, shape index: {}]
  %s13 = inlined_call_operand.vmem [shape: f32[2,1,32], index: 13, kind: input, shape index: {}]
  %s14 = inlined_call_operand.vmem [shape: f32[2,32,64], index: 14, kind: input, shape index: {}]
  %s15 = inlined_call_operand.vmem [shape: f32[2,1,64], index: 15, kind: input, shape index: {}]
  %s16 = inlined_call_operand.vmem [shape: f32[2,64,32], index: 16, kind: input, shape index: {}]
  %s17 = inlined_call_operand.vmem [shape: f32[2,1,32], index: 17, kind: input, shape index: {}]
  %s18 = inlined_call_operand.vmem [shape: f32[2,1,32], index: 18, kind: input, shape index: {}]
  %s19 = inlined_call_operand.vmem [shape: f32[2,1,32], index: 19, kind: input, shape index: {}]
  %s20 = inlined_call_operand.hbm [shape: f32[2,8,32], index: 20, kind: output, shape index: {}]
  %s21 = sld [smem:[#allocation0]]
  $region90: #{bert_forward.1} parent=0
    _
  %s23 = ssub.s32 1, %s21
  %s24 = scalar_select 0, %s23, %s21
  $region1: #{bert_forward.1} parent=0
    #allocation2 [shape = 'u8[8192]{0}', space=vmem, size = 0x2000, scoped, tag = 'output window, operand 0, single buffered']
    #allocation3 [shape = 's32[1]{0}', space=sflag, size = 0x4, scoped, tag = 'scoped memory for bert_forward.1']
    %25 = vsyncpa [#allocation3], 0
    // Predicated region
    $region2: #{bert_forward.1} parent=1 // pred_check
      _
    $region3: #{bert_forward.1} parent=1 // pred_check_branch
      %27 = sbr.rel (0) target = $region5
    $region4: #{bert_forward.1} parent=1 // pred_region
      _
    $region5: #{bert_forward.1} parent=1 // pred_fallthru
      _
    // Predicated region
    $region6: #{bert_forward.1} parent=1 // pred_check
      _
    $region7: #{bert_forward.1} parent=1 // pred_check_branch
      %29 = sbr.rel (0) target = $region9
    $region8: #{bert_forward.1} parent=1 // pred_region
      _
    $region9: #{bert_forward.1} parent=1 // pred_fallthru
      _
    // Predicated region
    $region10: #{bert_forward.1} parent=1 // pred_check
      _
    $region11: #{bert_forward.1} parent=1 // pred_check_branch
      %31 = sbr.rel (0) target = $region13
    $region12: #{bert_forward.1} parent=1 // pred_region
      _
    $region13: #{bert_forward.1} parent=1 // pred_fallthru
      _
    // Predicated region
    $region14: #{bert_forward.1} parent=1 // pred_check
      _
    $region15: #{bert_forward.1} parent=1 // pred_check_branch
      %33 = sbr.rel (0) target = $region17
    $region16: #{bert_forward.1} parent=1 // pred_region
      _
    $region17: #{bert_forward.1} parent=1 // pred_fallthru
      _
    // Predicated region
    $region18: #{bert_forward.1} parent=1 // pred_check
      _
    $region19: #{bert_forward.1} parent=1 // pred_check_branch
      %35 = sbr.rel (0) target = $region21
    $region20: #{bert_forward.1} parent=1 // pred_region
      _
    $region21: #{bert_forward.1} parent=1 // pred_fallthru
      _
    // Predicated region
    $region22: #{bert_forward.1} parent=1 // pred_check
      _
    $region23: #{bert_forward.1} parent=1 // pred_check_branch
      %37 = sbr.rel (0) target = $region25
    $region24: #{bert_forward.1} parent=1 // pred_region
      _
    $region25: #{bert_forward.1} parent=1 // pred_fallthru
      _
    // Predicated region
    $region26: #{bert_forward.1} parent=1 // pred_check
      _
    $region27: #{bert_forward.1} parent=1 // pred_check_branch
      %39 = sbr.rel (0) target = $region29
    $region28: #{bert_forward.1} parent=1 // pred_region
      _
    $region29: #{bert_forward.1} parent=1 // pred_fallthru
      _
    // Predicated region
    $region30: #{bert_forward.1} parent=1 // pred_check
      _
    $region31: #{bert_forward.1} parent=1 // pred_check_branch
      %41 = sbr.rel (0) target = $region33
    $region32: #{bert_forward.1} parent=1 // pred_region
      _
    $region33: #{bert_forward.1} parent=1 // pred_fallthru
      _
    // Predicated region
    $region34: #{bert_forward.1} parent=1 // pred_check
      _
    $region35: #{bert_forward.1} parent=1 // pred_check_branch
      %43 = sbr.rel (0) target = $region37
    $region36: #{bert_forward.1} parent=1 // pred_region
      _
    $region37: #{bert_forward.1} parent=1 // pred_fallthru
      _
    // Predicated region
    $region38: #{bert_forward.1} parent=1 // pred_check
      _
    $region39: #{bert_forward.1} parent=1 // pred_check_branch
      %45 = sbr.rel (0) target = $region41
    $region40: #{bert_forward.1} parent=1 // pred_region
      _
    $region41: #{bert_forward.1} parent=1 // pred_fallthru
      _
    // Predicated region
    $region42: #{bert_forward.1} parent=1 // pred_check
      _
    $region43: #{bert_forward.1} parent=1 // pred_check_branch
      %47 = sbr.rel (0) target = $region45
    $region44: #{bert_forward.1} parent=1 // pred_region
      _
    $region45: #{bert_forward.1} parent=1 // pred_fallthru
      _
    // Predicated region
    $region46: #{bert_forward.1} parent=1 // pred_check
      _
    $region47: #{bert_forward.1} parent=1 // pred_check_branch
      %49 = sbr.rel (0) target = $region49
    $region48: #{bert_forward.1} parent=1 // pred_region
      _
    $region49: #{bert_forward.1} parent=1 // pred_fallthru
      _
    // Predicated region
    $region50: #{bert_forward.1} parent=1 // pred_check
      _
    $region51: #{bert_forward.1} parent=1 // pred_check_branch
      %51 = sbr.rel (0) target = $region53
    $region52: #{bert_forward.1} parent=1 // pred_region
      _
    $region53: #{bert_forward.1} parent=1 // pred_fallthru
      _
    // Predicated region
    $region54: #{bert_forward.1} parent=1 // pred_check
      _
    $region55: #{bert_forward.1} parent=1 // pred_check_branch
      %53 = sbr.rel (0) target = $region57
    $region56: #{bert_forward.1} parent=1 // pred_region
      _
    $region57: #{bert_forward.1} parent=1 // pred_fallthru
      _
    // Predicated region
    $region58: #{bert_forward.1} parent=1 // pred_check
      _
    $region59: #{bert_forward.1} parent=1 // pred_check_branch
      %55 = sbr.rel (0) target = $region61
    $region60: #{bert_forward.1} parent=1 // pred_region
      _
    $region61: #{bert_forward.1} parent=1 // pred_fallthru
      _
    // Predicated region
    $region62: #{bert_forward.1} parent=1 // pred_check
      _
    $region63: #{bert_forward.1} parent=1 // pred_check_branch
      %57 = sbr.rel (0) target = $region65
    $region64: #{bert_forward.1} parent=1 // pred_region
      _
    $region65: #{bert_forward.1} parent=1 // pred_fallthru
      _
    // Predicated region
    $region66: #{bert_forward.1} parent=1 // pred_check
      _
    $region67: #{bert_forward.1} parent=1 // pred_check_branch
      %59 = sbr.rel (0) target = $region69
    $region68: #{bert_forward.1} parent=1 // pred_region
      _
    $region69: #{bert_forward.1} parent=1 // pred_fallthru
      _
    // Predicated region
    $region70: #{bert_forward.1} parent=1 // pred_check
      _
    $region71: #{bert_forward.1} parent=1 // pred_check_branch
      %61 = sbr.rel (0) target = $region73
    $region72: #{bert_forward.1} parent=1 // pred_region
      _
    $region73: #{bert_forward.1} parent=1 // pred_fallthru
      _
    // Predicated region
    $region74: #{bert_forward.1} parent=1 // pred_check
      _
    $region75: #{bert_forward.1} parent=1 // pred_check_branch
      %63 = sbr.rel (0) target = $region77
    $region76: #{bert_forward.1} parent=1 // pred_region
      _
    $region77: #{bert_forward.1} parent=1 // pred_fallthru
      _
    // Predicated region
    $region78: #{bert_forward.1} parent=1 // pred_check
      _
    $region79: #{bert_forward.1} parent=1 // pred_check_branch
      %65 = sbr.rel (0) target = $region81
    $region80: #{bert_forward.1} parent=1 // pred_region
      _
    $region81: #{bert_forward.1} parent=1 // pred_fallthru
      _
    %v66 = vld [vmem:[%s0] sm:$0xff]
    %v67 = vld [vmem:[%s0 + $0x8] sm:$0xff]
    %v68 = vld [vmem:[%s1] sm:$0xff]
    %v69 = vld [vmem:[%s1 + $0x8] sm:$0xff]
    %v70 = vlaneseq
    %v71 = vand.u32 %v70, 127
    %72 = vset.pattern.permute.xlu0 0
    %73 = vperm.xlu0 %72, %v66
    %v74 = vpop.permute.xlu0 %73
    %75 = vset.pattern.permute.xlu0 0
    %76 = vperm.xlu0 %75, %v67
    %v77 = vpop.permute.xlu0 %76
    %vm78 = vcmp.eq.s32.totalorder %v74, %v71
    %vm79 = vcmp.eq.s32.totalorder %v77, %v71
    %v80 = vsel %vm78, 1, 0
    %v81 = vsel %vm79, 1, 0
    %v82 = vcvt.s32.f32 %v80
    %v83 = vcvt.s32.f32 %v81
    %84 = vset.pattern.permute.xlu0 0
    %85 = vperm.xlu0 %84, %v68
    %v86 = vpop.permute.xlu0 %85
    %87 = vset.pattern.permute.xlu0 0
    %88 = vperm.xlu0 %87, %v69
    %v89 = vpop.permute.xlu0 %88
    %vm90 = vcmp.eq.s32.totalorder %v86, %v71
    %vm91 = vcmp.eq.s32.totalorder %v89, %v71
    %v92 = vsel %vm90, 1, 0
    %v93 = vsel %vm91, 1, 0
    %v94 = vcvt.s32.f32 %v92
    %v95 = vcvt.s32.f32 %v93
    %v96 = vld [vmem:[%s3] sm:$0xff]
    %v97 = vld [vmem:[%s3 + $0x8] sm:$0xff]
    %v98 = vld [vmem:[%s3 + $0x10] sm:$0xff]
    %v99 = vld [vmem:[%s3 + $0x18] sm:$0xff]
    %v100 = vld [vmem:[%s3 + $0x20] sm:$0xff]
    %v101 = vld [vmem:[%s3 + $0x28] sm:$0xff]
    %v102 = vld [vmem:[%s3 + $0x30] sm:$0xff]
    %v103 = vld [vmem:[%s3 + $0x38] sm:$0xff]
    %v104 = vld [vmem:[%s3 + $0x40] sm:$0xff]
    %v105 = vld [vmem:[%s3 + $0x48] sm:$0xff]
    %v106 = vld [vmem:[%s3 + $0x50] sm:$0xff]
    %v107 = vld [vmem:[%s3 + $0x58] sm:$0xff]
    %v108 = vld [vmem:[%s3 + $0x60] sm:$0xf]
    %v109 = vld [vmem:[%s5] sm:$0x3]
    %vm110 = vcmask 15360
    %v112 = vsel %vm110, %v94, 0
    %v115 = vsel %vm110, %v95, 0
    %vm117 = vcmask 1041408
    %v119 = vsel %vm117, %v109, 0
    %121 = vmatprep.subr.mxu0 0.0
    %122 = vmatpush1.msra.mxu0 %v119
    %123 = vmatprep.subr.mxu0 0.0
    %124 = vmatpush1.msra.mxu0 0.0
    %125 = vmatprep.subr.mxu0 0.0
    %126 = vmatpush1.msra.mxu0 0.0
    %127 = vmatprep.subr.mxu0 0.0
    %128 = vmatpush1.msra.mxu0 0.0
    %129 = vmatprep.subr.mxu0 0.0
    %130 = vmatpush1.msra.mxu0 0.0
    %131 = vmatprep.subr.mxu0 0.0
    %132 = vmatpush1.msra.mxu0 0.0
    %133 = vmatprep.subr.mxu0 0.0
    %134 = vmatpush1.msra.mxu0 0.0
    %135 = vmatprep.subr.mxu0 0.0
    %136 = vmatpush1.msra.mxu0 0.0
    %137 = vmatprep.subr.mxu0 0.0
    %138 = vmatpush1.msra.mxu0 0.0
    %139 = vmatprep.subr.mxu0 0.0
    %140 = vmatpush1.msra.mxu0 0.0
    %141 = vmatprep.subr.mxu0 0.0
    %142 = vmatpush1.msra.mxu0 0.0
    %143 = vmatprep.subr.mxu0 0.0
    %144 = vmatpush1.msra.mxu0 0.0
    %145 = vmatprep.subr.mxu0 0.0
    %146 = vmatpush1.msra.mxu0 0.0
    %147 = vmatprep.subr.mxu0 0.0
    %148 = vmatpush1.msra.mxu0 0.0
    %149 = vmatprep.subr.mxu0 0.0
    %150 = vmatpush1.msra.mxu0 0.0
    %151 = vmatprep.subr.mxu0 0.0
    %152 = vmatpush1.msra.mxu0 0.0
    %153 = vmatprep.subr.mxu0 0.0
    %154 = vmatpush1.msra.mxu0 0.0
    %155 = vmatprep.subr.mxu0 0.0
    %156 = vmatpush1.msra.mxu0 0.0
    %157 = vmatprep.subr.mxu0 0.0
    %158 = vmatpush1.msra.mxu0 0.0
    %159 = vmatprep.subr.mxu0 0.0
    %160 = vmatpush1.msra.mxu0 0.0
    %161 = vmatprep.subr.mxu0 0.0
    %162 = vmatpush1.msra.mxu0 0.0
    %163 = vmatprep.subr.mxu0 0.0
    %164 = vmatpush1.msra.mxu0 0.0
    %165 = vmatprep.subr.mxu0 0.0
    %166 = vmatpush1.msra.mxu0 0.0
    %167 = vmatprep.subr.mxu0 0.0
    %168 = vmatpush1.msra.mxu0 0.0
    %169 = vmatprep.subr.mxu0 0.0
    %170 = vmatpush1.msra.mxu0 0.0
    %171 = vmatprep.subr.mxu0 0.0
    %172 = vmatpush1.msra.mxu0 0.0
    %173 = vmatprep.subr.mxu0 0.0
    %174 = vmatpush1.msra.mxu0 0.0
    %175 = vmatprep.subr.mxu0 0.0
    %176 = vmatpush1.msra.mxu0 0.0
    %177 = vmatprep.subr.mxu0 0.0
    %178 = vmatpush1.msra.mxu0 0.0
    %179 = vmatprep.subr.mxu0 0.0
    %180 = vmatpush1.msra.mxu0 0.0
    %181 = vmatprep.subr.mxu0 0.0
    %182 = vmatpush1.msra.mxu0 0.0
    %183 = vmatprep.subr.mxu0 0.0
    %184 = vmatpush1.msra.mxu0 0.0
    %185 = vmatprep.mubr.f32.mxu0 0.0
    %186 = vmatmul.mubr.f32.gmra.mrb[0].mxu0 %v112
    %v187 = vpop.f32.mrb[0].mxu0
    %v188 = vadd.f32 0.0, %v187
    %v189 = vpop.f32.mrb[0].mxu0
    %190 = vmatprep.mubr.f32.mxu0 0.0
    %191 = vmatmul.mubr.f32.gmra.mrb[0].mxu0 %v115
    %v192 = vpop.f32.mrb[0].mxu0
    %v193 = vadd.f32 0.0, %v192
    %v194 = vpop.f32.mrb[0].mxu0
    %195 = vdwg.mxu0
    %v196 = vld [vmem:[%s4] sm:$0xff]
    %vm197 = vcmask 818176
    %v199 = vsel %vm197, %v82, 0
    %v202 = vsel %vm197, %v83, 0
    %vm204 = vcmask 1043456
    %v206 = vsel %vm204, %v108, 0
    %208 = vmatprep.subr.mxu0 0.0
    %209 = vmatpush1.msra.mxu0 %v96
    %210 = vmatprep.subr.mxu0 0.0
    %211 = vmatpush1.msra.mxu0 %v97
    %212 = vmatprep.subr.mxu0 0.0
    %213 = vmatpush1.msra.mxu0 %v98
    %214 = vmatprep.subr.mxu0 0.0
    %215 = vmatpush1.msra.mxu0 %v99
    %216 = vmatprep.subr.mxu0 0.0
    %217 = vmatpush1.msra.mxu0 %v100
    %218 = vmatprep.subr.mxu0 0.0
    %219 = vmatpush1.msra.mxu0 %v101
    %220 = vmatprep.subr.mxu0 0.0
    %221 = vmatpush1.msra.mxu0 %v102
    %222 = vmatprep.subr.mxu0 0.0
    %223 = vmatpush1.msra.mxu0 %v103
    %224 = vmatprep.subr.mxu0 0.0
    %225 = vmatpush1.msra.mxu0 %v104
    %226 = vmatprep.subr.mxu0 0.0
    %227 = vmatpush1.msra.mxu0 %v105
    %228 = vmatprep.subr.mxu0 0.0
    %229 = vmatpush1.msra.mxu0 %v106
    %230 = vmatprep.subr.mxu0 0.0
    %231 = vmatpush1.msra.mxu0 %v107
    %232 = vmatprep.subr.mxu0 0.0
    %233 = vmatpush1.msra.mxu0 %v206
    %234 = vmatprep.subr.mxu0 0.0
    %235 = vmatpush1.msra.mxu0 0.0
    %236 = vmatprep.subr.mxu0 0.0
    %237 = vmatpush1.msra.mxu0 0.0
    %238 = vmatprep.subr.mxu0 0.0
    %239 = vmatpush1.msra.mxu0 0.0
    %240 = vmatprep.subr.mxu0 0.0
    %241 = vmatpush1.msra.mxu0 0.0
    %242 = vmatprep.subr.mxu0 0.0
    %243 = vmatpush1.msra.mxu0 0.0
    %244 = vmatprep.subr.mxu0 0.0
    %245 = vmatpush1.msra.mxu0 0.0
    %246 = vmatprep.subr.mxu0 0.0
    %247 = vmatpush1.msra.mxu0 0.0
    %248 = vmatprep.subr.mxu0 0.0
    %249 = vmatpush1.msra.mxu0 0.0
    %250 = vmatprep.subr.mxu0 0.0
    %251 = vmatpush1.msra.mxu0 0.0
    %252 = vmatprep.subr.mxu0 0.0
    %253 = vmatpush1.msra.mxu0 0.0
    %254 = vmatprep.subr.mxu0 0.0
    %255 = vmatpush1.msra.mxu0 0.0
    %256 = vmatprep.subr.mxu0 0.0
    %257 = vmatpush1.msra.mxu0 0.0
    %258 = vmatprep.subr.mxu0 0.0
    %259 = vmatpush1.msra.mxu0 0.0
    %260 = vmatprep.subr.mxu0 0.0
    %261 = vmatpush1.msra.mxu0 0.0
    %262 = vmatprep.subr.mxu0 0.0
    %263 = vmatpush1.msra.mxu0 0.0
    %264 = vmatprep.subr.mxu0 0.0
    %265 = vmatpush1.msra.mxu0 0.0
    %266 = vmatprep.subr.mxu0 0.0
    %267 = vmatpush1.msra.mxu0 0.0
    %268 = vmatprep.subr.mxu0 0.0
    %269 = vmatpush1.msra.mxu0 0.0
    %270 = vmatprep.subr.mxu0 0.0
    %271 = vmatpush1.msra.mxu0 0.0
    %272 = vmatprep.mubr.f32.mxu0 0.0
    %273 = vmatmul.mubr.f32.gmra.mrb[0].mxu0 %v199
    %v274 = vpop.f32.mrb[0].mxu0
    %v275 = vadd.f32 %v188, %v274
    %v276 = vpop.f32.mrb[0].mxu0
    %277 = vmatprep.mubr.f32.mxu0 0.0
    %278 = vmatmul.mubr.f32.gmra.mrb[0].mxu0 %v202
    %v279 = vpop.f32.mrb[0].mxu0
    %v280 = vadd.f32 %v193, %v279
    %v281 = vpop.f32.mrb[0].mxu0
    %282 = vdwg.mxu0
    %v283 = vadd.f32 %v275, %v196
    %v284 = vadd.f32 %v280, %v196
    %v285 = vld [vmem:[%s6] sm:$0x1]
    %v286 = vld [vmem:[%s7] sm:$0x1]
    %vm287 = vcmask 261120
    %v288 = vsel %vm287, %v283, 0.0
    %289 = vadd.xlane.f32.xlu0 %v288
    %v290 = vpop.xlane.xlu0 %289
    %v291 = vsel %vm287, %v284, 0.0
    %292 = vadd.xlane.f32.xlu0 %v291
    %v293 = vpop.xlane.xlu0 %292
    %v294 = vrcp.pop 32.0
    %v295 = vmul.f32 %v290, %v294
    %v296 = vmul.f32 %v293, %v294
    %v297 = vsub.f32 %v283, %v295
    %v298 = vsub.f32 %v284, %v296
    %v299 = vmul.f32 %v297, %v297
    %v300 = vmul.f32 %v298, %v298
    %v301 = vsel %vm287, %v299, 0.0
    %302 = vadd.xlane.f32.xlu0 %v301
    %v303 = vpop.xlane.xlu0 %302
    %v304 = vsel %vm287, %v300, 0.0
    %305 = vadd.xlane.f32.xlu0 %v304
    %v306 = vpop.xlane.xlu0 %305
    %v307 = vmul.f32 %v303, %v294
    %v308 = vmul.f32 %v306, %v294
    %v309 = vadd.f32 %v307, 1e-12
    %v310 = vadd.f32 %v308, 1e-12
    %v311 = vrsqrt.pop %v309
    %v312 = vrsqrt.pop %v310
    %v313 = vmul.f32 %v297, %v311
    %v314 = vmul.f32 %v298, %v312
    %v316 = vlaneseq
    %v317 = vshrl.u32 %v316, 7
    %v318 = vsub.s32 0, %v317
    %v319 = vrot.slane %v285, %v318
    %v321 = vmul.f32 %v313, %v319
    %v322 = vmul.f32 %v314, %v319
    %v324 = vlaneseq
    %v325 = vshrl.u32 %v324, 7
    %v326 = vsub.s32 0, %v325
    %v327 = vrot.slane %v286, %v326
    %v329 = vadd.f32 %v321, %v327
    %v330 = vadd.f32 %v322, %v327
    %v331 = vld [vmem:[%s2] sm:$0x3]
    %v332 = vcvt.s32.f32 %v331
    %v333 = vsub.f32 1.0, %v332
    %v334 = vmul.f32 %v333, -10000.0
    %v335 = vlaneseq
    %v336 = vshrl.u32 %v335, 7
    %v337 = vsub.s32 0, %v336
    %v338 = vrot.slane %v334, %v337
    %v339 = vlaneseq
    %v340 = vshrl.u32 %v339, 7
    %v341 = vsub.s32 1, %v340
    %v342 = vrot.slane %v334, %v341
    %v343 = vld [vmem:[%s8] sm:$0xff]
    %v344 = vld [vmem:[%s8 + $0x8] sm:$0xff]
    %v345 = vld [vmem:[%s8 + $0x10] sm:$0xff]
    %v346 = vld [vmem:[%s8 + $0x18] sm:$0xff]
    %v347 = vld [vmem:[%s9] sm:$0x1]
    %v349 = vlaneseq
    %v350 = vshrl.u32 %v349, 7
    %v351 = vsub.s32 0, %v350
    %v352 = vrot.slane %v347, %v351
    %v355 = vsel %vm287, %v329, 0
    %v358 = vsel %vm287, %v330, 0
    %360 = vmatprep.subr.mxu0 0.0
    %361 = vmatpush1.msra.mxu0 %v343
    %362 = vmatprep.subr.mxu0 0.0
    %363 = vmatpush1.msra.mxu0 %v344
    %364 = vmatprep.subr.mxu0 0.0
    %365 = vmatpush1.msra.mxu0 %v345
    %366 = vmatprep.subr.mxu0 0.0
    %367 = vmatpush1.msra.mxu0 %v346
    %368 = vmatprep.subr.mxu0 0.0
    %369 = vmatpush1.msra.mxu0 0.0
    %370 = vmatprep.subr.mxu0 0.0
    %371 = vmatpush1.msra.mxu0 0.0
    %372 = vmatprep.subr.mxu0 0.0
    %373 = vmatpush1.msra.mxu0 0.0
    %374 = vmatprep.subr.mxu0 0.0
    %375 = vmatpush1.msra.mxu0 0.0
    %376 = vmatprep.subr.mxu0 0.0
    %377 = vmatpush1.msra.mxu0 0.0
    %378 = vmatprep.subr.mxu0 0.0
    %379 = vmatpush1.msra.mxu0 0.0
    %380 = vmatprep.subr.mxu0 0.0
    %381 = vmatpush1.msra.mxu0 0.0
    %382 = vmatprep.subr.mxu0 0.0
    %383 = vmatpush1.msra.mxu0 0.0
    %384 = vmatprep.subr.mxu0 0.0
    %385 = vmatpush1.msra.mxu0 0.0
    %386 = vmatprep.subr.mxu0 0.0
    %387 = vmatpush1.msra.mxu0 0.0
    %388 = vmatprep.subr.mxu0 0.0
    %389 = vmatpush1.msra.mxu0 0.0
    %390 = vmatprep.subr.mxu0 0.0
    %391 = vmatpush1.msra.mxu0 0.0
    %392 = vmatprep.subr.mxu0 0.0
    %393 = vmatpush1.msra.mxu0 0.0
    %394 = vmatprep.subr.mxu0 0.0
    %395 = vmatpush1.msra.mxu0 0.0
    %396 = vmatprep.subr.mxu0 0.0
    %397 = vmatpush1.msra.mxu0 0.0
    %398 = vmatprep.subr.mxu0 0.0
    %399 = vmatpush1.msra.mxu0 0.0
    %400 = vmatprep.subr.mxu0 0.0
    %401 = vmatpush1.msra.mxu0 0.0
    %402 = vmatprep.subr.mxu0 0.0
    %403 = vmatpush1.msra.mxu0 0.0
    %404 = vmatprep.subr.mxu0 0.0
    %405 = vmatpush1.msra.mxu0 0.0
    %406 = vmatprep.subr.mxu0 0.0
    %407 = vmatpush1.msra.mxu0 0.0
    %408 = vmatprep.subr.mxu0 0.0
    %409 = vmatpush1.msra.mxu0 0.0
    %410 = vmatprep.subr.mxu0 0.0
    %411 = vmatpush1.msra.mxu0 0.0
    %412 = vmatprep.subr.mxu0 0.0
    %413 = vmatpush1.msra.mxu0 0.0
    %414 = vmatprep.subr.mxu0 0.0
    %415 = vmatpush1.msra.mxu0 0.0
    %416 = vmatprep.subr.mxu0 0.0
    %417 = vmatpush1.msra.mxu0 0.0
    %418 = vmatprep.subr.mxu0 0.0
    %419 = vmatpush1.msra.mxu0 0.0
    %420 = vmatprep.subr.mxu0 0.0
    %421 = vmatpush1.msra.mxu0 0.0
    %422 = vmatprep.subr.mxu0 0.0
    %423 = vmatpush1.msra.mxu0 0.0
    %424 = vmatprep.mubr.f32.mxu0 0.0
    %425 = vmatmul.mubr.f32.gmra.mrb[0].mxu0 %v355
    %v426 = vpop.f32.mrb[0].mxu0
    %v427 = vadd.f32 %v352, %v426
    %v428 = vpop.f32.mrb[0].mxu0
    %429 = vmatprep.mubr.f32.mxu0 0.0
    %430 = vmatmul.mubr.f32.gmra.mrb[0].mxu0 %v358
    %v431 = vpop.f32.mrb[0].mxu0
    %v432 = vadd.f32 %v352, %v431
    %v433 = vpop.f32.mrb[0].mxu0
    %434 = vdwg.mxu0
    %436 = vrot.lane.b32.xlu0 %v427, 96
    %v437 = vpop.permute.xlu0 %436
    %vm438 = vcmask 64512
    %v439 = vsel %vm438, %v427, 0
    %v441 = vsel %vm438, %v437, 0
    %443 = vmatprep.subr.mxu0 0.0
    %444 = vmatpush1.xpose.msra.mxu0 %v441
    %445 = vmatprep.subr.mxu0 0.0
    %446 = vmatpush1.xpose.msra.mxu0 0.0
    %447 = vmatprep.subr.mxu0 0.0
    %448 = vmatpush1.xpose.msra.mxu0 0.0
    %449 = vmatprep.subr.mxu0 0.0
    %450 = vmatpush1.xpose.msra.mxu0 0.0
    %451 = vmatprep.subr.mxu0 0.0
    %452 = vmatpush1.xpose.msra.mxu0 0.0
    %453 = vmatprep.subr.mxu0 0.0
    %454 = vmatpush1.xpose.msra.mxu0 0.0
    %455 = vmatprep.subr.mxu0 0.0
    %456 = vmatpush1.xpose.msra.mxu0 0.0
    %457 = vmatprep.subr.mxu0 0.0
    %458 = vmatpush1.xpose.msra.mxu0 0.0
    %459 = vmatprep.subr.mxu0 0.0
    %460 = vmatpush1.xpose.msra.mxu0 0.0
    %461 = vmatprep.subr.mxu0 0.0
    %462 = vmatpush1.xpose.msra.mxu0 0.0
    %463 = vmatprep.subr.mxu0 0.0
    %464 = vmatpush1.xpose.msra.mxu0 0.0
    %465 = vmatprep.subr.mxu0 0.0
    %466 = vmatpush1.xpose.msra.mxu0 0.0
    %467 = vmatprep.subr.mxu0 0.0
    %468 = vmatpush1.xpose.msra.mxu0 0.0
    %469 = vmatprep.subr.mxu0 0.0
    %470 = vmatpush1.xpose.msra.mxu0 0.0
    %471 = vmatprep.subr.mxu0 0.0
    %472 = vmatpush1.xpose.msra.mxu0 0.0
    %473 = vmatprep.subr.mxu0 0.0
    %474 = vmatpush1.xpose.msra.mxu0 0.0
    %475 = vmatprep.subr.mxu0 0.0
    %476 = vmatpush1.xpose.msra.mxu0 0.0
    %477 = vmatprep.subr.mxu0 0.0
    %478 = vmatpush1.xpose.msra.mxu0 0.0
    %479 = vmatprep.subr.mxu0 0.0
    %480 = vmatpush1.xpose.msra.mxu0 0.0
    %481 = vmatprep.subr.mxu0 0.0
    %482 = vmatpush1.xpose.msra.mxu0 0.0
    %483 = vmatprep.subr.mxu0 0.0
    %484 = vmatpush1.xpose.msra.mxu0 0.0
    %485 = vmatprep.subr.mxu0 0.0
    %486 = vmatpush1.xpose.msra.mxu0 0.0
    %487 = vmatprep.subr.mxu0 0.0
    %488 = vmatpush1.xpose.msra.mxu0 0.0
    %489 = vmatprep.subr.mxu0 0.0
    %490 = vmatpush1.xpose.msra.mxu0 0.0
    %491 = vmatprep.subr.mxu0 0.0
    %492 = vmatpush1.xpose.msra.mxu0 0.0
    %493 = vmatprep.subr.mxu0 0.0
    %494 = vmatpush1.xpose.msra.mxu0 0.0
    %495 = vmatprep.subr.mxu0 0.0
    %496 = vmatpush1.xpose.msra.mxu0 0.0
    %497 = vmatprep.subr.mxu0 0.0
    %498 = vmatpush1.xpose.msra.mxu0 0.0
    %499 = vmatprep.subr.mxu0 0.0
    %500 = vmatpush1.xpose.msra.mxu0 0.0
    %501 = vmatprep.subr.mxu0 0.0
    %502 = vmatpush1.xpose.msra.mxu0 0.0
    %503 = vmatprep.subr.mxu0 0.0
    %504 = vmatpush1.xpose.msra.mxu0 0.0
    %505 = vmatprep.subr.mxu0 0.0
    %506 = vmatpush1.xpose.msra.mxu0 0.0
    %507 = vmatprep.mubr.f32.mxu0 0.0
    %508 = vmatmul.mubr.f32.gmra.mrb[0].mxu0 %v439
    %v509 = vpop.f32.mrb[0].mxu0
    %v510 = vadd.f32 %v338, %v509
    %v511 = vpop.f32.mrb[0].mxu0
    %512 = vdwg.mxu0
    %v513 = vsel %vm438, %v510, -inf
    %514 = vmax.xlane.f32.xlu0 %v513
    %v515 = vpop.xlane.xlu0 %514
    %v516 = vsub.f32 %v510, %v515
    %v517 = vmul.f32 %v516, 1.442695
    %v518 = vpow.pop %v517
    %v519 = vsel %vm438, %v518, 0.0
    %520 = vadd.xlane.f32.xlu0 %v519
    %v521 = vpop.xlane.xlu0 %520
    %v522 = vrcp.pop %v521
    %v523 = vmul.f32 %v518, %v522
    %524 = vrot.lane.b32.xlu0 %v427, 64
    %v525 = vpop.permute.xlu0 %524
    %v528 = vsel %vm438, %v523, 0
    %530 = vmatprep.subr.mxu0 0.0
    %531 = vmatpush1.msra.mxu0 %v525
    %532 = vmatprep.subr.mxu0 0.0
    %533 = vmatpush1.msra.mxu0 0.0
    %534 = vmatprep.subr.mxu0 0.0
    %535 = vmatpush1.msra.mxu0 0.0
    %536 = vmatprep.subr.mxu0 0.0
    %537 = vmatpush1.msra.mxu0 0.0
    %538 = vmatprep.subr.mxu0 0.0
    %539 = vmatpush1.msra.mxu0 0.0
    %540 = vmatprep.subr.mxu0 0.0
    %541 = vmatpush1.msra.mxu0 0.0
    %542 = vmatprep.subr.mxu0 0.0
    %543 = vmatpush1.msra.mxu0 0.0
    %544 = vmatprep.subr.mxu0 0.0
    %545 = vmatpush1.msra.mxu0 0.0
    %546 = vmatprep.subr.mxu0 0.0
    %547 = vmatpush1.msra.mxu0 0.0
    %548 = vmatprep.subr.mxu0 0.0
    %549 = vmatpush1.msra.mxu0 0.0
    %550 = vmatprep.subr.mxu0 0.0
    %551 = vmatpush1.msra.mxu0 0.0
    %552 = vmatprep.subr.mxu0 0.0
    %553 = vmatpush1.msra.mxu0 0.0
    %554 = vmatprep.subr.mxu0 0.0
    %555 = vmatpush1.msra.mxu0 0.0
    %556 = vmatprep.subr.mxu0 0.0
    %557 = vmatpush1.msra.mxu0 0.0
    %558 = vmatprep.subr.mxu0 0.0
    %559 = vmatpush1.msra.mxu0 0.0
    %560 = vmatprep.subr.mxu0 0.0
    %561 = vmatpush1.msra.mxu0 0.0
    %562 = vmatprep.subr.mxu0 0.0
    %563 = vmatpush1.msra.mxu0 0.0
    %564 = vmatprep.subr.mxu0 0.0
    %565 = vmatpush1.msra.mxu0 0.0
    %566 = vmatprep.subr.mxu0 0.0
    %567 = vmatpush1.msra.mxu0 0.0
    %568 = vmatprep.subr.mxu0 0.0
    %569 = vmatpush1.msra.mxu0 0.0
    %570 = vmatprep.subr.mxu0 0.0
    %571 = vmatpush1.msra.mxu0 0.0
    %572 = vmatprep.subr.mxu0 0.0
    %573 = vmatpush1.msra.mxu0 0.0
    %574 = vmatprep.subr.mxu0 0.0
    %575 = vmatpush1.msra.mxu0 0.0
    %576 = vmatprep.subr.mxu0 0.0
    %577 = vmatpush1.msra.mxu0 0.0
    %578 = vmatprep.subr.mxu0 0.0
    %579 = vmatpush1.msra.mxu0 0.0
    %580 = vmatprep.subr.mxu0 0.0
    %581 = vmatpush1.msra.mxu0 0.0
    %582 = vmatprep.subr.mxu0 0.0
    %583 = vmatpush1.msra.mxu0 0.0
    %584 = vmatprep.subr.mxu0 0.0
    %585 = vmatpush1.msra.mxu0 0.0
    %586 = vmatprep.subr.mxu0 0.0
    %587 = vmatpush1.msra.mxu0 0.0
    %588 = vmatprep.subr.mxu0 0.0
    %589 = vmatpush1.msra.mxu0 0.0
    %590 = vmatprep.subr.mxu0 0.0
    %591 = vmatpush1.msra.mxu0 0.0
    %592 = vmatprep.subr.mxu0 0.0
    %593 = vmatpush1.msra.mxu0 0.0
    %594 = vmatprep.mubr.f32.mxu0 0.0
    %595 = vmatmul.mubr.f32.gmra.mrb[0].mxu0 %v528
    %v596 = vpop.f32.mrb[0].mxu0
    %v597 = vadd.f32 0.0, %v596
    %v598 = vpop.f32.mrb[0].mxu0
    %599 = vdwg.mxu0
    %600 = vrot.lane.b32.xlu0 %v427, 120
    %v601 = vpop.permute.xlu0 %600
    %602 = vrot.lane.b32.xlu0 %v427, 88
    %v603 = vpop.permute.xlu0 %602
    %v604 = vsel %vm438, %v601, 0
    %v606 = vsel %vm438, %v603, 0
    %608 = vmatprep.subr.mxu0 0.0
    %609 = vmatpush1.xpose.msra.mxu0 %v606
    %610 = vmatprep.subr.mxu0 0.0
    %611 = vmatpush1.xpose.msra.mxu0 0.0
    %612 = vmatprep.subr.mxu0 0.0
    %613 = vmatpush1.xpose.msra.mxu0 0.0
    %614 = vmatprep.subr.mxu0 0.0
    %615 = vmatpush1.xpose.msra.mxu0 0.0
    %616 = vmatprep.subr.mxu0 0.0
    %617 = vmatpush1.xpose.msra.mxu0 0.0
    %618 = vmatprep.subr.mxu0 0.0
    %619 = vmatpush1.xpose.msra.mxu0 0.0
    %620 = vmatprep.subr.mxu0 0.0
    %621 = vmatpush1.xpose.msra.mxu0 0.0
    %622 = vmatprep.subr.mxu0 0.0
    %623 = vmatpush1.xpose.msra.mxu0 0.0
    %624 = vmatprep.subr.mxu0 0.0
    %625 = vmatpush1.xpose.msra.mxu0 0.0
    %626 = vmatprep.subr.mxu0 0.0
    %627 = vmatpush1.xpose.msra.mxu0 0.0
    %628 = vmatprep.subr.mxu0 0.0
    %629 = vmatpush1.xpose.msra.mxu0 0.0
    %630 = vmatprep.subr.mxu0 0.0
    %631 = vmatpush1.xpose.msra.mxu0 0.0
    %632 = vmatprep.subr.mxu0 0.0
    %633 = vmatpush1.xpose.msra.mxu0 0.0
    %634 = vmatprep.subr.mxu0 0.0
    %635 = vmatpush1.xpose.msra.mxu0 0.0
    %636 = vmatprep.subr.mxu0 0.0
    %637 = vmatpush1.xpose.msra.mxu0 0.0
    %638 = vmatprep.subr.mxu0 0.0
    %639 = vmatpush1.xpose.msra.mxu0 0.0
    %640 = vmatprep.subr.mxu0 0.0
    %641 = vmatpush1.xpose.msra.mxu0 0.0
    %642 = vmatprep.subr.mxu0 0.0
    %643 = vmatpush1.xpose.msra.mxu0 0.0
    %644 = vmatprep.subr.mxu0 0.0
    %645 = vmatpush1.xpose.msra.mxu0 0.0
    %646 = vmatprep.subr.mxu0 0.0
    %647 = vmatpush1.xpose.msra.mxu0 0.0
    %648 = vmatprep.subr.mxu0 0.0
    %649 = vmatpush1.xpose.msra.mxu0 0.0
    %650 = vmatprep.subr.mxu0 0.0
    %651 = vmatpush1.xpose.msra.mxu0 0.0
    %652 = vmatprep.subr.mxu0 0.0
    %653 = vmatpush1.xpose.msra.mxu0 0.0
    %654 = vmatprep.subr.mxu0 0.0
    %655 = vmatpush1.xpose.msra.mxu0 0.0
    %656 = vmatprep.subr.mxu0 0.0
    %657 = vmatpush1.xpose.msra.mxu0 0.0
    %658 = vmatprep.subr.mxu0 0.0
    %659 = vmatpush1.xpose.msra.mxu0 0.0
    %660 = vmatprep.subr.mxu0 0.0
    %661 = vmatpush1.xpose.msra.mxu0 0.0
    %662 = vmatprep.subr.mxu0 0.0
    %663 = vmatpush1.xpose.msra.mxu0 0.0
    %664 = vmatprep.subr.mxu0 0.0
    %665 = vmatpush1.xpose.msra.mxu0 0.0
    %666 = vmatprep.subr.mxu0 0.0
    %667 = vmatpush1.xpose.msra.mxu0 0.0
    %668 = vmatprep.subr.mxu0 0.0
    %669 = vmatpush1.xpose.msra.mxu0 0.0
    %670 = vmatprep.subr.mxu0 0.0
    %671 = vmatpush1.xpose.msra.mxu0 0.0
    %672 = vmatprep.mubr.f32.mxu0 0.0
    %673 = vmatmul.mubr.f32.gmra.mrb[0].mxu0 %v604
    %v674 = vpop.f32.mrb[0].mxu0
    %v675 = vadd.f32 %v338, %v674
    %v676 = vpop.f32.mrb[0].mxu0
    %677 = vdwg.mxu0
    %v678 = vsel %vm438, %v675, -inf
    %679 = vmax.xlane.f32.xlu0 %v678
    %v680 = vpop.xlane.xlu0 %679
    %v681 = vsub.f32 %v675, %v680
    %v682 = vmul.f32 %v681, 1.442695
    %v683 = vpow.pop %v682
    %v684 = vsel %vm438, %v683, 0.0
    %685 = vadd.xlane.f32.xlu0 %v684
    %v686 = vpop.xlane.xlu0 %685
    %v687 = vrcp.pop %v686
    %v688 = vmul.f32 %v683, %v687
    %689 = vrot.lane.b32.xlu0 %v427, 56
    %v690 = vpop.permute.xlu0 %689
    %v693 = vsel %vm438, %v688, 0
    %695 = vmatprep.subr.mxu0 0.0
    %696 = vmatpush1.msra.mxu0 %v690
    %697 = vmatprep.subr.mxu0 0.0
    %698 = vmatpush1.msra.mxu0 0.0
    %699 = vmatprep.subr.mxu0 0.0
    %700 = vmatpush1.msra.mxu0 0.0
    %701 = vmatprep.subr.mxu0 0.0
    %702 = vmatpush1.msra.mxu0 0.0
    %703 = vmatprep.subr.mxu0 0.0
    %704 = vmatpush1.msra.mxu0 0.0
    %705 = vmatprep.subr.mxu0 0.0
    %706 = vmatpush1.msra.mxu0 0.0
    %707 = vmatprep.subr.mxu0 0.0
    %708 = vmatpush1.msra.mxu0 0.0
    %709 = vmatprep.subr.mxu0 0.0
    %710 = vmatpush1.msra.mxu0 0.0
    %711 = vmatprep.subr.mxu0 0.0
    %712 = vmatpush1.msra.mxu0 0.0
    %713 = vmatprep.subr.mxu0 0.0
    %714 = vmatpush1.msra.mxu0 0.0
    %715 = vmatprep.subr.mxu0 0.0
    %716 = vmatpush1.msra.mxu0 0.0
    %717 = vmatprep.subr.mxu0 0.0
    %718 = vmatpush1.msra.mxu0 0.0
    %719 = vmatprep.subr.mxu0 0.0
    %720 = vmatpush1.msra.mxu0 0.0
    %721 = vmatprep.subr.mxu0 0.0
    %722 = vmatpush1.msra.mxu0 0.0
    %723 = vmatprep.subr.mxu0 0.0
    %724 = vmatpush1.msra.mxu0 0.0
    %725 = vmatprep.subr.mxu0 0.0
    %726 = vmatpush1.msra.mxu0 0.0
    %727 = vmatprep.subr.mxu0 0.0
    %728 = vmatpush1.msra.mxu0 0.0
    %729 = vmatprep.subr.mxu0 0.0
    %730 = vmatpush1.msra.mxu0 0.0
    %731 = vmatprep.subr.mxu0 0.0
    %732 = vmatpush1.msra.mxu0 0.0
    %733 = vmatprep.subr.mxu0 0.0
    %734 = vmatpush1.msra.mxu0 0.0
    %735 = vmatprep.subr.mxu0 0.0
    %736 = vmatpush1.msra.mxu0 0.0
    %737 = vmatprep.subr.mxu0 0.0
    %738 = vmatpush1.msra.mxu0 0.0
    %739 = vmatprep.subr.mxu0 0.0
    %740 = vmatpush1.msra.mxu0 0.0
    %741 = vmatprep.subr.mxu0 0.0
    %742 = vmatpush1.msra.mxu0 0.0
    %743 = vmatprep.subr.mxu0 0.0
    %744 = vmatpush1.msra.mxu0 0.0
    %745 = vmatprep.subr.mxu0 0.0
    %746 = vmatpush1.msra.mxu0 0.0
    %747 = vmatprep.subr.mxu0 0.0
    %748 = vmatpush1.msra.mxu0 0.0
    %749 = vmatprep.subr.mxu0 0.0
    %750 = vmatpush1.msra.mxu0 0.0
    %751 = vmatprep.subr.mxu0 0.0
    %752 = vmatpush1.msra.mxu0 0.0
    %753 = vmatprep.subr.mxu0 0.0
    %754 = vmatpush1.msra.mxu0 0.0
    %755 = vmatprep.subr.mxu0 0.0
    %756 = vmatpush1.msra.mxu0 0.0
    %757 = vmatprep.subr.mxu0 0.0
    %758 = vmatpush1.msra.mxu0 0.0
    %759 = vmatprep.mubr.f32.mxu0 0.0
    %760 = vmatmul.mubr.f32.gmra.mrb[0].mxu0 %v693
    %v761 = vpop.f32.mrb[0].mxu0
    %v762 = vadd.f32 0.0, %v761
    %v763 = vpop.f32.mrb[0].mxu0
    %764 = vdwg.mxu0
    %765 = vrot.lane.b32.xlu0 %v427, 112
    %v766 = vpop.permute.xlu0 %765
    %767 = vrot.lane.b32.xlu0 %v427, 80
    %v768 = vpop.permute.xlu0 %767
    %v769 = vsel %vm438, %v766, 0
    %v771 = vsel %vm438, %v768, 0
    %773 = vmatprep.subr.mxu0 0.0
    %774 = vmatpush1.xpose.msra.mxu0 %v771
    %775 = vmatprep.subr.mxu0 0.0
    %776 = vmatpush1.xpose.msra.mxu0 0.0
    %777 = vmatprep.subr.mxu0 0.0
    %778 = vmatpush1.xpose.msra.mxu0 0.0
    %779 = vmatprep.subr.mxu0 0.0
    %780 = vmatpush1.xpose.msra.mxu0 0.0
    %781 = vmatprep.subr.mxu0 0.0
    %782 = vmatpush1.xpose.msra.mxu0 0.0
    %783 = vmatprep.subr.mxu0 0.0
    %784 = vmatpush1.xpose.msra.mxu0 0.0
    %785 = vmatprep.subr.mxu0 0.0
    %786 = vmatpush1.xpose.msra.mxu0 0.0
    %787 = vmatprep.subr.mxu0 0.0
    %788 = vmatpush1.xpose.msra.mxu0 0.0
    %789 = vmatprep.subr.mxu0 0.0
    %790 = vmatpush1.xpose.msra.mxu0 0.0
    %791 = vmatprep.subr.mxu0 0.0
    %792 = vmatpush1.xpose.msra.mxu0 0.0
    %793 = vmatprep.subr.mxu0 0.0
    %794 = vmatpush1.xpose.msra.mxu0 0.0
    %795 = vmatprep.subr.mxu0 0.0
    %796 = vmatpush1.xpose.msra.mxu0 0.0
    %797 = vmatprep.subr.mxu0 0.0
    %798 = vmatpush1.xpose.msra.mxu0 0.0
    %799 = vmatprep.subr.mxu0 0.0
    %800 = vmatpush1.xpose.msra.mxu0 0.0
    %801 = vmatprep.subr.mxu0 0.0
    %802 = vmatpush1.xpose.msra.mxu0 0.0
    %803 = vmatprep.subr.mxu0 0.0
    %804 = vmatpush1.xpose.msra.mxu0 0.0
    %805 = vmatprep.subr.mxu0 0.0
    %806 = vmatpush1.xpose.msra.mxu0 0.0
    %807 = vmatprep.subr.mxu0 0.0
    %808 = vmatpush1.xpose.msra.mxu0 0.0
    %809 = vmatprep.subr.mxu0 0.0
    %810 = vmatpush1.xpose.msra.mxu0 0.0
    %811 = vmatprep.subr.mxu0 0.0
    %812 = vmatpush1.xpose.msra.mxu0 0.0
    %813 = vmatprep.subr.mxu0 0.0
    %814 = vmatpush1.xpose.msra.mxu0 0.0
    %815 = vmatprep.subr.mxu0 0.0
    %816 = vmatpush1.xpose.msra.mxu0 0.0
    %817 = vmatprep.subr.mxu0 0.0
    %818 = vmatpush1.xpose.msra.mxu0 0.0
    %819 = vmatprep.subr.mxu0 0.0
    %820 = vmatpush1.xpose.msra.mxu0 0.0
    %821 = vmatprep.subr.mxu0 0.0
    %822 = vmatpush1.xpose.msra.mxu0 0.0
    %823 = vmatprep.subr.mxu0 0.0
    %824 = vmatpush1.xpose.msra.mxu0 0.0
    %825 = vmatprep.subr.mxu0 0.0
    %826 = vmatpush1.xpose.msra.mxu0 0.0
    %827 = vmatprep.subr.mxu0 0.0
    %828 = vmatpush1.xpose.msra.mxu0 0.0
    %829 = vmatprep.subr.mxu0 0.0
    %830 = vmatpush1.xpose.msra.mxu0 0.0
    %831 = vmatprep.subr.mxu0 0.0
    %832 = vmatpush1.xpose.msra.mxu0 0.0
    %833 = vmatprep.subr.mxu0 0.0
    %834 = vmatpush1.xpose.msra.mxu0 0.0
    %835 = vmatprep.subr.mxu0 0.0
    %836 = vmatpush1.xpose.msra.mxu0 0.0
    %837 = vmatprep.mubr.f32.mxu0 0.0
    %838 = vmatmul.mubr.f32.gmra.mrb[0].mxu0 %v769
    %v839 = vpop.f32.mrb[0].mxu0
    %v840 = vadd.f32 %v338, %v839
    %v841 = vpop.f32.mrb[0].mxu0
    %842 = vdwg.mxu0
    %v843 = vsel %vm438, %v840, -inf
    %844 = vmax.xlane.f32.xlu0 %v843
    %v845 = vpop.xlane.xlu0 %844
    %v846 = vsub.f32 %v840, %v845
    %v847 = vmul.f32 %v846, 1.442695
    %v848 = vpow.pop %v847
    %v849 = vsel %vm438, %v848, 0.0
    %850 = vadd.xlane.f32.xlu0 %v849
    %v851 = vpop.xlane.xlu0 %850
    %v852 = vrcp.pop %v851
    %v853 = vmul.f32 %v848, %v852
    %854 = vrot.lane.b32.xlu0 %v427, 48
    %v855 = vpop.permute.xlu0 %854
    %v858 = vsel %vm438, %v853, 0
    %860 = vmatprep.subr.mxu0 0.0
    %861 = vmatpush1.msra.mxu0 %v855
    %862 = vmatprep.subr.mxu0 0.0
    %863 = vmatpush1.msra.mxu0 0.0
    %864 = vmatprep.subr.mxu0 0.0
    %865 = vmatpush1.msra.mxu0 0.0
    %866 = vmatprep.subr.mxu0 0.0
    %867 = vmatpush1.msra.mxu0 0.0
    %868 = vmatprep.subr.mxu0 0.0
    %869 = vmatpush1.msra.mxu0 0.0
    %870 = vmatprep.subr.mxu0 0.0
    %871 = vmatpush1.msra.mxu0 0.0
    %872 = vmatprep.subr.mxu0 0.0
    %873 = vmatpush1.msra.mxu0 0.0
    %874 = vmatprep.subr.mxu0 0.0
    %875 = vmatpush1.msra.mxu0 0.0
    %876 = vmatprep.subr.mxu0 0.0
    %877 = vmatpush1.msra.mxu0 0.0
    %878 = vmatprep.subr.mxu0 0.0
    %879 = vmatpush1.msra.mxu0 0.0
    %880 = vmatprep.subr.mxu0 0.0
    %881 = vmatpush1.msra.mxu0 0.0
    %882 = vmatprep.subr.mxu0 0.0
    %883 = vmatpush1.msra.mxu0 0.0
    %884 = vmatprep.subr.mxu0 0.0
    %885 = vmatpush1.msra.mxu0 0.0
    %886 = vmatprep.subr.mxu0 0.0
    %887 = vmatpush1.msra.mxu0 0.0
    %888 = vmatprep.subr.mxu0 0.0
    %889 = vmatpush1.msra.mxu0 0.0
    %890 = vmatprep.subr.mxu0 0.0
    %891 = vmatpush1.msra.mxu0 0.0
    %892 = vmatprep.subr.mxu0 0.0
    %893 = vmatpush1.msra.mxu0 0.0
    %894 = vmatprep.subr.mxu0 0.0
    %895 = vmatpush1.msra.mxu0 0.0
    %896 = vmatprep.subr.mxu0 0.0
    %897 = vmatpush1.msra.mxu0 0.0
    %898 = vmatprep.subr.mxu0 0.0
    %899 = vmatpush1.msra.mxu0 0.0
    %900 = vmatprep.subr.mxu0 0.0
    %901 = vmatpush1.msra.mxu0 0.0
    %902 = vmatprep.subr.mxu0 0.0
    %903 = vmatpush1.msra.mxu0 0.0
    %904 = vmatprep.subr.mxu0 0.0
    %905 = vmatpush1.msra.mxu0 0.0
    %906 = vmatprep.subr.mxu0 0.0
    %907 = vmatpush1.msra.mxu0 0.0
    %908 = vmatprep.subr.mxu0 0.0
    %909 = vmatpush1.msra.mxu0 0.0
    %910 = vmatprep.subr.mxu0 0.0
    %911 = vmatpush1.msra.mxu0 0.0
    %912 = vmatprep.subr.mxu0 0.0
    %913 = vmatpush1.msra.mxu0 0.0
    %914 = vmatprep.subr.mxu0 0.0
    %915 = vmatpush1.msra.mxu0 0.0
    %916 = vmatprep.subr.mxu0 0.0
    %917 = vmatpush1.msra.mxu0 0.0
    %918 = vmatprep.subr.mxu0 0.0
    %919 = vmatpush1.msra.mxu0 0.0
    %920 = vmatprep.subr.mxu0 0.0
    %921 = vmatpush1.msra.mxu0 0.0
    %922 = vmatprep.subr.mxu0 0.0
    %923 = vmatpush1.msra.mxu0 0.0
    %924 = vmatprep.mubr.f32.mxu0 0.0
    %925 = vmatmul.mubr.f32.gmra.mrb[0].mxu0 %v858
    %v926 = vpop.f32.mrb[0].mxu0
    %v927 = vadd.f32 0.0, %v926
    %v928 = vpop.f32.mrb[0].mxu0
    %929 = vdwg.mxu0
    %930 = vrot.lane.b32.xlu0 %v427, 104
    %v931 = vpop.permute.xlu0 %930
    %932 = vrot.lane.b32.xlu0 %v427, 72
    %v933 = vpop.permute.xlu0 %932
    %v934 = vsel %vm438, %v931, 0
    %v936 = vsel %vm438, %v933, 0
    %938 = vmatprep.subr.mxu0 0.0
    %939 = vmatpush1.xpose.msra.mxu0 %v936
    %940 = vmatprep.subr.mxu0 0.0
    %941 = vmatpush1.xpose.msra.mxu0 0.0
    %942 = vmatprep.subr.mxu0 0.0
    %943 = vmatpush1.xpose.msra.mxu0 0.0
    %944 = vmatprep.subr.mxu0 0.0
    %945 = vmatpush1.xpose.msra.mxu0 0.0
    %946 = vmatprep.subr.mxu0 0.0
    %947 = vmatpush1.xpose.msra.mxu0 0.0
    %948 = vmatprep.subr.mxu0 0.0
    %949 = vmatpush1.xpose.msra.mxu0 0.0
    %950 = vmatprep.subr.mxu0 0.0
    %951 = vmatpush1.xpose.msra.mxu0 0.0
    %952 = vmatprep.subr.mxu0 0.0
    %953 = vmatpush1.xpose.msra.mxu0 0.0
    %954 = vmatprep.subr.mxu0 0.0
    %955 = vmatpush1.xpose.msra.mxu0 0.0
    %956 = vmatprep.subr.mxu0 0.0
    %957 = vmatpush1.xpose.msra.mxu0 0.0
    %958 = vmatprep.subr.mxu0 0.0
    %959 = vmatpush1.xpose.msra.mxu0 0.0
    %960 = vmatprep.subr.mxu0 0.0
    %961 = vmatpush1.xpose.msra.mxu0 0.0
    %962 = vmatprep.subr.mxu0 0.0
    %963 = vmatpush1.xpose.msra.mxu0 0.0
    %964 = vmatprep.subr.mxu0 0.0
    %965 = vmatpush1.xpose.msra.mxu0 0.0
    %966 = vmatprep.subr.mxu0 0.0
    %967 = vmatpush1.xpose.msra.mxu0 0.0
    %968 = vmatprep.subr.mxu0 0.0
    %969 = vmatpush1.xpose.msra.mxu0 0.0
    %970 = vmatprep.subr.mxu0 0.0
    %971 = vmatpush1.xpose.msra.mxu0 0.0
    %972 = vmatprep.subr.mxu0 0.0
    %973 = vmatpush1.xpose.msra.mxu0 0.0
    %974 = vmatprep.subr.mxu0 0.0
    %975 = vmatpush1.xpose.msra.mxu0 0.0
    %976 = vmatprep.subr.mxu0 0.0
    %977 = vmatpush1.xpose.msra.mxu0 0.0
    %978 = vmatprep.subr.mxu0 0.0
    %979 = vmatpush1.xpose.msra.mxu0 0.0
    %980 = vmatprep.subr.mxu0 0.0
    %981 = vmatpush1.xpose.msra.mxu0 0.0
    %982 = vmatprep.subr.mxu0 0.0
    %983 = vmatpush1.xpose.msra.mxu0 0.0
    %984 = vmatprep.subr.mxu0 0.0
    %985 = vmatpush1.xpose.msra.mxu0 0.0
    %986 = vmatprep.subr.mxu0 0.0
    %987 = vmatpush1.xpose.msra.mxu0 0.0
    %988 = vmatprep.subr.mxu0 0.0
    %989 = vmatpush1.xpose.msra.mxu0 0.0
    %990 = vmatprep.subr.mxu0 0.0
    %991 = vmatpush1.xpose.msra.mxu0 0.0
    %992 = vmatprep.subr.mxu0 0.0
    %993 = vmatpush1.xpose.msra.mxu0 0.0
    %994 = vmatprep.subr.mxu0 0.0
    %995 = vmatpush1.xpose.msra.mxu0 0.0
    %996 = vmatprep.subr.mxu0 0.0
    %997 = vmatpush1.xpose.msra.mxu0 0.0
    %998 = vmatprep.subr.mxu0 0.0
    %999 = vmatpush1.xpose.msra.mxu0 0.0
    %1000 = vmatprep.subr.mxu0 0.0
    %1001 = vmatpush1.xpose.msra.mxu0 0.0
    %1002 = vmatprep.mubr.f32.mxu0 0.0
    %1003 = vmatmul.mubr.f32.gmra.mrb[0].mxu0 %v934
    %v1004 = vpop.f32.mrb[0].mxu0
    %v1005 = vadd.f32 %v338, %v1004
    %v1006 = vpop.f32.mrb[0].mxu0
    %1007 = vdwg.mxu0
    %v1008 = vsel %vm438, %v1005, -inf
    %1009 = vmax.xlane.f32.xlu0 %v1008
    %v1010 = vpop.xlane.xlu0 %1009
    %v1011 = vsub.f32 %v1005, %v1010
    %v1012 = vmul.f32 %v1011, 1.442695
    %v1013 = vpow.pop %v1012
    %v1014 = vsel %vm438, %v1013, 0.0
    %1015 = vadd.xlane.f32.xlu0 %v1014
    %v1016 = vpop.xlane.xlu0 %1015
    %v1017 = vrcp.pop %v1016
    %v1018 = vmul.f32 %v1013, %v1017
    %1019 = vrot.lane.b32.xlu0 %v427, 40
    %v1020 = vpop.permute.xlu0 %1019
    %v1023 = vsel %vm438, %v1018, 0
    %1025 = vmatprep.subr.mxu0 0.0
    %1026 = vmatpush1.msra.mxu0 %v1020
    %1027 = vmatprep.subr.mxu0 0.0
    %1028 = vmatpush1.msra.mxu0 0.0
    %1029 = vmatprep.subr.mxu0 0.0
    %1030 = vmatpush1.msra.mxu0 0.0
    %1031 = vmatprep.subr.mxu0 0.0
    %1032 = vmatpush1.msra.mxu0 0.0
    %1033 = vmatprep.subr.mxu0 0.0
    %1034 = vmatpush1.msra.mxu0 0.0
    %1035 = vmatprep.subr.mxu0 0.0
    %1036 = vmatpush1.msra.mxu0 0.0
    %1037 = vmatprep.subr.mxu0 0.0
    %1038 = vmatpush1.msra.mxu0 0.0
    %1039 = vmatprep.subr.mxu0 0.0
    %1040 = vmatpush1.msra.mxu0 0.0
    %1041 = vmatprep.subr.mxu0 0.0
    %1042 = vmatpush1.msra.mxu0 0.0
    %1043 = vmatprep.subr.mxu0 0.0
    %1044 = vmatpush1.msra.mxu0 0.0
    %1045 = vmatprep.subr.mxu0 0.0
    %1046 = vmatpush1.msra.mxu0 0.0
    %1047 = vmatprep.subr.mxu0 0.0
    %1048 = vmatpush1.msra.mxu0 0.0
    %1049 = vmatprep.subr.mxu0 0.0
    %1050 = vmatpush1.msra.mxu0 0.0
    %1051 = vmatprep.subr.mxu0 0.0
    %1052 = vmatpush1.msra.mxu0 0.0
    %1053 = vmatprep.subr.mxu0 0.0
    %1054 = vmatpush1.msra.mxu0 0.0
    %1055 = vmatprep.subr.mxu0 0.0
    %1056 = vmatpush1.msra.mxu0 0.0
    %1057 = vmatprep.subr.mxu0 0.0
    %1058 = vmatpush1.msra.mxu0 0.0
    %1059 = vmatprep.subr.mxu0 0.0
    %1060 = vmatpush1.msra.mxu0 0.0
    %1061 = vmatprep.subr.mxu0 0.0
    %1062 = vmatpush1.msra.mxu0 0.0
    %1063 = vmatprep.subr.mxu0 0.0
    %1064 = vmatpush1.msra.mxu0 0.0
    %1065 = vmatprep.subr.mxu0 0.0
    %1066 = vmatpush1.msra.mxu0 0.0
    %1067 = vmatprep.subr.mxu0 0.0
    %1068 = vmatpush1.msra.mxu0 0.0
    %1069 = vmatprep.subr.mxu0 0.0
    %1070 = vmatpush1.msra.mxu0 0.0
    %1071 = vmatprep.subr.mxu0 0.0
    %1072 = vmatpush1.msra.mxu0 0.0
    %1073 = vmatprep.subr.mxu0 0.0
    %1074 = vmatpush1.msra.mxu0 0.0
    %1075 = vmatprep.subr.mxu0 0.0
    %1076 = vmatpush1.msra.mxu0 0.0
    %1077 = vmatprep.subr.mxu0 0.0
    %1078 = vmatpush1.msra.mxu0 0.0
    %1079 = vmatprep.subr.mxu0 0.0
    %1080 = vmatpush1.msra.mxu0 0.0
    %1081 = vmatprep.subr.mxu0 0.0
    %1082 = vmatpush1.msra.mxu0 0.0
    %1083 = vmatprep.subr.mxu0 0.0
    %1084 = vmatpush1.msra.mxu0 0.0
    %1085 = vmatprep.subr.mxu0 0.0
    %1086 = vmatpush1.msra.mxu0 0.0
    %1087 = vmatprep.subr.mxu0 0.0
    %1088 = vmatpush1.msra.mxu0 0.0
    %1089 = vmatprep.mubr.f32.mxu0 0.0
    %1090 = vmatmul.mubr.f32.gmra.mrb[0].mxu0 %v1023
    %v1091 = vpop.f32.mrb[0].mxu0
    %v1092 = vadd.f32 0.0, %v1091
    %v1093 = vpop.f32.mrb[0].mxu0
    %1094 = vdwg.mxu0
    %1096 = vrot.lane.b32.xlu0 %v762, 8
    %v1097 = vpop.permute.xlu0 %1096
    %1100 = vrot.lane.b32.xlu0 %v927, 16
    %v1101 = vpop.permute.xlu0 %1100
    %1104 = vrot.lane.b32.xlu0 %v1092, 24
    %v1105 = vpop.permute.xlu0 %1104
    %v1107 = vsel %vm438, %v597, %v1097
    %vm1108 = vcmask 130048
    %v1109 = vsel %vm1108, %v1107, %v1101
    %vm1110 = vcmask 195584
    %v1111 = vsel %vm1110, %v1109, %v1105
    %1113 = vrot.lane.b32.xlu0 %v432, 96
    %v1114 = vpop.permute.xlu0 %1113
    %v1115 = vsel %vm438, %v432, 0
    %v1117 = vsel %vm438, %v1114, 0
    %1119 = vmatprep.subr.mxu0 0.0
    %1120 = vmatpush1.xpose.msra.mxu0 %v1117
    %1121 = vmatprep.subr.mxu0 0.0
    %1122 = vmatpush1.xpose.msra.mxu0 0.0
    %1123 = vmatprep.subr.mxu0 0.0
    %1124 = vmatpush1.xpose.msra.mxu0 0.0
    %1125 = vmatprep.subr.mxu0 0.0
    %1126 = vmatpush1.xpose.msra.mxu0 0.0
    %1127 = vmatprep.subr.mxu0 0.0
    %1128 = vmatpush1.xpose.msra.mxu0 0.0
    %1129 = vmatprep.subr.mxu0 0.0
    %1130 = vmatpush1.xpose.msra.mxu0 0.0
    %1131 = vmatprep.subr.mxu0 0.0
    %1132 = vmatpush1.xpose.msra.mxu0 0.0
    %1133 = vmatprep.subr.mxu0 0.0
    %1134 = vmatpush1.xpose.msra.mxu0 0.0
    %1135 = vmatprep.subr.mxu0 0.0
    %1136 = vmatpush1.xpose.msra.mxu0 0.0
    %1137 = vmatprep.subr.mxu0 0.0
    %1138 = vmatpush1.xpose.msra.mxu0 0.0
    %1139 = vmatprep.subr.mxu0 0.0
    %1140 = vmatpush1.xpose.msra.mxu0 0.0
    %1141 = vmatprep.subr.mxu0 0.0
    %1142 = vmatpush1.xpose.msra.mxu0 0.0
    %1143 = vmatprep.subr.mxu0 0.0
    %1144 = vmatpush1.xpose.msra.mxu0 0.0
    %1145 = vmatprep.subr.mxu0 0.0
    %1146 = vmatpush1.xpose.msra.mxu0 0.0
    %1147 = vmatprep.subr.mxu0 0.0
    %1148 = vmatpush1.xpose.msra.mxu0 0.0
    %1149 = vmatprep.subr.mxu0 0.0
    %1150 = vmatpush1.xpose.msra.mxu0 0.0
    %1151 = vmatprep.subr.mxu0 0.0
    %1152 = vmatpush1.xpose.msra.mxu0 0.0
    %1153 = vmatprep.subr.mxu0 0.0
    %1154 = vmatpush1.xpose.msra.mxu0 0.0
    %1155 = vmatprep.subr.mxu0 0.0
    %1156 = vmatpush1.xpose.msra.mxu0 0.0
    %1157 = vmatprep.subr.mxu0 0.0
    %1158 = vmatpush1.xpose.msra.mxu0 0.0
    %1159 = vmatprep.subr.mxu0 0.0
    %1160 = vmatpush1.xpose.msra.mxu0 0.0
    %1161 = vmatprep.subr.mxu0 0.0
    %1162 = vmatpush1.xpose.msra.mxu0 0.0
    %1163 = vmatprep.subr.mxu0 0.0
    %1164 = vmatpush1.xpose.msra.mxu0 0.0
    %1165 = vmatprep.subr.mxu0 0.0
    %1166 = vmatpush1.xpose.msra.mxu0 0.0
    %1167 = vmatprep.subr.mxu0 0.0
    %1168 = vmatpush1.xpose.msra.mxu0 0.0
    %1169 = vmatprep.subr.mxu0 0.0
    %1170 = vmatpush1.xpose.msra.mxu0 0.0
    %1171 = vmatprep.subr.mxu0 0.0
    %1172 = vmatpush1.xpose.msra.mxu0 0.0
    %1173 = vmatprep.subr.mxu0 0.0
    %1174 = vmatpush1.xpose.msra.mxu0 0.0
    %1175 = vmatprep.subr.mxu0 0.0
    %1176 = vmatpush1.xpose.msra.mxu0 0.0
    %1177 = vmatprep.subr.mxu0 0.0
    %1178 = vmatpush1.xpose.msra.mxu0 0.0
    %1179 = vmatprep.subr.mxu0 0.0
    %1180 = vmatpush1.xpose.msra.mxu0 0.0
    %1181 = vmatprep.subr.mxu0 0.0
    %1182 = vmatpush1.xpose.msra.mxu0 0.0
    %1183 = vmatprep.mubr.f32.mxu0 0.0
    %1184 = vmatmul.mubr.f32.gmra.mrb[0].mxu0 %v1115
    %v1185 = vpop.f32.mrb[0].mxu0
    %v1186 = vadd.f32 %v342, %v1185
    %v1187 = vpop.f32.mrb[0].mxu0
    %1188 = vdwg.mxu0
    %v1189 = vsel %vm438, %v1186, -inf
    %1190 = vmax.xlane.f32.xlu0 %v1189
    %v1191 = vpop.xlane.xlu0 %1190
    %v1192 = vsub.f32 %v1186, %v1191
    %v1193 = vmul.f32 %v1192, 1.442695
    %v1194 = vpow.pop %v1193
    %v1195 = vsel %vm438, %v1194, 0.0
    %1196 = vadd.xlane.f32.xlu0 %v1195
    %v1197 = vpop.xlane.xlu0 %1196
    %v1198 = vrcp.pop %v1197
    %v1199 = vmul.f32 %v1194, %v1198
    %1200 = vrot.lane.b32.xlu0 %v432, 64
    %v1201 = vpop.permute.xlu0 %1200
    %v1204 = vsel %vm438, %v1199, 0
    %1206 = vmatprep.subr.mxu0 0.0
    %1207 = vmatpush1.msra.mxu0 %v1201
    %1208 = vmatprep.subr.mxu0 0.0
    %1209 = vmatpush1.msra.mxu0 0.0
    %1210 = vmatprep.subr.mxu0 0.0
    %1211 = vmatpush1.msra.mxu0 0.0
    %1212 = vmatprep.subr.mxu0 0.0
    %1213 = vmatpush1.msra.mxu0 0.0
    %1214 = vmatprep.subr.mxu0 0.0
    %1215 = vmatpush1.msra.mxu0 0.0
    %1216 = vmatprep.subr.mxu0 0.0
    %1217 = vmatpush1.msra.mxu0 0.0
    %1218 = vmatprep.subr.mxu0 0.0
    %1219 = vmatpush1.msra.mxu0 0.0
    %1220 = vmatprep.subr.mxu0 0.0
    %1221 = vmatpush1.msra.mxu0 0.0
    %1222 = vmatprep.subr.mxu0 0.0
    %1223 = vmatpush1.msra.mxu0 0.0
    %1224 = vmatprep.subr.mxu0 0.0
    %1225 = vmatpush1.msra.mxu0 0.0
    %1226 = vmatprep.subr.mxu0 0.0
    %1227 = vmatpush1.msra.mxu0 0.0
    %1228 = vmatprep.subr.mxu0 0.0
    %1229 = vmatpush1.msra.mxu0 0.0
    %1230 = vmatprep.subr.mxu0 0.0
    %1231 = vmatpush1.msra.mxu0 0.0
    %1232 = vmatprep.subr.mxu0 0.0
    %1233 = vmatpush1.msra.mxu0 0.0
    %1234 = vmatprep.subr.mxu0 0.0
    %1235 = vmatpush1.msra.mxu0 0.0
    %1236 = vmatprep.subr.mxu0 0.0
    %1237 = vmatpush1.msra.mxu0 0.0
    %1238 = vmatprep.subr.mxu0 0.0
    %1239 = vmatpush1.msra.mxu0 0.0
    %1240 = vmatprep.subr.mxu0 0.0
    %1241 = vmatpush1.msra.mxu0 0.0
    %1242 = vmatprep.subr.mxu0 0.0
    %1243 = vmatpush1.msra.mxu0 0.0
    %1244 = vmatprep.subr.mxu0 0.0
    %1245 = vmatpush1.msra.mxu0 0.0
    %1246 = vmatprep.subr.mxu0 0.0
    %1247 = vmatpush1.msra.mxu0 0.0
    %1248 = vmatprep.subr.mxu0 0.0
    %1249 = vmatpush1.msra.mxu0 0.0
    %1250 = vmatprep.subr.mxu0 0.0
    %1251 = vmatpush1.msra.mxu0 0.0
    %1252 = vmatprep.subr.mxu0 0.0
    %1253 = vmatpush1.msra.mxu0 0.0
    %1254 = vmatprep.subr.mxu0 0.0
    %1255 = vmatpush1.msra.mxu0 0.0
    %1256 = vmatprep.subr.mxu0 0.0
    %1257 = vmatpush1.msra.mxu0 0.0
    %1258 = vmatprep.subr.mxu0 0.0
    %1259 = vmatpush1.msra.mxu0 0.0
    %1260 = vmatprep.subr.mxu0 0.0
    %1261 = vmatpush1.msra.mxu0 0.0
    %1262 = vmatprep.subr.mxu0 0.0
    %1263 = vmatpush1.msra.mxu0 0.0
    %1264 = vmatprep.subr.mxu0 0.0
    %1265 = vmatpush1.msra.mxu0 0.0
    %1266 = vmatprep.subr.mxu0 0.0
    %1267 = vmatpush1.msra.mxu0 0.0
    %1268 = vmatprep.subr.mxu0 0.0
    %1269 = vmatpush1.msra.mxu0 0.0
    %1270 = vmatprep.mubr.f32.mxu0 0.0
    %1271 = vmatmul.mubr.f32.gmra.mrb[0].mxu0 %v1204
    %v1272 = vpop.f32.mrb[0].mxu0
    %v1273 = vadd.f32 0.0, %v1272
    %v1274 = vpop.f32.mrb[0].mxu0
    %1275 = vdwg.mxu0
    %1276 = vrot.lane.b32.xlu0 %v432, 120
    %v1277 = vpop.permute.xlu0 %1276
    %1278 = vrot.lane.b32.xlu0 %v432, 88
    %v1279 = vpop.permute.xlu0 %1278
    %v1280 = vsel %vm438, %v1277, 0
    %v1282 = vsel %vm438, %v1279, 0
    %1284 = vmatprep.subr.mxu0 0.0
    %1285 = vmatpush1.xpose.msra.mxu0 %v1282
    %1286 = vmatprep.subr.mxu0 0.0
    %1287 = vmatpush1.xpose.msra.mxu0 0.0
    %1288 = vmatprep.subr.mxu0 0.0
    %1289 = vmatpush1.xpose.msra.mxu0 0.0
    %1290 = vmatprep.subr.mxu0 0.0
    %1291 = vmatpush1.xpose.msra.mxu0 0.0
    %1292 = vmatprep.subr.mxu0 0.0
    %1293 = vmatpush1.xpose.msra.mxu0 0.0
    %1294 = vmatprep.subr.mxu0 0.0
    %1295 = vmatpush1.xpose.msra.mxu0 0.0
    %1296 = vmatprep.subr.mxu0 0.0
    %1297 = vmatpush1.xpose.msra.mxu0 0.0
    %1298 = vmatprep.subr.mxu0 0.0
    %1299 = vmatpush1.xpose.msra.mxu0 0.0
    %1300 = vmatprep.subr.mxu0 0.0
    %1301 = vmatpush1.xpose.msra.mxu0 0.0
    %1302 = vmatprep.subr.mxu0 0.0
    %1303 = vmatpush1.xpose.msra.mxu0 0.0
    %1304 = vmatprep.subr.mxu0 0.0
    %1305 = vmatpush1.xpose.msra.mxu0 0.0
    %1306 = vmatprep.subr.mxu0 0.0
    %1307 = vmatpush1.xpose.msra.mxu0 0.0
    %1308 = vmatprep.subr.mxu0 0.0
    %1309 = vmatpush1.xpose.msra.mxu0 0.0
    %1310 = vmatprep.subr.mxu0 0.0
    %1311 = vmatpush1.xpose.msra.mxu0 0.0
    %1312 = vmatprep.subr.mxu0 0.0
    %1313 = vmatpush1.xpose.msra.mxu0 0.0
    %1314 = vmatprep.subr.mxu0 0.0
    %1315 = vmatpush1.xpose.msra.mxu0 0.0
    %1316 = vmatprep.subr.mxu0 0.0
    %1317 = vmatpush1.xpose.msra.mxu0 0.0
    %1318 = vmatprep.subr.mxu0 0.0
    %1319 = vmatpush1.xpose.msra.mxu0 0.0
    %1320 = vmatprep.subr.mxu0 0.0
    %1321 = vmatpush1.xpose.msra.mxu0 0.0
    %1322 = vmatprep.subr.mxu0 0.0
    %1323 = vmatpush1.xpose.msra.mxu0 0.0
    %1324 = vmatprep.subr.mxu0 0.0
    %1325 = vmatpush1.xpose.msra.mxu0 0.0
    %1326 = vmatprep.subr.mxu0 0.0
    %1327 = vmatpush1.xpose.msra.mxu0 0.0
    %1328 = vmatprep.subr.mxu0 0.0
    %1329 = vmatpush1.xpose.msra.mxu0 0.0
    %1330 = vmatprep.subr.mxu0 0.0
    %1331 = vmatpush1.xpose.msra.mxu0 0.0
    %1332 = vmatprep.subr.mxu0 0.0
    %1333 = vmatpush1.xpose.msra.mxu0 0.0
    %1334 = vmatprep.subr.mxu0 0.0
    %1335 = vmatpush1.xpose.msra.mxu0 0.0
    %1336 = vmatprep.subr.mxu0 0.0
    %1337 = vmatpush1.xpose.msra.mxu0 0.0
    %1338 = vmatprep.subr.mxu0 0.0
    %1339 = vmatpush1.xpose.msra.mxu0 0.0
    %1340 = vmatprep.subr.mxu0 0.0
    %1341 = vmatpush1.xpose.msra.mxu0 0.0
    %1342 = vmatprep.subr.mxu0 0.0
    %1343 = vmatpush1.xpose.msra.mxu0 0.0
    %1344 = vmatprep.subr.mxu0 0.0
    %1345 = vmatpush1.xpose.msra.mxu0 0.0
    %1346 = vmatprep.subr.mxu0 0.0
    %1347 = vmatpush1.xpose.msra.mxu0 0.0
    %1348 = vmatprep.mubr.f32.mxu0 0.0
    %1349 = vmatmul.mubr.f32.gmra.mrb[0].mxu0 %v1280
    %v1350 = vpop.f32.mrb[0].mxu0
    %v1351 = vadd.f32 %v342, %v1350
    %v1352 = vpop.f32.mrb[0].mxu0
    %1353 = vdwg.mxu0
    %v1354 = vsel %vm438, %v1351, -inf
    %1355 = vmax.xlane.f32.xlu0 %v1354
    %v1356 = vpop.xlane.xlu0 %1355
    %v1357 = vsub.f32 %v1351, %v1356
    %v1358 = vmul.f32 %v1357, 1.442695
    %v1359 = vpow.pop %v1358
    %v1360 = vsel %vm438, %v1359, 0.0
    %1361 = vadd.xlane.f32.xlu0 %v1360
    %v1362 = vpop.xlane.xlu0 %1361
    %v1363 = vrcp.pop %v1362
    %v1364 = vmul.f32 %v1359, %v1363
    %1365 = vrot.lane.b32.xlu0 %v432, 56
    %v1366 = vpop.permute.xlu0 %1365
    %v1369 = vsel %vm438, %v1364, 0
    %1371 = vmatprep.subr.mxu0 0.0
    %1372 = vmatpush1.msra.mxu0 %v1366
    %1373 = vmatprep.subr.mxu0 0.0
    %1374 = vmatpush1.msra.mxu0 0.0
    %1375 = vmatprep.subr.mxu0 0.0
    %1376 = vmatpush1.msra.mxu0 0.0
    %1377 = vmatprep.subr.mxu0 0.0
    %1378 = vmatpush1.msra.mxu0 0.0
    %1379 = vmatprep.subr.mxu0 0.0
    %1380 = vmatpush1.msra.mxu0 0.0
    %1381 = vmatprep.subr.mxu0 0.0
    %1382 = vmatpush1.msra.mxu0 0.0
    %1383 = vmatprep.subr.mxu0 0.0
    %1384 = vmatpush1.msra.mxu0 0.0
    %1385 = vmatprep.subr.mxu0 0.0
    %1386 = vmatpush1.msra.mxu0 0.0
    %1387 = vmatprep.subr.mxu0 0.0
    %1388 = vmatpush1.msra.mxu0 0.0
    %1389 = vmatprep.subr.mxu0 0.0
    %1390 = vmatpush1.msra.mxu0 0.0
    %1391 = vmatprep.subr.mxu0 0.0
    %1392 = vmatpush1.msra.mxu0 0.0
    %1393 = vmatprep.subr.mxu0 0.0
    %1394 = vmatpush1.msra.mxu0 0.0
    %1395 = vmatprep.subr.mxu0 0.0
    %1396 = vmatpush1.msra.mxu0 0.0
    %1397 = vmatprep.subr.mxu0 0.0
    %1398 = vmatpush1.msra.mxu0 0.0
    %1399 = vmatprep.subr.mxu0 0.0
    %1400 = vmatpush1.msra.mxu0 0.0
    %1401 = vmatprep.subr.mxu0 0.0
    %1402 = vmatpush1.msra.mxu0 0.0
    %1403 = vmatprep.subr.mxu0 0.0
    %1404 = vmatpush1.msra.mxu0 0.0
    %1405 = vmatprep.subr.mxu0 0.0
    %1406 = vmatpush1.msra.mxu0 0.0
    %1407 = vmatprep.subr.mxu0 0.0
    %1408 = vmatpush1.msra.mxu0 0.0
    %1409 = vmatprep.subr.mxu0 0.0
    %1410 = vmatpush1.msra.mxu0 0.0
    %1411 = vmatprep.subr.mxu0 0.0
    %1412 = vmatpush1.msra.mxu0 0.0
    %1413 = vmatprep.subr.mxu0 0.0
    %1414 = vmatpush1.msra.mxu0 0.0
    %1415 = vmatprep.subr.mxu0 0.0
    %1416 = vmatpush1.msra.mxu0 0.0
    %1417 = vmatprep.subr.mxu0 0.0
    %1418 = vmatpush1.msra.mxu0 0.0
    %1419 = vmatprep.subr.mxu0 0.0
    %1420 = vmatpush1.msra.mxu0 0.0
    %1421 = vmatprep.subr.mxu0 0.0
    %1422 = vmatpush1.msra.mxu0 0.0
    %1423 = vmatprep.subr.mxu0 0.0
    %1424 = vmatpush1.msra.mxu0 0.0
    %1425 = vmatprep.subr.mxu0 0.0
    %1426 = vmatpush1.msra.mxu0 0.0
    %1427 = vmatprep.subr.mxu0 0.0
    %1428 = vmatpush1.msra.mxu0 0.0
    %1429 = vmatprep.subr.mxu0 0.0
    %1430 = vmatpush1.msra.mxu0 0.0
    %1431 = vmatprep.subr.mxu0 0.0
    %1432 = vmatpush1.msra.mxu0 0.0
    %1433 = vmatprep.subr.mxu0 0.0
    %1434 = vmatpush1.msra.mxu0 0.0
    %1435 = vmatprep.mubr.f32.mxu0 0.0
    %1436 = vmatmul.mubr.f32.gmra.mrb[0].mxu0 %v1369
    %v1437 = vpop.f32.mrb[0].mxu0
    %v1438 = vadd.f32 0.0, %v1437
    %v1439 = vpop.f32.mrb[0].mxu0
    %1440 = vdwg.mxu0
    %1441 = vrot.lane.b32.xlu0 %v432, 112
    %v1442 = vpop.permute.xlu0 %1441
    %1443 = vrot.lane.b32.xlu0 %v432, 80
    %v1444 = vpop.permute.xlu0 %1443
    %v1445 = vsel %vm438, %v1442, 0
    %v1447 = vsel %vm438, %v1444, 0
    %1449 = vmatprep.subr.mxu0 0.0
    %1450 = vmatpush1.xpose.msra.mxu0 %v1447
    %1451 = vmatprep.subr.mxu0 0.0
    %1452 = vmatpush1.xpose.msra.mxu0 0.0
    %1453 = vmatprep.subr.mxu0 0.0
    %1454 = vmatpush1.xpose.msra.mxu0 0.0
    %1455 = vmatprep.subr.mxu0 0.0
    %1456 = vmatpush1.xpose.msra.mxu0 0.0
    %1457 = vmatprep.subr.mxu0 0.0
    %1458 = vmatpush1.xpose.msra.mxu0 0.0
    %1459 = vmatprep.subr.mxu0 0.0
    %1460 = vmatpush1.xpose.msra.mxu0 0.0
    %1461 = vmatprep.subr.mxu0 0.0
    %1462 = vmatpush1.xpose.msra.mxu0 0.0
    %1463 = vmatprep.subr.mxu0 0.0
    %1464 = vmatpush1.xpose.msra.mxu0 0.0
    %1465 = vmatprep.subr.mxu0 0.0
    %1466 = vmatpush1.xpose.msra.mxu0 0.0
    %1467 = vmatprep.subr.mxu0 0.0
    %1468 = vmatpush1.xpose.msra.mxu0 0.0
    %1469 = vmatprep.subr.mxu0 0.0
    %1470 = vmatpush1.xpose.msra.mxu0 0.0
    %1471 = vmatprep.subr.mxu0 0.0
    %1472 = vmatpush1.xpose.msra.mxu0 0.0
    %1473 = vmatprep.subr.mxu0 0.0
    %1474 = vmatpush1.xpose.msra.mxu0 0.0
    %1475 = vmatprep.subr.mxu0 0.0
    %1476 = vmatpush1.xpose.msra.mxu0 0.0
    %1477 = vmatprep.subr.mxu0 0.0
    %1478 = vmatpush1.xpose.msra.mxu0 0.0
    %1479 = vmatprep.subr.mxu0 0.0
    %1480 = vmatpush1.xpose.msra.mxu0 0.0
    %1481 = vmatprep.subr.mxu0 0.0
    %1482 = vmatpush1.xpose.msra.mxu0 0.0
    %1483 = vmatprep.subr.mxu0 0.0
    %1484 = vmatpush1.xpose.msra.mxu0 0.0
    %1485 = vmatprep.subr.mxu0 0.0
    %1486 = vmatpush1.xpose.msra.mxu0 0.0
    %1487 = vmatprep.subr.mxu0 0.0
    %1488 = vmatpush1.xpose.msra.mxu0 0.0
    %1489 = vmatprep.subr.mxu0 0.0
    %1490 = vmatpush1.xpose.msra.mxu0 0.0
    %1491 = vmatprep.subr.mxu0 0.0
    %1492 = vmatpush1.xpose.msra.mxu0 0.0
    %1493 = vmatprep.subr.mxu0 0.0
    %1494 = vmatpush1.xpose.msra.mxu0 0.0
    %1495 = vmatprep.subr.mxu0 0.0
    %1496 = vmatpush1.xpose.msra.mxu0 0.0
    %1497 = vmatprep.subr.mxu0 0.0
    %1498 = vmatpush1.xpose.msra.mxu0 0.0
    %1499 = vmatprep.subr.mxu0 0.0
    %1500 = vmatpush1.xpose.msra.mxu0 0.0
    %1501 = vmatprep.subr.mxu0 0.0
    %1502 = vmatpush1.xpose.msra.mxu0 0.0
    %1503 = vmatprep.subr.mxu0 0.0
    %1504 = vmatpush1.xpose.msra.mxu0 0.0
    %1505 = vmatprep.subr.mxu0 0.0
    %1506 = vmatpush1.xpose.msra.mxu0 0.0
    %1507 = vmatprep.subr.mxu0 0.0
    %1508 = vmatpush1.xpose.msra.mxu0 0.0
    %1509 = vmatprep.subr.mxu0 0.0
    %1510 = vmatpush1.xpose.msra.mxu0 0.0
    %1511 = vmatprep.subr.mxu0 0.0
    %1512 = vmatpush1.xpose.msra.mxu0 0.0
    %1513 = vmatprep.mubr.f32.mxu0 0.0
    %1514 = vmatmul.mubr.f32.gmra.mrb[0].mxu0 %v1445
    %v1515 = vpop.f32.mrb[0].mxu0
    %v1516 = vadd.f32 %v342, %v1515
    %v1517 = vpop.f32.mrb[0].mxu0
    %1518 = vdwg.mxu0
    %v1519 = vsel %vm438, %v1516, -inf
    %1520 = vmax.xlane.f32.xlu0 %v1519
    %v1521 = vpop.xlane.xlu0 %1520
    %v1522 = vsub.f32 %v1516, %v1521
    %v1523 = vmul.f32 %v1522, 1.442695
    %v1524 = vpow.pop %v1523
    %v1525 = vsel %vm438, %v1524, 0.0
    %1526 = vadd.xlane.f32.xlu0 %v1525
    %v1527 = vpop.xlane.xlu0 %1526
    %v1528 = vrcp.pop %v1527
    %v1529 = vmul.f32 %v1524, %v1528
    %1530 = vrot.lane.b32.xlu0 %v432, 48
    %v1531 = vpop.permute.xlu0 %1530
    %v1534 = vsel %vm438, %v1529, 0
    %1536 = vmatprep.subr.mxu0 0.0
    %1537 = vmatpush1.msra.mxu0 %v1531
    %1538 = vmatprep.subr.mxu0 0.0
    %1539 = vmatpush1.msra.mxu0 0.0
    %1540 = vmatprep.subr.mxu0 0.0
    %1541 = vmatpush1.msra.mxu0 0.0
    %1542 = vmatprep.subr.mxu0 0.0
    %1543 = vmatpush1.msra.mxu0 0.0
    %1544 = vmatprep.subr.mxu0 0.0
    %1545 = vmatpush1.msra.mxu0 0.0
    %1546 = vmatprep.subr.mxu0 0.0
    %1547 = vmatpush1.msra.mxu0 0.0
    %1548 = vmatprep.subr.mxu0 0.0
    %1549 = vmatpush1.msra.mxu0 0.0
    %1550 = vmatprep.subr.mxu0 0.0
    %1551 = vmatpush1.msra.mxu0 0.0
    %1552 = vmatprep.subr.mxu0 0.0
    %1553 = vmatpush1.msra.mxu0 0.0
    %1554 = vmatprep.subr.mxu0 0.0
    %1555 = vmatpush1.msra.mxu0 0.0
    %1556 = vmatprep.subr.mxu0 0.0
    %1557 = vmatpush1.msra.mxu0 0.0
    %1558 = vmatprep.subr.mxu0 0.0
    %1559 = vmatpush1.msra.mxu0 0.0
    %1560 = vmatprep.subr.mxu0 0.0
    %1561 = vmatpush1.msra.mxu0 0.0
    %1562 = vmatprep.subr.mxu0 0.0
    %1563 = vmatpush1.msra.mxu0 0.0
    %1564 = vmatprep.subr.mxu0 0.0
    %1565 = vmatpush1.msra.mxu0 0.0
    %1566 = vmatprep.subr.mxu0 0.0
    %1567 = vmatpush1.msra.mxu0 0.0
    %1568 = vmatprep.subr.mxu0 0.0
    %1569 = vmatpush1.msra.mxu0 0.0
    %1570 = vmatprep.subr.mxu0 0.0
    %1571 = vmatpush1.msra.mxu0 0.0
    %1572 = vmatprep.subr.mxu0 0.0
    %1573 = vmatpush1.msra.mxu0 0.0
    %1574 = vmatprep.subr.mxu0 0.0
    %1575 = vmatpush1.msra.mxu0 0.0
    %1576 = vmatprep.subr.mxu0 0.0
    %1577 = vmatpush1.msra.mxu0 0.0
    %1578 = vmatprep.subr.mxu0 0.0
    %1579 = vmatpush1.msra.mxu0 0.0
    %1580 = vmatprep.subr.mxu0 0.0
    %1581 = vmatpush1.msra.mxu0 0.0
    %1582 = vmatprep.subr.mxu0 0.0
    %1583 = vmatpush1.msra.mxu0 0.0
    %1584 = vmatprep.subr.mxu0 0.0
    %1585 = vmatpush1.msra.mxu0 0.0
    %1586 = vmatprep.subr.mxu0 0.0
    %1587 = vmatpush1.msra.mxu0 0.0
    %1588 = vmatprep.subr.mxu0 0.0
    %1589 = vmatpush1.msra.mxu0 0.0
    %1590 = vmatprep.subr.mxu0 0.0
    %1591 = vmatpush1.msra.mxu0 0.0
    %1592 = vmatprep.subr.mxu0 0.0
    %1593 = vmatpush1.msra.mxu0 0.0
    %1594 = vmatprep.subr.mxu0 0.0
    %1595 = vmatpush1.msra.mxu0 0.0
    %1596 = vmatprep.subr.mxu0 0.0
    %1597 = vmatpush1.msra.mxu0 0.0
    %1598 = vmatprep.subr.mxu0 0.0
    %1599 = vmatpush1.msra.mxu0 0.0
    %1600 = vmatprep.mubr.f32.mxu0 0.0
    %1601 = vmatmul.mubr.f32.gmra.mrb[0].mxu0 %v1534
    %v1602 = vpop.f32.mrb[0].mxu0
    %v1603 = vadd.f32 0.0, %v1602
    %v1604 = vpop.f32.mrb[0].mxu0
    %1605 = vdwg.mxu0
    %1606 = vrot.lane.b32.xlu0 %v432, 104
    %v1607 = vpop.permute.xlu0 %1606
    %1608 = vrot.lane.b32.xlu0 %v432, 72
    %v1609 = vpop.permute.xlu0 %1608
    %v1610 = vsel %vm438, %v1607, 0
    %v1612 = vsel %vm438, %v1609, 0
    %1614 = vmatprep.subr.mxu0 0.0
    %1615 = vmatpush1.xpose.msra.mxu0 %v1612
    %1616 = vmatprep.subr.mxu0 0.0
    %1617 = vmatpush1.xpose.msra.mxu0 0.0
    %1618 = vmatprep.subr.mxu0 0.0
    %1619 = vmatpush1.xpose.msra.mxu0 0.0
    %1620 = vmatprep.subr.mxu0 0.0
    %1621 = vmatpush1.xpose.msra.mxu0 0.0
    %1622 = vmatprep.subr.mxu0 0.0
    %1623 = vmatpush1.xpose.msra.mxu0 0.0
    %1624 = vmatprep.subr.mxu0 0.0
    %1625 = vmatpush1.xpose.msra.mxu0 0.0
    %1626 = vmatprep.subr.mxu0 0.0
    %1627 = vmatpush1.xpose.msra.mxu0 0.0
    %1628 = vmatprep.subr.mxu0 0.0
    %1629 = vmatpush1.xpose.msra.mxu0 0.0
    %1630 = vmatprep.subr.mxu0 0.0
    %1631 = vmatpush1.xpose.msra.mxu0 0.0
    %1632 = vmatprep.subr.mxu0 0.0
    %1633 = vmatpush1.xpose.msra.mxu0 0.0
    %1634 = vmatprep.subr.mxu0 0.0
    %1635 = vmatpush1.xpose.msra.mxu0 0.0
    %1636 = vmatprep.subr.mxu0 0.0
    %1637 = vmatpush1.xpose.msra.mxu0 0.0
    %1638 = vmatprep.subr.mxu0 0.0
    %1639 = vmatpush1.xpose.msra.mxu0 0.0
    %1640 = vmatprep.subr.mxu0 0.0
    %1641 = vmatpush1.xpose.msra.mxu0 0.0
    %1642 = vmatprep.subr.mxu0 0.0
    %1643 = vmatpush1.xpose.msra.mxu0 0.0
    %1644 = vmatprep.subr.mxu0 0.0
    %1645 = vmatpush1.xpose.msra.mxu0 0.0
    %1646 = vmatprep.subr.mxu0 0.0
    %1647 = vmatpush1.xpose.msra.mxu0 0.0
    %1648 = vmatprep.subr.mxu0 0.0
    %1649 = vmatpush1.xpose.msra.mxu0 0.0
    %1650 = vmatprep.subr.mxu0 0.0
    %1651 = vmatpush1.xpose.msra.mxu0 0.0
    %1652 = vmatprep.subr.mxu0 0.0
    %1653 = vmatpush1.xpose.msra.mxu0 0.0
    %1654 = vmatprep.subr.mxu0 0.0
    %1655 = vmatpush1.xpose.msra.mxu0 0.0
    %1656 = vmatprep.subr.mxu0 0.0
    %1657 = vmatpush1.xpose.msra.mxu0 0.0
    %1658 = vmatprep.subr.mxu0 0.0
    %1659 = vmatpush1.xpose.msra.mxu0 0.0
    %1660 = vmatprep.subr.mxu0 0.0
    %1661 = vmatpush1.xpose.msra.mxu0 0.0
    %1662 = vmatprep.subr.mxu0 0.0
    %1663 = vmatpush1.xpose.msra.mxu0 0.0
    %1664 = vmatprep.subr.mxu0 0.0
    %1665 = vmatpush1.xpose.msra.mxu0 0.0
    %1666 = vmatprep.subr.mxu0 0.0
    %1667 = vmatpush1.xpose.msra.mxu0 0.0
    %1668 = vmatprep.subr.mxu0 0.0
    %1669 = vmatpush1.xpose.msra.mxu0 0.0
    %1670 = vmatprep.subr.mxu0 0.0
    %1671 = vmatpush1.xpose.msra.mxu0 0.0
    %1672 = vmatprep.subr.mxu0 0.0
    %1673 = vmatpush1.xpose.msra.mxu0 0.0
    %1674 = vmatprep.subr.mxu0 0.0
    %1675 = vmatpush1.xpose.msra.mxu0 0.0
    %1676 = vmatprep.subr.mxu0 0.0
    %1677 = vmatpush1.xpose.msra.mxu0 0.0
    %1678 = vmatprep.mubr.f32.mxu0 0.0
    %1679 = vmatmul.mubr.f32.gmra.mrb[0].mxu0 %v1610
    %v1680 = vpop.f32.mrb[0].mxu0
    %v1681 = vadd.f32 %v342, %v1680
    %v1682 = vpop.f32.mrb[0].mxu0
    %1683 = vdwg.mxu0
    %v1684 = vsel %vm438, %v1681, -inf
    %1685 = vmax.xlane.f32.xlu0 %v1684
    %v1686 = vpop.xlane.xlu0 %1685
    %v1687 = vsub.f32 %v1681, %v1686
    %v1688 = vmul.f32 %v1687, 1.442695
    %v1689 = vpow.pop %v1688
    %v1690 = vsel %vm438, %v1689, 0.0
    %1691 = vadd.xlane.f32.xlu0 %v1690
    %v1692 = vpop.xlane.xlu0 %1691
    %v1693 = vrcp.pop %v1692
    %v1694 = vmul.f32 %v1689, %v1693
    %1695 = vrot.lane.b32.xlu0 %v432, 40
    %v1696 = vpop.permute.xlu0 %1695
    %v1699 = vsel %vm438, %v1694, 0
    %1701 = vmatprep.subr.mxu0 0.0
    %1702 = vmatpush1.msra.mxu0 %v1696
    %1703 = vmatprep.subr.mxu0 0.0
    %1704 = vmatpush1.msra.mxu0 0.0
    %1705 = vmatprep.subr.mxu0 0.0
    %1706 = vmatpush1.msra.mxu0 0.0
    %1707 = vmatprep.subr.mxu0 0.0
    %1708 = vmatpush1.msra.mxu0 0.0
    %1709 = vmatprep.subr.mxu0 0.0
    %1710 = vmatpush1.msra.mxu0 0.0
    %1711 = vmatprep.subr.mxu0 0.0
    %1712 = vmatpush1.msra.mxu0 0.0
    %1713 = vmatprep.subr.mxu0 0.0
    %1714 = vmatpush1.msra.mxu0 0.0
    %1715 = vmatprep.subr.mxu0 0.0
    %1716 = vmatpush1.msra.mxu0 0.0
    %1717 = vmatprep.subr.mxu0 0.0
    %1718 = vmatpush1.msra.mxu0 0.0
    %1719 = vmatprep.subr.mxu0 0.0
    %1720 = vmatpush1.msra.mxu0 0.0
    %1721 = vmatprep.subr.mxu0 0.0
    %1722 = vmatpush1.msra.mxu0 0.0
    %1723 = vmatprep.subr.mxu0 0.0
    %1724 = vmatpush1.msra.mxu0 0.0
    %1725 = vmatprep.subr.mxu0 0.0
    %1726 = vmatpush1.msra.mxu0 0.0
    %1727 = vmatprep.subr.mxu0 0.0
    %1728 = vmatpush1.msra.mxu0 0.0
    %1729 = vmatprep.subr.mxu0 0.0
    %1730 = vmatpush1.msra.mxu0 0.0
    %1731 = vmatprep.subr.mxu0 0.0
    %1732 = vmatpush1.msra.mxu0 0.0
    %1733 = vmatprep.subr.mxu0 0.0
    %1734 = vmatpush1.msra.mxu0 0.0
    %1735 = vmatprep.subr.mxu0 0.0
    %1736 = vmatpush1.msra.mxu0 0.0
    %1737 = vmatprep.subr.mxu0 0.0
    %1738 = vmatpush1.msra.mxu0 0.0
    %1739 = vmatprep.subr.mxu0 0.0
    %1740 = vmatpush1.msra.mxu0 0.0
    %1741 = vmatprep.subr.mxu0 0.0
    %1742 = vmatpush1.msra.mxu0 0.0
    %1743 = vmatprep.subr.mxu0 0.0
    %1744 = vmatpush1.msra.mxu0 0.0
    %1745 = vmatprep.subr.mxu0 0.0
    %1746 = vmatpush1.msra.mxu0 0.0
    %1747 = vmatprep.subr.mxu0 0.0
    %1748 = vmatpush1.msra.mxu0 0.0
    %1749 = vmatprep.subr.mxu0 0.0
    %1750 = vmatpush1.msra.mxu0 0.0
    %1751 = vmatprep.subr.mxu0 0.0
    %1752 = vmatpush1.msra.mxu0 0.0
    %1753 = vmatprep.subr.mxu0 0.0
    %1754 = vmatpush1.msra.mxu0 0.0
    %1755 = vmatprep.subr.mxu0 0.0
    %1756 = vmatpush1.msra.mxu0 0.0
    %1757 = vmatprep.subr.mxu0 0.0
    %1758 = vmatpush1.msra.mxu0 0.0
    %1759 = vmatprep.subr.mxu0 0.0
    %1760 = vmatpush1.msra.mxu0 0.0
    %1761 = vmatprep.subr.mxu0 0.0
    %1762 = vmatpush1.msra.mxu0 0.0
    %1763 = vmatprep.subr.mxu0 0.0
    %1764 = vmatpush1.msra.mxu0 0.0
    %1765 = vmatprep.mubr.f32.mxu0 0.0
    %1766 = vmatmul.mubr.f32.gmra.mrb[0].mxu0 %v1699
    %v1767 = vpop.f32.mrb[0].mxu0
    %v1768 = vadd.f32 0.0, %v1767
    %v1769 = vpop.f32.mrb[0].mxu0
    %1770 = vdwg.mxu0
    %1772 = vrot.lane.b32.xlu0 %v1438, 8
    %v1773 = vpop.permute.xlu0 %1772
    %1776 = vrot.lane.b32.xlu0 %v1603, 16
    %v1777 = vpop.permute.xlu0 %1776
    %1780 = vrot.lane.b32.xlu0 %v1768, 24
    %v1781 = vpop.permute.xlu0 %1780
    %v1783 = vsel %vm438, %v1273, %v1773
    %v1784 = vsel %vm1108, %v1783, %v1777
    %v1785 = vsel %vm1110, %v1784, %v1781
    %v1786 = vld [vmem:[%s10] sm:$0xff]
    %v1787 = vld [vmem:[%s10 + $0x8] sm:$0xff]
    %v1788 = vld [vmem:[%s10 + $0x10] sm:$0xff]
    %v1789 = vld [vmem:[%s10 + $0x18] sm:$0xff]
    %v1790 = vld [vmem:[%s11] sm:$0x1]
    %v1792 = vlaneseq
    %v1793 = vshrl.u32 %v1792, 7
    %v1794 = vsub.s32 0, %v1793
    %v1795 = vrot.slane %v1790, %v1794
    %v1798 = vsel %vm287, %v1111, 0
    %v1801 = vsel %vm287, %v1785, 0
    %1803 = vmatprep.subr.mxu0 0.0
    %1804 = vmatpush1.msra.mxu0 %v1786
    %1805 = vmatprep.subr.mxu0 0.0
    %1806 = vmatpush1.msra.mxu0 %v1787
    %1807 = vmatprep.subr.mxu0 0.0
    %1808 = vmatpush1.msra.mxu0 %v1788
    %1809 = vmatprep.subr.mxu0 0.0
    %1810 = vmatpush1.msra.mxu0 %v1789
    %1811 = vmatprep.subr.mxu0 0.0
    %1812 = vmatpush1.msra.mxu0 0.0
    %1813 = vmatprep.subr.mxu0 0.0
    %1814 = vmatpush1.msra.mxu0 0.0
    %1815 = vmatprep.subr.mxu0 0.0
    %1816 = vmatpush1.msra.mxu0 0.0
    %1817 = vmatprep.subr.mxu0 0.0
    %1818 = vmatpush1.msra.mxu0 0.0
    %1819 = vmatprep.subr.mxu0 0.0
    %1820 = vmatpush1.msra.mxu0 0.0
    %1821 = vmatprep.subr.mxu0 0.0
    %1822 = vmatpush1.msra.mxu0 0.0
    %1823 = vmatprep.subr.mxu0 0.0
    %1824 = vmatpush1.msra.mxu0 0.0
    %1825 = vmatprep.subr.mxu0 0.0
    %1826 = vmatpush1.msra.mxu0 0.0
    %1827 = vmatprep.subr.mxu0 0.0
    %1828 = vmatpush1.msra.mxu0 0.0
    %1829 = vmatprep.subr.mxu0 0.0
    %1830 = vmatpush1.msra.mxu0 0.0
    %1831 = vmatprep.subr.mxu0 0.0
    %1832 = vmatpush1.msra.mxu0 0.0
    %1833 = vmatprep.subr.mxu0 0.0
    %1834 = vmatpush1.msra.mxu0 0.0
    %1835 = vmatprep.subr.mxu0 0.0
    %1836 = vmatpush1.msra.mxu0 0.0
    %1837 = vmatprep.subr.mxu0 0.0
    %1838 = vmatpush1.msra.mxu0 0.0
    %1839 = vmatprep.subr.mxu0 0.0
    %1840 = vmatpush1.msra.mxu0 0.0
    %1841 = vmatprep.subr.mxu0 0.0
    %1842 = vmatpush1.msra.mxu0 0.0
    %1843 = vmatprep.subr.mxu0 0.0
    %1844 = vmatpush1.msra.mxu0 0.0
    %1845 = vmatprep.subr.mxu0 0.0
    %1846 = vmatpush1.msra.mxu0 0.0
    %1847 = vmatprep.subr.mxu0 0.0
    %1848 = vmatpush1.msra.mxu0 0.0
    %1849 = vmatprep.subr.mxu0 0.0
    %1850 = vmatpush1.msra.mxu0 0.0
    %1851 = vmatprep.subr.mxu0 0.0
    %1852 = vmatpush1.msra.mxu0 0.0
    %1853 = vmatprep.subr.mxu0 0.0
    %1854 = vmatpush1.msra.mxu0 0.0
    %1855 = vmatprep.subr.mxu0 0.0
    %1856 = vmatpush1.msra.mxu0 0.0
    %1857 = vmatprep.subr.mxu0 0.0
    %1858 = vmatpush1.msra.mxu0 0.0
    %1859 = vmatprep.subr.mxu0 0.0
    %1860 = vmatpush1.msra.mxu0 0.0
    %1861 = vmatprep.subr.mxu0 0.0
    %1862 = vmatpush1.msra.mxu0 0.0
    %1863 = vmatprep.subr.mxu0 0.0
    %1864 = vmatpush1.msra.mxu0 0.0
    %1865 = vmatprep.subr.mxu0 0.0
    %1866 = vmatpush1.msra.mxu0 0.0
    %1867 = vmatprep.mubr.f32.mxu0 0.0
    %1868 = vmatmul.mubr.f32.gmra.mrb[0].mxu0 %v1798
    %v1869 = vpop.f32.mrb[0].mxu0
    %v1870 = vadd.f32 %v1795, %v1869
    %v1871 = vpop.f32.mrb[0].mxu0
    %1872 = vmatprep.mubr.f32.mxu0 0.0
    %1873 = vmatmul.mubr.f32.gmra.mrb[0].mxu0 %v1801
    %v1874 = vpop.f32.mrb[0].mxu0
    %v1875 = vadd.f32 %v1795, %v1874
    %v1876 = vpop.f32.mrb[0].mxu0
    %1877 = vdwg.mxu0
    %v1878 = vadd.f32 %v1870, %v329
    %v1879 = vadd.f32 %v1875, %v330
    %v1880 = vld [vmem:[%s12] sm:$0x1]
    %v1881 = vld [vmem:[%s13] sm:$0x1]
    %v1882 = vsel %vm287, %v1878, 0.0
    %1883 = vadd.xlane.f32.xlu0 %v1882
    %v1884 = vpop.xlane.xlu0 %1883
    %v1885 = vsel %vm287, %v1879, 0.0
    %1886 = vadd.xlane.f32.xlu0 %v1885
    %v1887 = vpop.xlane.xlu0 %1886
    %v1888 = vmul.f32 %v1884, %v294
    %v1889 = vmul.f32 %v1887, %v294
    %v1890 = vsub.f32 %v1878, %v1888
    %v1891 = vsub.f32 %v1879, %v1889
    %v1892 = vmul.f32 %v1890, %v1890
    %v1893 = vmul.f32 %v1891, %v1891
    %v1894 = vsel %vm287, %v1892, 0.0
    %1895 = vadd.xlane.f32.xlu0 %v1894
    %v1896 = vpop.xlane.xlu0 %1895
    %v1897 = vsel %vm287, %v1893, 0.0
    %1898 = vadd.xlane.f32.xlu0 %v1897
    %v1899 = vpop.xlane.xlu0 %1898
    %v1900 = vmul.f32 %v1896, %v294
    %v1901 = vmul.f32 %v1899, %v294
    %v1902 = vadd.f32 %v1900, 1e-12
    %v1903 = vadd.f32 %v1901, 1e-12
    %v1904 = vrsqrt.pop %v1902
    %v1905 = vrsqrt.pop %v1903
    %v1906 = vmul.f32 %v1890, %v1904
    %v1907 = vmul.f32 %v1891, %v1905
    %v1909 = vlaneseq
    %v1910 = vshrl.u32 %v1909, 7
    %v1911 = vsub.s32 0, %v1910
    %v1912 = vrot.slane %v1880, %v1911
    %v1914 = vmul.f32 %v1906, %v1912
    %v1915 = vmul.f32 %v1907, %v1912
    %v1917 = vlaneseq
    %v1918 = vshrl.u32 %v1917, 7
    %v1919 = vsub.s32 0, %v1918
    %v1920 = vrot.slane %v1881, %v1919
    %v1922 = vadd.f32 %v1914, %v1920
    %v1923 = vadd.f32 %v1915, %v1920
    %v1924 = vld [vmem:[%s14] sm:$0xff]
    %v1925 = vld [vmem:[%s14 + $0x8] sm:$0xff]
    %v1926 = vld [vmem:[%s14 + $0x10] sm:$0xff]
    %v1927 = vld [vmem:[%s14 + $0x18] sm:$0xff]
    %v1928 = vld [vmem:[%s15] sm:$0x1]
    %v1930 = vlaneseq
    %v1931 = vshrl.u32 %v1930, 7
    %v1932 = vsub.s32 0, %v1931
    %v1933 = vrot.slane %v1928, %v1932
    %v1936 = vsel %vm287, %v1922, 0
    %v1939 = vsel %vm287, %v1923, 0
    %1941 = vmatprep.subr.mxu0 0.0
    %1942 = vmatpush1.msra.mxu0 %v1924
    %1943 = vmatprep.subr.mxu0 0.0
    %1944 = vmatpush1.msra.mxu0 %v1925
    %1945 = vmatprep.subr.mxu0 0.0
    %1946 = vmatpush1.msra.mxu0 %v1926
    %1947 = vmatprep.subr.mxu0 0.0
    %1948 = vmatpush1.msra.mxu0 %v1927
    %1949 = vmatprep.subr.mxu0 0.0
    %1950 = vmatpush1.msra.mxu0 0.0
    %1951 = vmatprep.subr.mxu0 0.0
    %1952 = vmatpush1.msra.mxu0 0.0
    %1953 = vmatprep.subr.mxu0 0.0
    %1954 = vmatpush1.msra.mxu0 0.0
    %1955 = vmatprep.subr.mxu0 0.0
    %1956 = vmatpush1.msra.mxu0 0.0
    %1957 = vmatprep.subr.mxu0 0.0
    %1958 = vmatpush1.msra.mxu0 0.0
    %1959 = vmatprep.subr.mxu0 0.0
    %1960 = vmatpush1.msra.mxu0 0.0
    %1961 = vmatprep.subr.mxu0 0.0
    %1962 = vmatpush1.msra.mxu0 0.0
    %1963 = vmatprep.subr.mxu0 0.0
    %1964 = vmatpush1.msra.mxu0 0.0
    %1965 = vmatprep.subr.mxu0 0.0
    %1966 = vmatpush1.msra.mxu0 0.0
    %1967 = vmatprep.subr.mxu0 0.0
    %1968 = vmatpush1.msra.mxu0 0.0
    %1969 = vmatprep.subr.mxu0 0.0
    %1970 = vmatpush1.msra.mxu0 0.0
    %1971 = vmatprep.subr.mxu0 0.0
    %1972 = vmatpush1.msra.mxu0 0.0
    %1973 = vmatprep.subr.mxu0 0.0
    %1974 = vmatpush1.msra.mxu0 0.0
    %1975 = vmatprep.subr.mxu0 0.0
    %1976 = vmatpush1.msra.mxu0 0.0
    %1977 = vmatprep.subr.mxu0 0.0
    %1978 = vmatpush1.msra.mxu0 0.0
    %1979 = vmatprep.subr.mxu0 0.0
    %1980 = vmatpush1.msra.mxu0 0.0
    %1981 = vmatprep.subr.mxu0 0.0
    %1982 = vmatpush1.msra.mxu0 0.0
    %1983 = vmatprep.subr.mxu0 0.0
    %1984 = vmatpush1.msra.mxu0 0.0
    %1985 = vmatprep.subr.mxu0 0.0
    %1986 = vmatpush1.msra.mxu0 0.0
    %1987 = vmatprep.subr.mxu0 0.0
    %1988 = vmatpush1.msra.mxu0 0.0
    %1989 = vmatprep.subr.mxu0 0.0
    %1990 = vmatpush1.msra.mxu0 0.0
    %1991 = vmatprep.subr.mxu0 0.0
    %1992 = vmatpush1.msra.mxu0 0.0
    %1993 = vmatprep.subr.mxu0 0.0
    %1994 = vmatpush1.msra.mxu0 0.0
    %1995 = vmatprep.subr.mxu0 0.0
    %1996 = vmatpush1.msra.mxu0 0.0
    %1997 = vmatprep.subr.mxu0 0.0
    %1998 = vmatpush1.msra.mxu0 0.0
    %1999 = vmatprep.subr.mxu0 0.0
    %2000 = vmatpush1.msra.mxu0 0.0
    %2001 = vmatprep.subr.mxu0 0.0
    %2002 = vmatpush1.msra.mxu0 0.0
    %2003 = vmatprep.subr.mxu0 0.0
    %2004 = vmatpush1.msra.mxu0 0.0
    %2005 = vmatprep.mubr.f32.mxu0 0.0
    %2006 = vmatmul.mubr.f32.gmra.mrb[0].mxu0 %v1936
    %v2007 = vpop.f32.mrb[0].mxu0
    %v2008 = vadd.f32 %v1933, %v2007
    %v2009 = vpop.f32.mrb[0].mxu0
    %2010 = vmatprep.mubr.f32.mxu0 0.0
    %2011 = vmatmul.mubr.f32.gmra.mrb[0].mxu0 %v1939
    %v2012 = vpop.f32.mrb[0].mxu0
    %v2013 = vadd.f32 %v1933, %v2012
    %v2014 = vpop.f32.mrb[0].mxu0
    %2015 = vdwg.mxu0
    %v2016 = vmul.f32 %v2008, 0.5
    %v2017 = vmul.f32 %v2013, 0.5
    %v2018 = vmul.f32 %v2008, 0.70710677
    %v2019 = vmul.f32 %v2013, 0.70710677
    %v2020 = verf.f32.pop %v2018
    %v2021 = verf.f32.pop %v2019
    %v2022 = vadd.f32 %v2020, 1.0
    %v2023 = vadd.f32 %v2021, 1.0
    %v2024 = vmul.f32 %v2016, %v2022
    %v2025 = vmul.f32 %v2017, %v2023
    %v2026 = vld [vmem:[%s16] sm:$0xff]
    %v2027 = vld [vmem:[%s16 + $0x8] sm:$0xff]
    %v2028 = vld [vmem:[%s16 + $0x10] sm:$0xff]
    %v2029 = vld [vmem:[%s16 + $0x18] sm:$0xff]
    %v2030 = vld [vmem:[%s16 + $0x20] sm:$0xff]
    %v2031 = vld [vmem:[%s16 + $0x28] sm:$0xff]
    %v2032 = vld [vmem:[%s16 + $0x30] sm:$0xff]
    %v2033 = vld [vmem:[%s16 + $0x38] sm:$0xff]
    %v2034 = vld [vmem:[%s17] sm:$0x1]
    %v2036 = vlaneseq
    %v2037 = vshrl.u32 %v2036, 7
    %v2038 = vsub.s32 0, %v2037
    %v2039 = vrot.slane %v2034, %v2038
    %vm2041 = vcmask 523264
    %v2043 = vsel %vm2041, %v2024, 0
    %v2046 = vsel %vm2041, %v2025, 0
    %2048 = vmatprep.subr.mxu0 0.0
    %2049 = vmatpush1.msra.mxu0 %v2026
    %2050 = vmatprep.subr.mxu0 0.0
    %2051 = vmatpush1.msra.mxu0 %v2027
    %2052 = vmatprep.subr.mxu0 0.0
    %2053 = vmatpush1.msra.mxu0 %v2028
    %2054 = vmatprep.subr.mxu0 0.0
    %2055 = vmatpush1.msra.mxu0 %v2029
    %2056 = vmatprep.subr.mxu0 0.0
    %2057 = vmatpush1.msra.mxu0 %v2030
    %2058 = vmatprep.subr.mxu0 0.0
    %2059 = vmatpush1.msra.mxu0 %v2031
    %2060 = vmatprep.subr.mxu0 0.0
    %2061 = vmatpush1.msra.mxu0 %v2032
    %2062 = vmatprep.subr.mxu0 0.0
    %2063 = vmatpush1.msra.mxu0 %v2033
    %2064 = vmatprep.subr.mxu0 0.0
    %2065 = vmatpush1.msra.mxu0 0.0
    %2066 = vmatprep.subr.mxu0 0.0
    %2067 = vmatpush1.msra.mxu0 0.0
    %2068 = vmatprep.subr.mxu0 0.0
    %2069 = vmatpush1.msra.mxu0 0.0
    %2070 = vmatprep.subr.mxu0 0.0
    %2071 = vmatpush1.msra.mxu0 0.0
    %2072 = vmatprep.subr.mxu0 0.0
    %2073 = vmatpush1.msra.mxu0 0.0
    %2074 = vmatprep.subr.mxu0 0.0
    %2075 = vmatpush1.msra.mxu0 0.0
    %2076 = vmatprep.subr.mxu0 0.0
    %2077 = vmatpush1.msra.mxu0 0.0
    %2078 = vmatprep.subr.mxu0 0.0
    %2079 = vmatpush1.msra.mxu0 0.0
    %2080 = vmatprep.subr.mxu0 0.0
    %2081 = vmatpush1.msra.mxu0 0.0
    %2082 = vmatprep.subr.mxu0 0.0
    %2083 = vmatpush1.msra.mxu0 0.0
    %2084 = vmatprep.subr.mxu0 0.0
    %2085 = vmatpush1.msra.mxu0 0.0
    %2086 = vmatprep.subr.mxu0 0.0
    %2087 = vmatpush1.msra.mxu0 0.0
    %2088 = vmatprep.subr.mxu0 0.0
    %2089 = vmatpush1.msra.mxu0 0.0
    %2090 = vmatprep.subr.mxu0 0.0
    %2091 = vmatpush1.msra.mxu0 0.0
    %2092 = vmatprep.subr.mxu0 0.0
    %2093 = vmatpush1.msra.mxu0 0.0
    %2094 = vmatprep.subr.mxu0 0.0
    %2095 = vmatpush1.msra.mxu0 0.0
    %2096 = vmatprep.subr.mxu0 0.0
    %2097 = vmatpush1.msra.mxu0 0.0
    %2098 = vmatprep.subr.mxu0 0.0
    %2099 = vmatpush1.msra.mxu0 0.0
    %2100 = vmatprep.subr.mxu0 0.0
    %2101 = vmatpush1.msra.mxu0 0.0
    %2102 = vmatprep.subr.mxu0 0.0
    %2103 = vmatpush1.msra.mxu0 0.0
    %2104 = vmatprep.subr.mxu0 0.0
    %2105 = vmatpush1.msra.mxu0 0.0
    %2106 = vmatprep.subr.mxu0 0.0
    %2107 = vmatpush1.msra.mxu0 0.0
    %2108 = vmatprep.subr.mxu0 0.0
    %2109 = vmatpush1.msra.mxu0 0.0
    %2110 = vmatprep.subr.mxu0 0.0
    %2111 = vmatpush1.msra.mxu0 0.0
    %2112 = vmatprep.mubr.f32.mxu0 0.0
    %2113 = vmatmul.mubr.f32.gmra.mrb[0].mxu0 %v2043
    %v2114 = vpop.f32.mrb[0].mxu0
    %v2115 = vadd.f32 %v2039, %v2114
    %v2116 = vpop.f32.mrb[0].mxu0
    %2117 = vmatprep.mubr.f32.mxu0 0.0
    %2118 = vmatmul.mubr.f32.gmra.mrb[0].mxu0 %v2046
    %v2119 = vpop.f32.mrb[0].mxu0
    %v2120 = vadd.f32 %v2039, %v2119
    %v2121 = vpop.f32.mrb[0].mxu0
    %2122 = vdwg.mxu0
    %v2123 = vadd.f32 %v2115, %v1922
    %v2124 = vadd.f32 %v2120, %v1923
    %v2125 = vld [vmem:[%s18] sm:$0x1]
    %v2126 = vld [vmem:[%s19] sm:$0x1]
    %v2127 = vsel %vm287, %v2123, 0.0
    %2128 = vadd.xlane.f32.xlu0 %v2127
    %v2129 = vpop.xlane.xlu0 %2128
    %v2130 = vsel %vm287, %v2124, 0.0
    %2131 = vadd.xlane.f32.xlu0 %v2130
    %v2132 = vpop.xlane.xlu0 %2131
    %v2133 = vmul.f32 %v2129, %v294
    %v2134 = vmul.f32 %v2132, %v294
    %v2135 = vsub.f32 %v2123, %v2133
    %v2136 = vsub.f32 %v2124, %v2134
    %v2137 = vmul.f32 %v2135, %v2135
    %v2138 = vmul.f32 %v2136, %v2136
    %v2139 = vsel %vm287, %v2137, 0.0
    %2140 = vadd.xlane.f32.xlu0 %v2139
    %v2141 = vpop.xlane.xlu0 %2140
    %v2142 = vsel %vm287, %v2138, 0.0
    %2143 = vadd.xlane.f32.xlu0 %v2142
    %v2144 = vpop.xlane.xlu0 %2143
    %v2145 = vmul.f32 %v2141, %v294
    %v2146 = vmul.f32 %v2144, %v294
    %v2147 = vadd.f32 %v2145, 1e-12
    %v2148 = vadd.f32 %v2146, 1e-12
    %v2149 = vrsqrt.pop %v2147
    %v2150 = vrsqrt.pop %v2148
    %v2151 = vmul.f32 %v2135, %v2149
    %v2152 = vmul.f32 %v2136, %v2150
    %v2154 = vlaneseq
    %v2155 = vshrl.u32 %v2154, 7
    %v2156 = vsub.s32 0, %v2155
    %v2157 = vrot.slane %v2125, %v2156
    %v2159 = vmul.f32 %v2151, %v2157
    %v2160 = vmul.f32 %v2152, %v2157
    %v2162 = vlaneseq
    %v2163 = vshrl.u32 %v2162, 7
    %v2164 = vsub.s32 0, %v2163
    %v2165 = vrot.slane %v2126, %v2164
    %v2167 = vadd.f32 %v2159, %v2165
    %v2168 = vadd.f32 %v2160, %v2165
    %s2169 = scalar_lea.vmem %s8, 32
    %v2170 = vld [vmem:[%s2169] sm:$0xff]
    %v2171 = vld [vmem:[%s2169 + $0x8] sm:$0xff]
    %v2172 = vld [vmem:[%s2169 + $0x10] sm:$0xff]
    %v2173 = vld [vmem:[%s2169 + $0x18] sm:$0xff]
    %s2174 = scalar_lea.vmem %s9, 1
    %v2175 = vld [vmem:[%s2174] sm:$0x1]
    %v2177 = vlaneseq
    %v2178 = vshrl.u32 %v2177, 7
    %v2179 = vsub.s32 0, %v2178
    %v2180 = vrot.slane %v2175, %v2179
    %v2183 = vsel %vm287, %v2167, 0
    %v2186 = vsel %vm287, %v2168, 0
    %2188 = vmatprep.subr.mxu0 0.0
    %2189 = vmatpush1.msra.mxu0 %v2170
    %2190 = vmatprep.subr.mxu0 0.0
    %2191 = vmatpush1.msra.mxu0 %v2171
    %2192 = vmatprep.subr.mxu0 0.0
    %2193 = vmatpush1.msra.mxu0 %v2172
    %2194 = vmatprep.subr.mxu0 0.0
    %2195 = vmatpush1.msra.mxu0 %v2173
    %2196 = vmatprep.subr.mxu0 0.0
    %2197 = vmatpush1.msra.mxu0 0.0
    %2198 = vmatprep.subr.mxu0 0.0
    %2199 = vmatpush1.msra.mxu0 0.0
    %2200 = vmatprep.subr.mxu0 0.0
    %2201 = vmatpush1.msra.mxu0 0.0
    %2202 = vmatprep.subr.mxu0 0.0
    %2203 = vmatpush1.msra.mxu0 0.0
    %2204 = vmatprep.subr.mxu0 0.0
    %2205 = vmatpush1.msra.mxu0 0.0
    %2206 = vmatprep.subr.mxu0 0.0
    %2207 = vmatpush1.msra.mxu0 0.0
    %2208 = vmatprep.subr.mxu0 0.0
    %2209 = vmatpush1.msra.mxu0 0.0
    %2210 = vmatprep.subr.mxu0 0.0
    %2211 = vmatpush1.msra.mxu0 0.0
    %2212 = vmatprep.subr.mxu0 0.0
    %2213 = vmatpush1.msra.mxu0 0.0
    %2214 = vmatprep.subr.mxu0 0.0
    %2215 = vmatpush1.msra.mxu0 0.0
    %2216 = vmatprep.subr.mxu0 0.0
    %2217 = vmatpush1.msra.mxu0 0.0
    %2218 = vmatprep.subr.mxu0 0.0
    %2219 = vmatpush1.msra.mxu0 0.0
    %2220 = vmatprep.subr.mxu0 0.0
    %2221 = vmatpush1.msra.mxu0 0.0
    %2222 = vmatprep.subr.mxu0 0.0
    %2223 = vmatpush1.msra.mxu0 0.0
    %2224 = vmatprep.subr.mxu0 0.0
    %2225 = vmatpush1.msra.mxu0 0.0
    %2226 = vmatprep.subr.mxu0 0.0
    %2227 = vmatpush1.msra.mxu0 0.0
    %2228 = vmatprep.subr.mxu0 0.0
    %2229 = vmatpush1.msra.mxu0 0.0
    %2230 = vmatprep.subr.mxu0 0.0
    %2231 = vmatpush1.msra.mxu0 0.0
    %2232 = vmatprep.subr.mxu0 0.0
    %2233 = vmatpush1.msra.mxu0 0.0
    %2234 = vmatprep.subr.mxu0 0.0
    %2235 = vmatpush1.msra.mxu0 0.0
    %2236 = vmatprep.subr.mxu0 0.0
    %2237 = vmatpush1.msra.mxu0 0.0
    %2238 = vmatprep.subr.mxu0 0.0
    %2239 = vmatpush1.msra.mxu0 0.0
    %2240 = vmatprep.subr.mxu0 0.0
    %2241 = vmatpush1.msra.mxu0 0.0
    %2242 = vmatprep.subr.mxu0 0.0
    %2243 = vmatpush1.msra.mxu0 0.0
    %2244 = vmatprep.subr.mxu0 0.0
    %2245 = vmatpush1.msra.mxu0 0.0
    %2246 = vmatprep.subr.mxu0 0.0
    %2247 = vmatpush1.msra.mxu0 0.0
    %2248 = vmatprep.subr.mxu0 0.0
    %2249 = vmatpush1.msra.mxu0 0.0
    %2250 = vmatprep.subr.mxu0 0.0
    %2251 = vmatpush1.msra.mxu0 0.0
    %2252 = vmatprep.mubr.f32.mxu0 0.0
    %2253 = vmatmul.mubr.f32.gmra.mrb[0].mxu0 %v2183
    %v2254 = vpop.f32.mrb[0].mxu0
    %v2255 = vadd.f32 %v2180, %v2254
    %v2256 = vpop.f32.mrb[0].mxu0
    %2257 = vmatprep.mubr.f32.mxu0 0.0
    %2258 = vmatmul.mubr.f32.gmra.mrb[0].mxu0 %v2186
    %v2259 = vpop.f32.mrb[0].mxu0
    %v2260 = vadd.f32 %v2180, %v2259
    %v2261 = vpop.f32.mrb[0].mxu0
    %2262 = vdwg.mxu0
    %2264 = vrot.lane.b32.xlu0 %v2255, 96
    %v2265 = vpop.permute.xlu0 %2264
    %v2266 = vsel %vm438, %v2255, 0
    %v2268 = vsel %vm438, %v2265, 0
    %2270 = vmatprep.subr.mxu0 0.0
    %2271 = vmatpush1.xpose.msra.mxu0 %v2268
    %2272 = vmatprep.subr.mxu0 0.0
    %2273 = vmatpush1.xpose.msra.mxu0 0.0
    %2274 = vmatprep.subr.mxu0 0.0
    %2275 = vmatpush1.xpose.msra.mxu0 0.0
    %2276 = vmatprep.subr.mxu0 0.0
    %2277 = vmatpush1.xpose.msra.mxu0 0.0
    %2278 = vmatprep.subr.mxu0 0.0
    %2279 = vmatpush1.xpose.msra.mxu0 0.0
    %2280 = vmatprep.subr.mxu0 0.0
    %2281 = vmatpush1.xpose.msra.mxu0 0.0
    %2282 = vmatprep.subr.mxu0 0.0
    %2283 = vmatpush1.xpose.msra.mxu0 0.0
    %2284 = vmatprep.subr.mxu0 0.0
    %2285 = vmatpush1.xpose.msra.mxu0 0.0
    %2286 = vmatprep.subr.mxu0 0.0
    %2287 = vmatpush1.xpose.msra.mxu0 0.0
    %2288 = vmatprep.subr.mxu0 0.0
    %2289 = vmatpush1.xpose.msra.mxu0 0.0
    %2290 = vmatprep.subr.mxu0 0.0
    %2291 = vmatpush1.xpose.msra.mxu0 0.0
    %2292 = vmatprep.subr.mxu0 0.0
    %2293 = vmatpush1.xpose.msra.mxu0 0.0
    %2294 = vmatprep.subr.mxu0 0.0
    %2295 = vmatpush1.xpose.msra.mxu0 0.0
    %2296 = vmatprep.subr.mxu0 0.0
    %2297 = vmatpush1.xpose.msra.mxu0 0.0
    %2298 = vmatprep.subr.mxu0 0.0
    %2299 = vmatpush1.xpose.msra.mxu0 0.0
    %2300 = vmatprep.subr.mxu0 0.0
    %2301 = vmatpush1.xpose.msra.mxu0 0.0
    %2302 = vmatprep.subr.mxu0 0.0
    %2303 = vmatpush1.xpose.msra.mxu0 0.0
    %2304 = vmatprep.subr.mxu0 0.0
    %2305 = vmatpush1.xpose.msra.mxu0 0.0
    %2306 = vmatprep.subr.mxu0 0.0
    %2307 = vmatpush1.xpose.msra.mxu0 0.0
    %2308 = vmatprep.subr.mxu0 0.0
    %2309 = vmatpush1.xpose.msra.mxu0 0.0
    %2310 = vmatprep.subr.mxu0 0.0
    %2311 = vmatpush1.xpose.msra.mxu0 0.0
    %2312 = vmatprep.subr.mxu0 0.0
    %2313 = vmatpush1.xpose.msra.mxu0 0.0
    %2314 = vmatprep.subr.mxu0 0.0
    %2315 = vmatpush1.xpose.msra.mxu0 0.0
    %2316 = vmatprep.subr.mxu0 0.0
    %2317 = vmatpush1.xpose.msra.mxu0 0.0
    %2318 = vmatprep.subr.mxu0 0.0
    %2319 = vmatpush1.xpose.msra.mxu0 0.0
    %2320 = vmatprep.subr.mxu0 0.0
    %2321 = vmatpush1.xpose.msra.mxu0 0.0
    %2322 = vmatprep.subr.mxu0 0.0
    %2323 = vmatpush1.xpose.msra.mxu0 0.0
    %2324 = vmatprep.subr.mxu0 0.0
    %2325 = vmatpush1.xpose.msra.mxu0 0.0
    %2326 = vmatprep.subr.mxu0 0.0
    %2327 = vmatpush1.xpose.msra.mxu0 0.0
    %2328 = vmatprep.subr.mxu0 0.0
    %2329 = vmatpush1.xpose.msra.mxu0 0.0
    %2330 = vmatprep.subr.mxu0 0.0
    %2331 = vmatpush1.xpose.msra.mxu0 0.0
    %2332 = vmatprep.subr.mxu0 0.0
    %2333 = vmatpush1.xpose.msra.mxu0 0.0
    %2334 = vmatprep.mubr.f32.mxu0 0.0
    %2335 = vmatmul.mubr.f32.gmra.mrb[0].mxu0 %v2266
    %v2336 = vpop.f32.mrb[0].mxu0
    %v2337 = vadd.f32 %v338, %v2336
    %v2338 = vpop.f32.mrb[0].mxu0
    %2339 = vdwg.mxu0
    %v2340 = vsel %vm438, %v2337, -inf
    %2341 = vmax.xlane.f32.xlu0 %v2340
    %v2342 = vpop.xlane.xlu0 %2341
    %v2343 = vsub.f32 %v2337, %v2342
    %v2344 = vmul.f32 %v2343, 1.442695
    %v2345 = vpow.pop %v2344
    %v2346 = vsel %vm438, %v2345, 0.0
    %2347 = vadd.xlane.f32.xlu0 %v2346
    %v2348 = vpop.xlane.xlu0 %2347
    %v2349 = vrcp.pop %v2348
    %v2350 = vmul.f32 %v2345, %v2349
    %2351 = vrot.lane.b32.xlu0 %v2255, 64
    %v2352 = vpop.permute.xlu0 %2351
    %v2355 = vsel %vm438, %v2350, 0
    %2357 = vmatprep.subr.mxu0 0.0
    %2358 = vmatpush1.msra.mxu0 %v2352
    %2359 = vmatprep.subr.mxu0 0.0
    %2360 = vmatpush1.msra.mxu0 0.0
    %2361 = vmatprep.subr.mxu0 0.0
    %2362 = vmatpush1.msra.mxu0 0.0
    %2363 = vmatprep.subr.mxu0 0.0
    %2364 = vmatpush1.msra.mxu0 0.0
    %2365 = vmatprep.subr.mxu0 0.0
    %2366 = vmatpush1.msra.mxu0 0.0
    %2367 = vmatprep.subr.mxu0 0.0
    %2368 = vmatpush1.msra.mxu0 0.0
    %2369 = vmatprep.subr.mxu0 0.0
    %2370 = vmatpush1.msra.mxu0 0.0
    %2371 = vmatprep.subr.mxu0 0.0
    %2372 = vmatpush1.msra.mxu0 0.0
    %2373 = vmatprep.subr.mxu0 0.0
    %2374 = vmatpush1.msra.mxu0 0.0
    %2375 = vmatprep.subr.mxu0 0.0
    %2376 = vmatpush1.msra.mxu0 0.0
    %2377 = vmatprep.subr.mxu0 0.0
    %2378 = vmatpush1.msra.mxu0 0.0
    %2379 = vmatprep.subr.mxu0 0.0
    %2380 = vmatpush1.msra.mxu0 0.0
    %2381 = vmatprep.subr.mxu0 0.0
    %2382 = vmatpush1.msra.mxu0 0.0
    %2383 = vmatprep.subr.mxu0 0.0
    %2384 = vmatpush1.msra.mxu0 0.0
    %2385 = vmatprep.subr.mxu0 0.0
    %2386 = vmatpush1.msra.mxu0 0.0
    %2387 = vmatprep.subr.mxu0 0.0
    %2388 = vmatpush1.msra.mxu0 0.0
    %2389 = vmatprep.subr.mxu0 0.0
    %2390 = vmatpush1.msra.mxu0 0.0
    %2391 = vmatprep.subr.mxu0 0.0
    %2392 = vmatpush1.msra.mxu0 0.0
    %2393 = vmatprep.subr.mxu0 0.0
    %2394 = vmatpush1.msra.mxu0 0.0
    %2395 = vmatprep.subr.mxu0 0.0
    %2396 = vmatpush1.msra.mxu0 0.0
    %2397 = vmatprep.subr.mxu0 0.0
    %2398 = vmatpush1.msra.mxu0 0.0
    %2399 = vmatprep.subr.mxu0 0.0
    %2400 = vmatpush1.msra.mxu0 0.0
    %2401 = vmatprep.subr.mxu0 0.0
    %2402 = vmatpush1.msra.mxu0 0.0
    %2403 = vmatprep.subr.mxu0 0.0
    %2404 = vmatpush1.msra.mxu0 0.0
    %2405 = vmatprep.subr.mxu0 0.0
    %2406 = vmatpush1.msra.mxu0 0.0
    %2407 = vmatprep.subr.mxu0 0.0
    %2408 = vmatpush1.msra.mxu0 0.0
    %2409 = vmatprep.subr.mxu0 0.0
    %2410 = vmatpush1.msra.mxu0 0.0
    %2411 = vmatprep.subr.mxu0 0.0
    %2412 = vmatpush1.msra.mxu0 0.0
    %2413 = vmatprep.subr.mxu0 0.0
    %2414 = vmatpush1.msra.mxu0 0.0
    %2415 = vmatprep.subr.mxu0 0.0
    %2416 = vmatpush1.msra.mxu0 0.0
    %2417 = vmatprep.subr.mxu0 0.0
    %2418 = vmatpush1.msra.mxu0 0.0
    %2419 = vmatprep.subr.mxu0 0.0
    %2420 = vmatpush1.msra.mxu0 0.0
    %2421 = vmatprep.mubr.f32.mxu0 0.0
    %2422 = vmatmul.mubr.f32.gmra.mrb[0].mxu0 %v2355
    %v2423 = vpop.f32.mrb[0].mxu0
    %v2424 = vadd.f32 0.0, %v2423
    %v2425 = vpop.f32.mrb[0].mxu0
    %2426 = vdwg.mxu0
    %2427 = vrot.lane.b32.xlu0 %v2255, 120
    %v2428 = vpop.permute.xlu0 %2427
    %2429 = vrot.lane.b32.xlu0 %v2255, 88
    %v2430 = vpop.permute.xlu0 %2429
    %v2431 = vsel %vm438, %v2428, 0
    %v2433 = vsel %vm438, %v2430, 0
    %2435 = vmatprep.subr.mxu0 0.0
    %2436 = vmatpush1.xpose.msra.mxu0 %v2433
    %2437 = vmatprep.subr.mxu0 0.0
    %2438 = vmatpush1.xpose.msra.mxu0 0.0
    %2439 = vmatprep.subr.mxu0 0.0
    %2440 = vmatpush1.xpose.msra.mxu0 0.0
    %2441 = vmatprep.subr.mxu0 0.0
    %2442 = vmatpush1.xpose.msra.mxu0 0.0
    %2443 = vmatprep.subr.mxu0 0.0
    %2444 = vmatpush1.xpose.msra.mxu0 0.0
    %2445 = vmatprep.subr.mxu0 0.0
    %2446 = vmatpush1.xpose.msra.mxu0 0.0
    %2447 = vmatprep.subr.mxu0 0.0
    %2448 = vmatpush1.xpose.msra.mxu0 0.0
    %2449 = vmatprep.subr.mxu0 0.0
    %2450 = vmatpush1.xpose.msra.mxu0 0.0
    %2451 = vmatprep.subr.mxu0 0.0
    %2452 = vmatpush1.xpose.msra.mxu0 0.0
    %2453 = vmatprep.subr.mxu0 0.0
    %2454 = vmatpush1.xpose.msra.mxu0 0.0
    %2455 = vmatprep.subr.mxu0 0.0
    %2456 = vmatpush1.xpose.msra.mxu0 0.0
    %2457 = vmatprep.subr.mxu0 0.0
    %2458 = vmatpush1.xpose.msra.mxu0 0.0
    %2459 = vmatprep.subr.mxu0 0.0
    %2460 = vmatpush1.xpose.msra.mxu0 0.0
    %2461 = vmatprep.subr.mxu0 0.0
    %2462 = vmatpush1.xpose.msra.mxu0 0.0
    %2463 = vmatprep.subr.mxu0 0.0
    %2464 = vmatpush1.xpose.msra.mxu0 0.0
    %2465 = vmatprep.subr.mxu0 0.0
    %2466 = vmatpush1.xpose.msra.mxu0 0.0
    %2467 = vmatprep.subr.mxu0 0.0
    %2468 = vmatpush1.xpose.msra.mxu0 0.0
    %2469 = vmatprep.subr.mxu0 0.0
    %2470 = vmatpush1.xpose.msra.mxu0 0.0
    %2471 = vmatprep.subr.mxu0 0.0
    %2472 = vmatpush1.xpose.msra.mxu0 0.0
    %2473 = vmatprep.subr.mxu0 0.0
    %2474 = vmatpush1.xpose.msra.mxu0 0.0
    %2475 = vmatprep.subr.mxu0 0.0
    %2476 = vmatpush1.xpose.msra.mxu0 0.0
    %2477 = vmatprep.subr.mxu0 0.0
    %2478 = vmatpush1.xpose.msra.mxu0 0.0
    %2479 = vmatprep.subr.mxu0 0.0
    %2480 = vmatpush1.xpose.msra.mxu0 0.0
    %2481 = vmatprep.subr.mxu0 0.0
    %2482 = vmatpush1.xpose.msra.mxu0 0.0
    %2483 = vmatprep.subr.mxu0 0.0
    %2484 = vmatpush1.xpose.msra.mxu0 0.0
    %2485 = vmatprep.subr.mxu0 0.0
    %2486 = vmatpush1.xpose.msra.mxu0 0.0
    %2487 = vmatprep.subr.mxu0 0.0
    %2488 = vmatpush1.xpose.msra.mxu0 0.0
    %2489 = vmatprep.subr.mxu0 0.0
    %2490 = vmatpush1.xpose.msra.mxu0 0.0
    %2491 = vmatprep.subr.mxu0 0.0
    %2492 = vmatpush1.xpose.msra.mxu0 0.0
    %2493 = vmatprep.subr.mxu0 0.0
    %2494 = vmatpush1.xpose.msra.mxu0 0.0
    %2495 = vmatprep.subr.mxu0 0.0
    %2496 = vmatpush1.xpose.msra.mxu0 0.0
    %2497 = vmatprep.subr.mxu0 0.0
    %2498 = vmatpush1.xpose.msra.mxu0 0.0
    %2499 = vmatprep.mubr.f32.mxu0 0.0
    %2500 = vmatmul.mubr.f32.gmra.mrb[0].mxu0 %v2431
    %v2501 = vpop.f32.mrb[0].mxu0
    %v2502 = vadd.f32 %v338, %v2501
    %v2503 = vpop.f32.mrb[0].mxu0
    %2504 = vdwg.mxu0
    %v2505 = vsel %vm438, %v2502, -inf
    %2506 = vmax.xlane.f32.xlu0 %v2505
    %v2507 = vpop.xlane.xlu0 %2506
    %v2508 = vsub.f32 %v2502, %v2507
    %v2509 = vmul.f32 %v2508, 1.442695
    %v2510 = vpow.pop %v2509
    %v2511 = vsel %vm438, %v2510, 0.0
    %2512 = vadd.xlane.f32.xlu0 %v2511
    %v2513 = vpop.xlane.xlu0 %2512
    %v2514 = vrcp.pop %v2513
    %v2515 = vmul.f32 %v2510, %v2514
    %2516 = vrot.lane.b32.xlu0 %v2255, 56
    %v2517 = vpop.permute.xlu0 %2516
    %v2520 = vsel %vm438, %v2515, 0
    %2522 = vmatprep.subr.mxu0 0.0
    %2523 = vmatpush1.msra.mxu0 %v2517
    %2524 = vmatprep.subr.mxu0 0.0
    %2525 = vmatpush1.msra.mxu0 0.0
    %2526 = vmatprep.subr.mxu0 0.0
    %2527 = vmatpush1.msra.mxu0 0.0
    %2528 = vmatprep.subr.mxu0 0.0
    %2529 = vmatpush1.msra.mxu0 0.0
    %2530 = vmatprep.subr.mxu0 0.0
    %2531 = vmatpush1.msra.mxu0 0.0
    %2532 = vmatprep.subr.mxu0 0.0
    %2533 = vmatpush1.msra.mxu0 0.0
    %2534 = vmatprep.subr.mxu0 0.0
    %2535 = vmatpush1.msra.mxu0 0.0
    %2536 = vmatprep.subr.mxu0 0.0
    %2537 = vmatpush1.msra.mxu0 0.0
    %2538 = vmatprep.subr.mxu0 0.0
    %2539 = vmatpush1.msra.mxu0 0.0
    %2540 = vmatprep.subr.mxu0 0.0
    %2541 = vmatpush1.msra.mxu0 0.0
    %2542 = vmatprep.subr.mxu0 0.0
    %2543 = vmatpush1.msra.mxu0 0.0
    %2544 = vmatprep.subr.mxu0 0.0
    %2545 = vmatpush1.msra.mxu0 0.0
    %2546 = vmatprep.subr.mxu0 0.0
    %2547 = vmatpush1.msra.mxu0 0.0
    %2548 = vmatprep.subr.mxu0 0.0
    %2549 = vmatpush1.msra.mxu0 0.0
    %2550 = vmatprep.subr.mxu0 0.0
    %2551 = vmatpush1.msra.mxu0 0.0
    %2552 = vmatprep.subr.mxu0 0.0
    %2553 = vmatpush1.msra.mxu0 0.0
    %2554 = vmatprep.subr.mxu0 0.0
    %2555 = vmatpush1.msra.mxu0 0.0
    %2556 = vmatprep.subr.mxu0 0.0
    %2557 = vmatpush1.msra.mxu0 0.0
    %2558 = vmatprep.subr.mxu0 0.0
    %2559 = vmatpush1.msra.mxu0 0.0
    %2560 = vmatprep.subr.mxu0 0.0
    %2561 = vmatpush1.msra.mxu0 0.0
    %2562 = vmatprep.subr.mxu0 0.0
    %2563 = vmatpush1.msra.mxu0 0.0
    %2564 = vmatprep.subr.mxu0 0.0
    %2565 = vmatpush1.msra.mxu0 0.0
    %2566 = vmatprep.subr.mxu0 0.0
    %2567 = vmatpush1.msra.mxu0 0.0
    %2568 = vmatprep.subr.mxu0 0.0
    %2569 = vmatpush1.msra.mxu0 0.0
    %2570 = vmatprep.subr.mxu0 0.0
    %2571 = vmatpush1.msra.mxu0 0.0
    %2572 = vmatprep.subr.mxu0 0.0
    %2573 = vmatpush1.msra.mxu0 0.0
    %2574 = vmatprep.subr.mxu0 0.0
    %2575 = vmatpush1.msra.mxu0 0.0
    %2576 = vmatprep.subr.mxu0 0.0
    %2577 = vmatpush1.msra.mxu0 0.0
    %2578 = vmatprep.subr.mxu0 0.0
    %2579 = vmatpush1.msra.mxu0 0.0
    %2580 = vmatprep.subr.mxu0 0.0
    %2581 = vmatpush1.msra.mxu0 0.0
    %2582 = vmatprep.subr.mxu0 0.0
    %2583 = vmatpush1.msra.mxu0 0.0
    %2584 = vmatprep.subr.mxu0 0.0
    %2585 = vmatpush1.msra.mxu0 0.0
    %2586 = vmatprep.mubr.f32.mxu0 0.0
    %2587 = vmatmul.mubr.f32.gmra.mrb[0].mxu0 %v2520
    %v2588 = vpop.f32.mrb[0].mxu0
    %v2589 = vadd.f32 0.0, %v2588
    %v2590 = vpop.f32.mrb[0].mxu0
    %2591 = vdwg.mxu0
    %2592 = vrot.lane.b32.xlu0 %v2255, 112
    %v2593 = vpop.permute.xlu0 %2592
    %2594 = vrot.lane.b32.xlu0 %v2255, 80
    %v2595 = vpop.permute.xlu0 %2594
    %v2596 = vsel %vm438, %v2593, 0
    %v2598 = vsel %vm438, %v2595, 0
    %2600 = vmatprep.subr.mxu0 0.0
    %2601 = vmatpush1.xpose.msra.mxu0 %v2598
    %2602 = vmatprep.subr.mxu0 0.0
    %2603 = vmatpush1.xpose.msra.mxu0 0.0
    %2604 = vmatprep.subr.mxu0 0.0
    %2605 = vmatpush1.xpose.msra.mxu0 0.0
    %2606 = vmatprep.subr.mxu0 0.0
    %2607 = vmatpush1.xpose.msra.mxu0 0.0
    %2608 = vmatprep.subr.mxu0 0.0
    %2609 = vmatpush1.xpose.msra.mxu0 0.0
    %2610 = vmatprep.subr.mxu0 0.0
    %2611 = vmatpush1.xpose.msra.mxu0 0.0
    %2612 = vmatprep.subr.mxu0 0.0
    %2613 = vmatpush1.xpose.msra.mxu0 0.0
    %2614 = vmatprep.subr.mxu0 0.0
    %2615 = vmatpush1.xpose.msra.mxu0 0.0
    %2616 = vmatprep.subr.mxu0 0.0
    %2617 = vmatpush1.xpose.msra.mxu0 0.0
    %2618 = vmatprep.subr.mxu0 0.0
    %2619 = vmatpush1.xpose.msra.mxu0 0.0
    %2620 = vmatprep.subr.mxu0 0.0
    %2621 = vmatpush1.xpose.msra.mxu0 0.0
    %2622 = vmatprep.subr.mxu0 0.0
    %2623 = vmatpush1.xpose.msra.mxu0 0.0
    %2624 = vmatprep.subr.mxu0 0.0
    %2625 = vmatpush1.xpose.msra.mxu0 0.0
    %2626 = vmatprep.subr.mxu0 0.0
    %2627 = vmatpush1.xpose.msra.mxu0 0.0
    %2628 = vmatprep.subr.mxu0 0.0
    %2629 = vmatpush1.xpose.msra.mxu0 0.0
    %2630 = vmatprep.subr.mxu0 0.0
    %2631 = vmatpush1.xpose.msra.mxu0 0.0
    %2632 = vmatprep.subr.mxu0 0.0
    %2633 = vmatpush1.xpose.msra.mxu0 0.0
    %2634 = vmatprep.subr.mxu0 0.0
    %2635 = vmatpush1.xpose.msra.mxu0 0.0
    %2636 = vmatprep.subr.mxu0 0.0
    %2637 = vmatpush1.xpose.msra.mxu0 0.0
    %2638 = vmatprep.subr.mxu0 0.0
    %2639 = vmatpush1.xpose.msra.mxu0 0.0
    %2640 = vmatprep.subr.mxu0 0.0
    %2641 = vmatpush1.xpose.msra.mxu0 0.0
    %2642 = vmatprep.subr.mxu0 0.0
    %2643 = vmatpush1.xpose.msra.mxu0 0.0
    %2644 = vmatprep.subr.mxu0 0.0
    %2645 = vmatpush1.xpose.msra.mxu0 0.0
    %2646 = vmatprep.subr.mxu0 0.0
    %2647 = vmatpush1.xpose.msra.mxu0 0.0
    %2648 = vmatprep.subr.mxu0 0.0
    %2649 = vmatpush1.xpose.msra.mxu0 0.0
    %2650 = vmatprep.subr.mxu0 0.0
    %2651 = vmatpush1.xpose.msra.mxu0 0.0
    %2652 = vmatprep.subr.mxu0 0.0
    %2653 = vmatpush1.xpose.msra.mxu0 0.0
    %2654 = vmatprep.subr.mxu0 0.0
    %2655 = vmatpush1.xpose.msra.mxu0 0.0
    %2656 = vmatprep.subr.mxu0 0.0
    %2657 = vmatpush1.xpose.msra.mxu0 0.0
    %2658 = vmatprep.subr.mxu0 0.0
    %2659 = vmatpush1.xpose.msra.mxu0 0.0
    %2660 = vmatprep.subr.mxu0 0.0
    %2661 = vmatpush1.xpose.msra.mxu0 0.0
    %2662 = vmatprep.subr.mxu0 0.0
    %2663 = vmatpush1.xpose.msra.mxu0 0.0
    %2664 = vmatprep.mubr.f32.mxu0 0.0
    %2665 = vmatmul.mubr.f32.gmra.mrb[0].mxu0 %v2596
    %v2666 = vpop.f32.mrb[0].mxu0
    %v2667 = vadd.f32 %v338, %v2666
    %v2668 = vpop.f32.mrb[0].mxu0
    %2669 = vdwg.mxu0
    %v2670 = vsel %vm438, %v2667, -inf
    %2671 = vmax.xlane.f32.xlu0 %v2670
    %v2672 = vpop.xlane.xlu0 %2671
    %v2673 = vsub.f32 %v2667, %v2672
    %v2674 = vmul.f32 %v2673, 1.442695
    %v2675 = vpow.pop %v2674
    %v2676 = vsel %vm438, %v2675, 0.0
    %2677 = vadd.xlane.f32.xlu0 %v2676
    %v2678 = vpop.xlane.xlu0 %2677
    %v2679 = vrcp.pop %v2678
    %v2680 = vmul.f32 %v2675, %v2679
    %2681 = vrot.lane.b32.xlu0 %v2255, 48
    %v2682 = vpop.permute.xlu0 %2681
    %v2685 = vsel %vm438, %v2680, 0
    %2687 = vmatprep.subr.mxu0 0.0
    %2688 = vmatpush1.msra.mxu0 %v2682
    %2689 = vmatprep.subr.mxu0 0.0
    %2690 = vmatpush1.msra.mxu0 0.0
    %2691 = vmatprep.subr.mxu0 0.0
    %2692 = vmatpush1.msra.mxu0 0.0
    %2693 = vmatprep.subr.mxu0 0.0
    %2694 = vmatpush1.msra.mxu0 0.0
    %2695 = vmatprep.subr.mxu0 0.0
    %2696 = vmatpush1.msra.mxu0 0.0
    %2697 = vmatprep.subr.mxu0 0.0
    %2698 = vmatpush1.msra.mxu0 0.0
    %2699 = vmatprep.subr.mxu0 0.0
    %2700 = vmatpush1.msra.mxu0 0.0
    %2701 = vmatprep.subr.mxu0 0.0
    %2702 = vmatpush1.msra.mxu0 0.0
    %2703 = vmatprep.subr.mxu0 0.0
    %2704 = vmatpush1.msra.mxu0 0.0
    %2705 = vmatprep.subr.mxu0 0.0
    %2706 = vmatpush1.msra.mxu0 0.0
    %2707 = vmatprep.subr.mxu0 0.0
    %2708 = vmatpush1.msra.mxu0 0.0
    %2709 = vmatprep.subr.mxu0 0.0
    %2710 = vmatpush1.msra.mxu0 0.0
    %2711 = vmatprep.subr.mxu0 0.0
    %2712 = vmatpush1.msra.mxu0 0.0
    %2713 = vmatprep.subr.mxu0 0.0
    %2714 = vmatpush1.msra.mxu0 0.0
    %2715 = vmatprep.subr.mxu0 0.0
    %2716 = vmatpush1.msra.mxu0 0.0
    %2717 = vmatprep.subr.mxu0 0.0
    %2718 = vmatpush1.msra.mxu0 0.0
    %2719 = vmatprep.subr.mxu0 0.0
    %2720 = vmatpush1.msra.mxu0 0.0
    %2721 = vmatprep.subr.mxu0 0.0
    %2722 = vmatpush1.msra.mxu0 0.0
    %2723 = vmatprep.subr.mxu0 0.0
    %2724 = vmatpush1.msra.mxu0 0.0
    %2725 = vmatprep.subr.mxu0 0.0
    %2726 = vmatpush1.msra.mxu0 0.0
    %2727 = vmatprep.subr.mxu0 0.0
    %2728 = vmatpush1.msra.mxu0 0.0
    %2729 = vmatprep.subr.mxu0 0.0
    %2730 = vmatpush1.msra.mxu0 0.0
    %2731 = vmatprep.subr.mxu0 0.0
    %2732 = vmatpush1.msra.mxu0 0.0
    %2733 = vmatprep.subr.mxu0 0.0
    %2734 = vmatpush1.msra.mxu0 0.0
    %2735 = vmatprep.subr.mxu0 0.0
    %2736 = vmatpush1.msra.mxu0 0.0
    %2737 = vmatprep.subr.mxu0 0.0
    %2738 = vmatpush1.msra.mxu0 0.0
    %2739 = vmatprep.subr.mxu0 0.0
    %2740 = vmatpush1.msra.mxu0 0.0
    %2741 = vmatprep.subr.mxu0 0.0
    %2742 = vmatpush1.msra.mxu0 0.0
    %2743 = vmatprep.subr.mxu0 0.0
    %2744 = vmatpush1.msra.mxu0 0.0
    %2745 = vmatprep.subr.mxu0 0.0
    %2746 = vmatpush1.msra.mxu0 0.0
    %2747 = vmatprep.subr.mxu0 0.0
    %2748 = vmatpush1.msra.mxu0 0.0
    %2749 = vmatprep.subr.mxu0 0.0
    %2750 = vmatpush1.msra.mxu0 0.0
    %2751 = vmatprep.mubr.f32.mxu0 0.0
    %2752 = vmatmul.mubr.f32.gmra.mrb[0].mxu0 %v2685
    %v2753 = vpop.f32.mrb[0].mxu0
    %v2754 = vadd.f32 0.0, %v2753
    %v2755 = vpop.f32.mrb[0].mxu0
    %2756 = vdwg.mxu0
    %2757 = vrot.lane.b32.xlu0 %v2255, 104
    %v2758 = vpop.permute.xlu0 %2757
    %2759 = vrot.lane.b32.xlu0 %v2255, 72
    %v2760 = vpop.permute.xlu0 %2759
    %v2761 = vsel %vm438, %v2758, 0
    %v2763 = vsel %vm438, %v2760, 0
    %2765 = vmatprep.subr.mxu0 0.0
    %2766 = vmatpush1.xpose.msra.mxu0 %v2763
    %2767 = vmatprep.subr.mxu0 0.0
    %2768 = vmatpush1.xpose.msra.mxu0 0.0
    %2769 = vmatprep.subr.mxu0 0.0
    %2770 = vmatpush1.xpose.msra.mxu0 0.0
    %2771 = vmatprep.subr.mxu0 0.0
    %2772 = vmatpush1.xpose.msra.mxu0 0.0
    %2773 = vmatprep.subr.mxu0 0.0
    %2774 = vmatpush1.xpose.msra.mxu0 0.0
    %2775 = vmatprep.subr.mxu0 0.0
    %2776 = vmatpush1.xpose.msra.mxu0 0.0
    %2777 = vmatprep.subr.mxu0 0.0
    %2778 = vmatpush1.xpose.msra.mxu0 0.0
    %2779 = vmatprep.subr.mxu0 0.0
    %2780 = vmatpush1.xpose.msra.mxu0 0.0
    %2781 = vmatprep.subr.mxu0 0.0
    %2782 = vmatpush1.xpose.msra.mxu0 0.0
    %2783 = vmatprep.subr.mxu0 0.0
    %2784 = vmatpush1.xpose.msra.mxu0 0.0
    %2785 = vmatprep.subr.mxu0 0.0
    %2786 = vmatpush1.xpose.msra.mxu0 0.0
    %2787 = vmatprep.subr.mxu0 0.0
    %2788 = vmatpush1.xpose.msra.mxu0 0.0
    %2789 = vmatprep.subr.mxu0 0.0
    %2790 = vmatpush1.xpose.msra.mxu0 0.0
    %2791 = vmatprep.subr.mxu0 0.0
    %2792 = vmatpush1.xpose.msra.mxu0 0.0
    %2793 = vmatprep.subr.mxu0 0.0
    %2794 = vmatpush1.xpose.msra.mxu0 0.0
    %2795 = vmatprep.subr.mxu0 0.0
    %2796 = vmatpush1.xpose.msra.mxu0 0.0
    %2797 = vmatprep.subr.mxu0 0.0
    %2798 = vmatpush1.xpose.msra.mxu0 0.0
    %2799 = vmatprep.subr.mxu0 0.0
    %2800 = vmatpush1.xpose.msra.mxu0 0.0
    %2801 = vmatprep.subr.mxu0 0.0
    %2802 = vmatpush1.xpose.msra.mxu0 0.0
    %2803 = vmatprep.subr.mxu0 0.0
    %2804 = vmatpush1.xpose.msra.mxu0 0.0
    %2805 = vmatprep.subr.mxu0 0.0
    %2806 = vmatpush1.xpose.msra.mxu0 0.0
    %2807 = vmatprep.subr.mxu0 0.0
    %2808 = vmatpush1.xpose.msra.mxu0 0.0
    %2809 = vmatprep.subr.mxu0 0.0
    %2810 = vmatpush1.xpose.msra.mxu0 0.0
    %2811 = vmatprep.subr.mxu0 0.0
    %2812 = vmatpush1.xpose.msra.mxu0 0.0
    %2813 = vmatprep.subr.mxu0 0.0
    %2814 = vmatpush1.xpose.msra.mxu0 0.0
    %2815 = vmatprep.subr.mxu0 0.0
    %2816 = vmatpush1.xpose.msra.mxu0 0.0
    %2817 = vmatprep.subr.mxu0 0.0
    %2818 = vmatpush1.xpose.msra.mxu0 0.0
    %2819 = vmatprep.subr.mxu0 0.0
    %2820 = vmatpush1.xpose.msra.mxu0 0.0
    %2821 = vmatprep.subr.mxu0 0.0
    %2822 = vmatpush1.xpose.msra.mxu0 0.0
    %2823 = vmatprep.subr.mxu0 0.0
    %2824 = vmatpush1.xpose.msra.mxu0 0.0
    %2825 = vmatprep.subr.mxu0 0.0
    %2826 = vmatpush1.xpose.msra.mxu0 0.0
    %2827 = vmatprep.subr.mxu0 0.0
    %2828 = vmatpush1.xpose.msra.mxu0 0.0
    %2829 = vmatprep.mubr.f32.mxu0 0.0
    %2830 = vmatmul.mubr.f32.gmra.mrb[0].mxu0 %v2761
    %v2831 = vpop.f32.mrb[0].mxu0
    %v2832 = vadd.f32 %v338, %v2831
    %v2833 = vpop.f32.mrb[0].mxu0
    %2834 = vdwg.mxu0
    %v2835 = vsel %vm438, %v2832, -inf
    %2836 = vmax.xlane.f32.xlu0 %v2835
    %v2837 = vpop.xlane.xlu0 %2836
    %v2838 = vsub.f32 %v2832, %v2837
    %v2839 = vmul.f32 %v2838, 1.442695
    %v2840 = vpow.pop %v2839
    %v2841 = vsel %vm438, %v2840, 0.0
    %2842 = vadd.xlane.f32.xlu0 %v2841
    %v2843 = vpop.xlane.xlu0 %2842
    %v2844 = vrcp.pop %v2843
    %v2845 = vmul.f32 %v2840, %v2844
    %2846 = vrot.lane.b32.xlu0 %v2255, 40
    %v2847 = vpop.permute.xlu0 %2846
    %v2850 = vsel %vm438, %v2845, 0
    %2852 = vmatprep.subr.mxu0 0.0
    %2853 = vmatpush1.msra.mxu0 %v2847
    %2854 = vmatprep.subr.mxu0 0.0
    %2855 = vmatpush1.msra.mxu0 0.0
    %2856 = vmatprep.subr.mxu0 0.0
    %2857 = vmatpush1.msra.mxu0 0.0
    %2858 = vmatprep.subr.mxu0 0.0
    %2859 = vmatpush1.msra.mxu0 0.0
    %2860 = vmatprep.subr.mxu0 0.0
    %2861 = vmatpush1.msra.mxu0 0.0
    %2862 = vmatprep.subr.mxu0 0.0
    %2863 = vmatpush1.msra.mxu0 0.0
    %2864 = vmatprep.subr.mxu0 0.0
    %2865 = vmatpush1.msra.mxu0 0.0
    %2866 = vmatprep.subr.mxu0 0.0
    %2867 = vmatpush1.msra.mxu0 0.0
    %2868 = vmatprep.subr.mxu0 0.0
    %2869 = vmatpush1.msra.mxu0 0.0
    %2870 = vmatprep.subr.mxu0 0.0
    %2871 = vmatpush1.msra.mxu0 0.0
    %2872 = vmatprep.subr.mxu0 0.0
    %2873 = vmatpush1.msra.mxu0 0.0
    %2874 = vmatprep.subr.mxu0 0.0
    %2875 = vmatpush1.msra.mxu0 0.0
    %2876 = vmatprep.subr.mxu0 0.0
    %2877 = vmatpush1.msra.mxu0 0.0
    %2878 = vmatprep.subr.mxu0 0.0
    %2879 = vmatpush1.msra.mxu0 0.0
    %2880 = vmatprep.subr.mxu0 0.0
    %2881 = vmatpush1.msra.mxu0 0.0
    %2882 = vmatprep.subr.mxu0 0.0
    %2883 = vmatpush1.msra.mxu0 0.0
    %2884 = vmatprep.subr.mxu0 0.0
    %2885 = vmatpush1.msra.mxu0 0.0
    %2886 = vmatprep.subr.mxu0 0.0
    %2887 = vmatpush1.msra.mxu0 0.0
    %2888 = vmatprep.subr.mxu0 0.0
    %2889 = vmatpush1.msra.mxu0 0.0
    %2890 = vmatprep.subr.mxu0 0.0
    %2891 = vmatpush1.msra.mxu0 0.0
    %2892 = vmatprep.subr.mxu0 0.0
    %2893 = vmatpush1.msra.mxu0 0.0
    %2894 = vmatprep.subr.mxu0 0.0
    %2895 = vmatpush1.msra.mxu0 0.0
    %2896 = vmatprep.subr.mxu0 0.0
    %2897 = vmatpush1.msra.mxu0 0.0
    %2898 = vmatprep.subr.mxu0 0.0
    %2899 = vmatpush1.msra.mxu0 0.0
    %2900 = vmatprep.subr.mxu0 0.0
    %2901 = vmatpush1.msra.mxu0 0.0
    %2902 = vmatprep.subr.mxu0 0.0
    %2903 = vmatpush1.msra.mxu0 0.0
    %2904 = vmatprep.subr.mxu0 0.0
    %2905 = vmatpush1.msra.mxu0 0.0
    %2906 = vmatprep.subr.mxu0 0.0
    %2907 = vmatpush1.msra.mxu0 0.0
    %2908 = vmatprep.subr.mxu0 0.0
    %2909 = vmatpush1.msra.mxu0 0.0
    %2910 = vmatprep.subr.mxu0 0.0
    %2911 = vmatpush1.msra.mxu0 0.0
    %2912 = vmatprep.subr.mxu0 0.0
    %2913 = vmatpush1.msra.mxu0 0.0
    %2914 = vmatprep.subr.mxu0 0.0
    %2915 = vmatpush1.msra.mxu0 0.0
    %2916 = vmatprep.mubr.f32.mxu0 0.0
    %2917 = vmatmul.mubr.f32.gmra.mrb[0].mxu0 %v2850
    %v2918 = vpop.f32.mrb[0].mxu0
    %v2919 = vadd.f32 0.0, %v2918
    %v2920 = vpop.f32.mrb[0].mxu0
    %2921 = vdwg.mxu0
    %2923 = vrot.lane.b32.xlu0 %v2589, 8
    %v2924 = vpop.permute.xlu0 %2923
    %2927 = vrot.lane.b32.xlu0 %v2754, 16
    %v2928 = vpop.permute.xlu0 %2927
    %2931 = vrot.lane.b32.xlu0 %v2919, 24
    %v2932 = vpop.permute.xlu0 %2931
    %v2934 = vsel %vm438, %v2424, %v2924
    %v2935 = vsel %vm1108, %v2934, %v2928
    %v2936 = vsel %vm1110, %v2935, %v2932
    %2938 = vrot.lane.b32.xlu0 %v2260, 96
    %v2939 = vpop.permute.xlu0 %2938
    %v2940 = vsel %vm438, %v2260, 0
    %v2942 = vsel %vm438, %v2939, 0
    %2944 = vmatprep.subr.mxu0 0.0
    %2945 = vmatpush1.xpose.msra.mxu0 %v2942
    %2946 = vmatprep.subr.mxu0 0.0
    %2947 = vmatpush1.xpose.msra.mxu0 0.0
    %2948 = vmatprep.subr.mxu0 0.0
    %2949 = vmatpush1.xpose.msra.mxu0 0.0
    %2950 = vmatprep.subr.mxu0 0.0
    %2951 = vmatpush1.xpose.msra.mxu0 0.0
    %2952 = vmatprep.subr.mxu0 0.0
    %2953 = vmatpush1.xpose.msra.mxu0 0.0
    %2954 = vmatprep.subr.mxu0 0.0
    %2955 = vmatpush1.xpose.msra.mxu0 0.0
    %2956 = vmatprep.subr.mxu0 0.0
    %2957 = vmatpush1.xpose.msra.mxu0 0.0
    %2958 = vmatprep.subr.mxu0 0.0
    %2959 = vmatpush1.xpose.msra.mxu0 0.0
    %2960 = vmatprep.subr.mxu0 0.0
    %2961 = vmatpush1.xpose.msra.mxu0 0.0
    %2962 = vmatprep.subr.mxu0 0.0
    %2963 = vmatpush1.xpose.msra.mxu0 0.0
    %2964 = vmatprep.subr.mxu0 0.0
    %2965 = vmatpush1.xpose.msra.mxu0 0.0
    %2966 = vmatprep.subr.mxu0 0.0
    %2967 = vmatpush1.xpose.msra.mxu0 0.0
    %2968 = vmatprep.subr.mxu0 0.0
    %2969 = vmatpush1.xpose.msra.mxu0 0.0
    %2970 = vmatprep.subr.mxu0 0.0
    %2971 = vmatpush1.xpose.msra.mxu0 0.0
    %2972 = vmatprep.subr.mxu0 0.0
    %2973 = vmatpush1.xpose.msra.mxu0 0.0
    %2974 = vmatprep.subr.mxu0 0.0
    %2975 = vmatpush1.xpose.msra.mxu0 0.0
    %2976 = vmatprep.subr.mxu0 0.0
    %2977 = vmatpush1.xpose.msra.mxu0 0.0
    %2978 = vmatprep.subr.mxu0 0.0
    %2979 = vmatpush1.xpose.msra.mxu0 0.0
    %2980 = vmatprep.subr.mxu0 0.0
    %2981 = vmatpush1.xpose.msra.mxu0 0.0
    %2982 = vmatprep.subr.mxu0 0.0
    %2983 = vmatpush1.xpose.msra.mxu0 0.0
    %2984 = vmatprep.subr.mxu0 0.0
    %2985 = vmatpush1.xpose.msra.mxu0 0.0
    %2986 = vmatprep.subr.mxu0 0.0
    %2987 = vmatpush1.xpose.msra.mxu0 0.0
    %2988 = vmatprep.subr.mxu0 0.0
    %2989 = vmatpush1.xpose.msra.mxu0 0.0
    %2990 = vmatprep.subr.mxu0 0.0
    %2991 = vmatpush1.xpose.msra.mxu0 0.0
    %2992 = vmatprep.subr.mxu0 0.0
    %2993 = vmatpush1.xpose.msra.mxu0 0.0
    %2994 = vmatprep.subr.mxu0 0.0
    %2995 = vmatpush1.xpose.msra.mxu0 0.0
    %2996 = vmatprep.subr.mxu0 0.0
    %2997 = vmatpush1.xpose.msra.mxu0 0.0
    %2998 = vmatprep.subr.mxu0 0.0
    %2999 = vmatpush1.xpose.msra.mxu0 0.0
    %3000 = vmatprep.subr.mxu0 0.0
    %3001 = vmatpush1.xpose.msra.mxu0 0.0
    %3002 = vmatprep.subr.mxu0 0.0
    %3003 = vmatpush1.xpose.msra.mxu0 0.0
    %3004 = vmatprep.subr.mxu0 0.0
    %3005 = vmatpush1.xpose.msra.mxu0 0.0
    %3006 = vmatprep.subr.mxu0 0.0
    %3007 = vmatpush1.xpose.msra.mxu0 0.0
    %3008 = vmatprep.mubr.f32.mxu0 0.0
    %3009 = vmatmul.mubr.f32.gmra.mrb[0].mxu0 %v2940
    %v3010 = vpop.f32.mrb[0].mxu0
    %v3011 = vadd.f32 %v342, %v3010
    %v3012 = vpop.f32.mrb[0].mxu0
    %3013 = vdwg.mxu0
    %v3014 = vsel %vm438, %v3011, -inf
    %3015 = vmax.xlane.f32.xlu0 %v3014
    %v3016 = vpop.xlane.xlu0 %3015
    %v3017 = vsub.f32 %v3011, %v3016
    %v3018 = vmul.f32 %v3017, 1.442695
    %v3019 = vpow.pop %v3018
    %v3020 = vsel %vm438, %v3019, 0.0
    %3021 = vadd.xlane.f32.xlu0 %v3020
    %v3022 = vpop.xlane.xlu0 %3021
    %v3023 = vrcp.pop %v3022
    %v3024 = vmul.f32 %v3019, %v3023
    %3025 = vrot.lane.b32.xlu0 %v2260, 64
    %v3026 = vpop.permute.xlu0 %3025
    %v3029 = vsel %vm438, %v3024, 0
    %3031 = vmatprep.subr.mxu0 0.0
    %3032 = vmatpush1.msra.mxu0 %v3026
    %3033 = vmatprep.subr.mxu0 0.0
    %3034 = vmatpush1.msra.mxu0 0.0
    %3035 = vmatprep.subr.mxu0 0.0
    %3036 = vmatpush1.msra.mxu0 0.0
    %3037 = vmatprep.subr.mxu0 0.0
    %3038 = vmatpush1.msra.mxu0 0.0
    %3039 = vmatprep.subr.mxu0 0.0
    %3040 = vmatpush1.msra.mxu0 0.0
    %3041 = vmatprep.subr.mxu0 0.0
    %3042 = vmatpush1.msra.mxu0 0.0
    %3043 = vmatprep.subr.mxu0 0.0
    %3044 = vmatpush1.msra.mxu0 0.0
    %3045 = vmatprep.subr.mxu0 0.0
    %3046 = vmatpush1.msra.mxu0 0.0
    %3047 = vmatprep.subr.mxu0 0.0
    %3048 = vmatpush1.msra.mxu0 0.0
    %3049 = vmatprep.subr.mxu0 0.0
    %3050 = vmatpush1.msra.mxu0 0.0
    %3051 = vmatprep.subr.mxu0 0.0
    %3052 = vmatpush1.msra.mxu0 0.0
    %3053 = vmatprep.subr.mxu0 0.0
    %3054 = vmatpush1.msra.mxu0 0.0
    %3055 = vmatprep.subr.mxu0 0.0
    %3056 = vmatpush1.msra.mxu0 0.0
    %3057 = vmatprep.subr.mxu0 0.0
    %3058 = vmatpush1.msra.mxu0 0.0
    %3059 = vmatprep.subr.mxu0 0.0
    %3060 = vmatpush1.msra.mxu0 0.0
    %3061 = vmatprep.subr.mxu0 0.0
    %3062 = vmatpush1.msra.mxu0 0.0
    %3063 = vmatprep.subr.mxu0 0.0
    %3064 = vmatpush1.msra.mxu0 0.0
    %3065 = vmatprep.subr.mxu0 0.0
    %3066 = vmatpush1.msra.mxu0 0.0
    %3067 = vmatprep.subr.mxu0 0.0
    %3068 = vmatpush1.msra.mxu0 0.0
    %3069 = vmatprep.subr.mxu0 0.0
    %3070 = vmatpush1.msra.mxu0 0.0
    %3071 = vmatprep.subr.mxu0 0.0
    %3072 = vmatpush1.msra.mxu0 0.0
    %3073 = vmatprep.subr.mxu0 0.0
    %3074 = vmatpush1.msra.mxu0 0.0
    %3075 = vmatprep.subr.mxu0 0.0
    %3076 = vmatpush1.msra.mxu0 0.0
    %3077 = vmatprep.subr.mxu0 0.0
    %3078 = vmatpush1.msra.mxu0 0.0
    %3079 = vmatprep.subr.mxu0 0.0
    %3080 = vmatpush1.msra.mxu0 0.0
    %3081 = vmatprep.subr.mxu0 0.0
    %3082 = vmatpush1.msra.mxu0 0.0
    %3083 = vmatprep.subr.mxu0 0.0
    %3084 = vmatpush1.msra.mxu0 0.0
    %3085 = vmatprep.subr.mxu0 0.0
    %3086 = vmatpush1.msra.mxu0 0.0
    %3087 = vmatprep.subr.mxu0 0.0
    %3088 = vmatpush1.msra.mxu0 0.0
    %3089 = vmatprep.subr.mxu0 0.0
    %3090 = vmatpush1.msra.mxu0 0.0
    %3091 = vmatprep.subr.mxu0 0.0
    %3092 = vmatpush1.msra.mxu0 0.0
    %3093 = vmatprep.subr.mxu0 0.0
    %3094 = vmatpush1.msra.mxu0 0.0
    %3095 = vmatprep.mubr.f32.mxu0 0.0
    %3096 = vmatmul.mubr.f32.gmra.mrb[0].mxu0 %v3029
    %v3097 = vpop.f32.mrb[0].mxu0
    %v3098 = vadd.f32 0.0, %v3097
    %v3099 = vpop.f32.mrb[0].mxu0
    %3100 = vdwg.mxu0
    %3101 = vrot.lane.b32.xlu0 %v2260, 120
    %v3102 = vpop.permute.xlu0 %3101
    %3103 = vrot.lane.b32.xlu0 %v2260, 88
    %v3104 = vpop.permute.xlu0 %3103
    %v3105 = vsel %vm438, %v3102, 0
    %v3107 = vsel %vm438, %v3104, 0
    %3109 = vmatprep.subr.mxu0 0.0
    %3110 = vmatpush1.xpose.msra.mxu0 %v3107
    %3111 = vmatprep.subr.mxu0 0.0
    %3112 = vmatpush1.xpose.msra.mxu0 0.0
    %3113 = vmatprep.subr.mxu0 0.0
    %3114 = vmatpush1.xpose.msra.mxu0 0.0
    %3115 = vmatprep.subr.mxu0 0.0
    %3116 = vmatpush1.xpose.msra.mxu0 0.0
    %3117 = vmatprep.subr.mxu0 0.0
    %3118 = vmatpush1.xpose.msra.mxu0 0.0
    %3119 = vmatprep.subr.mxu0 0.0
    %3120 = vmatpush1.xpose.msra.mxu0 0.0
    %3121 = vmatprep.subr.mxu0 0.0
    %3122 = vmatpush1.xpose.msra.mxu0 0.0
    %3123 = vmatprep.subr.mxu0 0.0
    %3124 = vmatpush1.xpose.msra.mxu0 0.0
    %3125 = vmatprep.subr.mxu0 0.0
    %3126 = vmatpush1.xpose.msra.mxu0 0.0
    %3127 = vmatprep.subr.mxu0 0.0
    %3128 = vmatpush1.xpose.msra.mxu0 0.0
    %3129 = vmatprep.subr.mxu0 0.0
    %3130 = vmatpush1.xpose.msra.mxu0 0.0
    %3131 = vmatprep.subr.mxu0 0.0
    %3132 = vmatpush1.xpose.msra.mxu0 0.0
    %3133 = vmatprep.subr.mxu0 0.0
    %3134 = vmatpush1.xpose.msra.mxu0 0.0
    %3135 = vmatprep.subr.mxu0 0.0
    %3136 = vmatpush1.xpose.msra.mxu0 0.0
    %3137 = vmatprep.subr.mxu0 0.0
    %3138 = vmatpush1.xpose.msra.mxu0 0.0
    %3139 = vmatprep.subr.mxu0 0.0
    %3140 = vmatpush1.xpose.msra.mxu0 0.0
    %3141 = vmatprep.subr.mxu0 0.0
    %3142 = vmatpush1.xpose.msra.mxu0 0.0
    %3143 = vmatprep.subr.mxu0 0.0
    %3144 = vmatpush1.xpose.msra.mxu0 0.0
    %3145 = vmatprep.subr.mxu0 0.0
    %3146 = vmatpush1.xpose.msra.mxu0 0.0
    %3147 = vmatprep.subr.mxu0 0.0
    %3148 = vmatpush1.xpose.msra.mxu0 0.0
    %3149 = vmatprep.subr.mxu0 0.0
    %3150 = vmatpush1.xpose.msra.mxu0 0.0
    %3151 = vmatprep.subr.mxu0 0.0
    %3152 = vmatpush1.xpose.msra.mxu0 0.0
    %3153 = vmatprep.subr.mxu0 0.0
    %3154 = vmatpush1.xpose.msra.mxu0 0.0
    %3155 = vmatprep.subr.mxu0 0.0
    %3156 = vmatpush1.xpose.msra.mxu0 0.0
    %3157 = vmatprep.subr.mxu0 0.0
    %3158 = vmatpush1.xpose.msra.mxu0 0.0
    %3159 = vmatprep.subr.mxu0 0.0
    %3160 = vmatpush1.xpose.msra.mxu0 0.0
    %3161 = vmatprep.subr.mxu0 0.0
    %3162 = vmatpush1.xpose.msra.mxu0 0.0
    %3163 = vmatprep.subr.mxu0 0.0
    %3164 = vmatpush1.xpose.msra.mxu0 0.0
    %3165 = vmatprep.subr.mxu0 0.0
    %3166 = vmatpush1.xpose.msra.mxu0 0.0
    %3167 = vmatprep.subr.mxu0 0.0
    %3168 = vmatpush1.xpose.msra.mxu0 0.0
    %3169 = vmatprep.subr.mxu0 0.0
    %3170 = vmatpush1.xpose.msra.mxu0 0.0
    %3171 = vmatprep.subr.mxu0 0.0
    %3172 = vmatpush1.xpose.msra.mxu0 0.0
    %3173 = vmatprep.mubr.f32.mxu0 0.0
    %3174 = vmatmul.mubr.f32.gmra.mrb[0].mxu0 %v3105
    %v3175 = vpop.f32.mrb[0].mxu0
    %v3176 = vadd.f32 %v342, %v3175
    %v3177 = vpop.f32.mrb[0].mxu0
    %3178 = vdwg.mxu0
    %v3179 = vsel %vm438, %v3176, -inf
    %3180 = vmax.xlane.f32.xlu0 %v3179
    %v3181 = vpop.xlane.xlu0 %3180
    %v3182 = vsub.f32 %v3176, %v3181
    %v3183 = vmul.f32 %v3182, 1.442695
    %v3184 = vpow.pop %v3183
    %v3185 = vsel %vm438, %v3184, 0.0
    %3186 = vadd.xlane.f32.xlu0 %v3185
    %v3187 = vpop.xlane.xlu0 %3186
    %v3188 = vrcp.pop %v3187
    %v3189 = vmul.f32 %v3184, %v3188
    %3190 = vrot.lane.b32.xlu0 %v2260, 56
    %v3191 = vpop.permute.xlu0 %3190
    %v3194 = vsel %vm438, %v3189, 0
    %3196 = vmatprep.subr.mxu0 0.0
    %3197 = vmatpush1.msra.mxu0 %v3191
    %3198 = vmatprep.subr.mxu0 0.0
    %3199 = vmatpush1.msra.mxu0 0.0
    %3200 = vmatprep.subr.mxu0 0.0
    %3201 = vmatpush1.msra.mxu0 0.0
    %3202 = vmatprep.subr.mxu0 0.0
    %3203 = vmatpush1.msra.mxu0 0.0
    %3204 = vmatprep.subr.mxu0 0.0
    %3205 = vmatpush1.msra.mxu0 0.0
    %3206 = vmatprep.subr.mxu0 0.0
    %3207 = vmatpush1.msra.mxu0 0.0
    %3208 = vmatprep.subr.mxu0 0.0
    %3209 = vmatpush1.msra.mxu0 0.0
    %3210 = vmatprep.subr.mxu0 0.0
    %3211 = vmatpush1.msra.mxu0 0.0
    %3212 = vmatprep.subr.mxu0 0.0
    %3213 = vmatpush1.msra.mxu0 0.0
    %3214 = vmatprep.subr.mxu0 0.0
    %3215 = vmatpush1.msra.mxu0 0.0
    %3216 = vmatprep.subr.mxu0 0.0
    %3217 = vmatpush1.msra.mxu0 0.0
    %3218 = vmatprep.subr.mxu0 0.0
    %3219 = vmatpush1.msra.mxu0 0.0
    %3220 = vmatprep.subr.mxu0 0.0
    %3221 = vmatpush1.msra.mxu0 0.0
    %3222 = vmatprep.subr.mxu0 0.0
    %3223 = vmatpush1.msra.mxu0 0.0
    %3224 = vmatprep.subr.mxu0 0.0
    %3225 = vmatpush1.msra.mxu0 0.0
    %3226 = vmatprep.subr.mxu0 0.0
    %3227 = vmatpush1.msra.mxu0 0.0
    %3228 = vmatprep.subr.mxu0 0.0
    %3229 = vmatpush1.msra.mxu0 0.0
    %3230 = vmatprep.subr.mxu0 0.0
    %3231 = vmatpush1.msra.mxu0 0.0
    %3232 = vmatprep.subr.mxu0 0.0
    %3233 = vmatpush1.msra.mxu0 0.0
    %3234 = vmatprep.subr.mxu0 0.0
    %3235 = vmatpush1.msra.mxu0 0.0
    %3236 = vmatprep.subr.mxu0 0.0
    %3237 = vmatpush1.msra.mxu0 0.0
    %3238 = vmatprep.subr.mxu0 0.0
    %3239 = vmatpush1.msra.mxu0 0.0
    %3240 = vmatprep.subr.mxu0 0.0
    %3241 = vmatpush1.msra.mxu0 0.0
    %3242 = vmatprep.subr.mxu0 0.0
    %3243 = vmatpush1.msra.mxu0 0.0
    %3244 = vmatprep.subr.mxu0 0.0
    %3245 = vmatpush1.msra.mxu0 0.0
    %3246 = vmatprep.subr.mxu0 0.0
    %3247 = vmatpush1.msra.mxu0 0.0
    %3248 = vmatprep.subr.mxu0 0.0
    %3249 = vmatpush1.msra.mxu0 0.0
    %3250 = vmatprep.subr.mxu0 0.0
    %3251 = vmatpush1.msra.mxu0 0.0
    %3252 = vmatprep.subr.mxu0 0.0
    %3253 = vmatpush1.msra.mxu0 0.0
    %3254 = vmatprep.subr.mxu0 0.0
    %3255 = vmatpush1.msra.mxu0 0.0
    %3256 = vmatprep.subr.mxu0 0.0
    %3257 = vmatpush1.msra.mxu0 0.0
    %3258 = vmatprep.subr.mxu0 0.0
    %3259 = vmatpush1.msra.mxu0 0.0
    %3260 = vmatprep.mubr.f32.mxu0 0.0
    %3261 = vmatmul.mubr.f32.gmra.mrb[0].mxu0 %v3194
    %v3262 = vpop.f32.mrb[0].mxu0
    %v3263 = vadd.f32 0.0, %v3262
    %v3264 = vpop.f32.mrb[0].mxu0
    %3265 = vdwg.mxu0
    %3266 = vrot.lane.b32.xlu0 %v2260, 112
    %v3267 = vpop.permute.xlu0 %3266
    %3268 = vrot.lane.b32.xlu0 %v2260, 80
    %v3269 = vpop.permute.xlu0 %3268
    %v3270 = vsel %vm438, %v3267, 0
    %v3272 = vsel %vm438, %v3269, 0
    %3274 = vmatprep.subr.mxu0 0.0
    %3275 = vmatpush1.xpose.msra.mxu0 %v3272
    %3276 = vmatprep.subr.mxu0 0.0
    %3277 = vmatpush1.xpose.msra.mxu0 0.0
    %3278 = vmatprep.subr.mxu0 0.0
    %3279 = vmatpush1.xpose.msra.mxu0 0.0
    %3280 = vmatprep.subr.mxu0 0.0
    %3281 = vmatpush1.xpose.msra.mxu0 0.0
    %3282 = vmatprep.subr.mxu0 0.0
    %3283 = vmatpush1.xpose.msra.mxu0 0.0
    %3284 = vmatprep.subr.mxu0 0.0
    %3285 = vmatpush1.xpose.msra.mxu0 0.0
    %3286 = vmatprep.subr.mxu0 0.0
    %3287 = vmatpush1.xpose.msra.mxu0 0.0
    %3288 = vmatprep.subr.mxu0 0.0
    %3289 = vmatpush1.xpose.msra.mxu0 0.0
    %3290 = vmatprep.subr.mxu0 0.0
    %3291 = vmatpush1.xpose.msra.mxu0 0.0
    %3292 = vmatprep.subr.mxu0 0.0
    %3293 = vmatpush1.xpose.msra.mxu0 0.0
    %3294 = vmatprep.subr.mxu0 0.0
    %3295 = vmatpush1.xpose.msra.mxu0 0.0
    %3296 = vmatprep.subr.mxu0 0.0
    %3297 = vmatpush1.xpose.msra.mxu0 0.0
    %3298 = vmatprep.subr.mxu0 0.0
    %3299 = vmatpush1.xpose.msra.mxu0 0.0
    %3300 = vmatprep.subr.mxu0 0.0
    %3301 = vmatpush1.xpose.msra.mxu0 0.0
    %3302 = vmatprep.subr.mxu0 0.0
    %3303 = vmatpush1.xpose.msra.mxu0 0.0
    %3304 = vmatprep.subr.mxu0 0.0
    %3305 = vmatpush1.xpose.msra.mxu0 0.0
    %3306 = vmatprep.subr.mxu0 0.0
    %3307 = vmatpush1.xpose.msra.mxu0 0.0
    %3308 = vmatprep.subr.mxu0 0.0
    %3309 = vmatpush1.xpose.msra.mxu0 0.0
    %3310 = vmatprep.subr.mxu0 0.0
    %3311 = vmatpush1.xpose.msra.mxu0 0.0
    %3312 = vmatprep.subr.mxu0 0.0
    %3313 = vmatpush1.xpose.msra.mxu0 0.0
    %3314 = vmatprep.subr.mxu0 0.0
    %3315 = vmatpush1.xpose.msra.mxu0 0.0
    %3316 = vmatprep.subr.mxu0 0.0
    %3317 = vmatpush1.xpose.msra.mxu0 0.0
    %3318 = vmatprep.subr.mxu0 0.0
    %3319 = vmatpush1.xpose.msra.mxu0 0.0
    %3320 = vmatprep.subr.mxu0 0.0
    %3321 = vmatpush1.xpose.msra.mxu0 0.0
    %3322 = vmatprep.subr.mxu0 0.0
    %3323 = vmatpush1.xpose.msra.mxu0 0.0
    %3324 = vmatprep.subr.mxu0 0.0
    %3325 = vmatpush1.xpose.msra.mxu0 0.0
    %3326 = vmatprep.subr.mxu0 0.0
    %3327 = vmatpush1.xpose.msra.mxu0 0.0
    %3328 = vmatprep.subr.mxu0 0.0
    %3329 = vmatpush1.xpose.msra.mxu0 0.0
    %3330 = vmatprep.subr.mxu0 0.0
    %3331 = vmatpush1.xpose.msra.mxu0 0.0
    %3332 = vmatprep.subr.mxu0 0.0
    %3333 = vmatpush1.xpose.msra.mxu0 0.0
    %3334 = vmatprep.subr.mxu0 0.0
    %3335 = vmatpush1.xpose.msra.mxu0 0.0
    %3336 = vmatprep.subr.mxu0 0.0
    %3337 = vmatpush1.xpose.msra.mxu0 0.0
    %3338 = vmatprep.mubr.f32.mxu0 0.0
    %3339 = vmatmul.mubr.f32.gmra.mrb[0].mxu0 %v3270
    %v3340 = vpop.f32.mrb[0].mxu0
    %v3341 = vadd.f32 %v342, %v3340
    %v3342 = vpop.f32.mrb[0].mxu0
    %3343 = vdwg.mxu0
    %v3344 = vsel %vm438, %v3341, -inf
    %3345 = vmax.xlane.f32.xlu0 %v3344
    %v3346 = vpop.xlane.xlu0 %3345
    %v3347 = vsub.f32 %v3341, %v3346
    %v3348 = vmul.f32 %v3347, 1.442695
    %v3349 = vpow.pop %v3348
    %v3350 = vsel %vm438, %v3349, 0.0
    %3351 = vadd.xlane.f32.xlu0 %v3350
    %v3352 = vpop.xlane.xlu0 %3351
    %v3353 = vrcp.pop %v3352
    %v3354 = vmul.f32 %v3349, %v3353
    %3355 = vrot.lane.b32.xlu0 %v2260, 48
    %v3356 = vpop.permute.xlu0 %3355
    %v3359 = vsel %vm438, %v3354, 0
    %3361 = vmatprep.subr.mxu0 0.0
    %3362 = vmatpush1.msra.mxu0 %v3356
    %3363 = vmatprep.subr.mxu0 0.0
    %3364 = vmatpush1.msra.mxu0 0.0
    %3365 = vmatprep.subr.mxu0 0.0
    %3366 = vmatpush1.msra.mxu0 0.0
    %3367 = vmatprep.subr.mxu0 0.0
    %3368 = vmatpush1.msra.mxu0 0.0
    %3369 = vmatprep.subr.mxu0 0.0
    %3370 = vmatpush1.msra.mxu0 0.0
    %3371 = vmatprep.subr.mxu0 0.0
    %3372 = vmatpush1.msra.mxu0 0.0
    %3373 = vmatprep.subr.mxu0 0.0
    %3374 = vmatpush1.msra.mxu0 0.0
    %3375 = vmatprep.subr.mxu0 0.0
    %3376 = vmatpush1.msra.mxu0 0.0
    %3377 = vmatprep.subr.mxu0 0.0
    %3378 = vmatpush1.msra.mxu0 0.0
    %3379 = vmatprep.subr.mxu0 0.0
    %3380 = vmatpush1.msra.mxu0 0.0
    %3381 = vmatprep.subr.mxu0 0.0
    %3382 = vmatpush1.msra.mxu0 0.0
    %3383 = vmatprep.subr.mxu0 0.0
    %3384 = vmatpush1.msra.mxu0 0.0
    %3385 = vmatprep.subr.mxu0 0.0
    %3386 = vmatpush1.msra.mxu0 0.0
    %3387 = vmatprep.subr.mxu0 0.0
    %3388 = vmatpush1.msra.mxu0 0.0
    %3389 = vmatprep.subr.mxu0 0.0
    %3390 = vmatpush1.msra.mxu0 0.0
    %3391 = vmatprep.subr.mxu0 0.0
    %3392 = vmatpush1.msra.mxu0 0.0
    %3393 = vmatprep.subr.mxu0 0.0
    %3394 = vmatpush1.msra.mxu0 0.0
    %3395 = vmatprep.subr.mxu0 0.0
    %3396 = vmatpush1.msra.mxu0 0.0
    %3397 = vmatprep.subr.mxu0 0.0
    %3398 = vmatpush1.msra.mxu0 0.0
    %3399 = vmatprep.subr.mxu0 0.0
    %3400 = vmatpush1.msra.mxu0 0.0
    %3401 = vmatprep.subr.mxu0 0.0
    %3402 = vmatpush1.msra.mxu0 0.0
    %3403 = vmatprep.subr.mxu0 0.0
    %3404 = vmatpush1.msra.mxu0 0.0
    %3405 = vmatprep.subr.mxu0 0.0
    %3406 = vmatpush1.msra.mxu0 0.0
    %3407 = vmatprep.subr.mxu0 0.0
    %3408 = vmatpush1.msra.mxu0 0.0
    %3409 = vmatprep.subr.mxu0 0.0
    %3410 = vmatpush1.msra.mxu0 0.0
    %3411 = vmatprep.subr.mxu0 0.0
    %3412 = vmatpush1.msra.mxu0 0.0
    %3413 = vmatprep.subr.mxu0 0.0
    %3414 = vmatpush1.msra.mxu0 0.0
    %3415 = vmatprep.subr.mxu0 0.0
    %3416 = vmatpush1.msra.mxu0 0.0
    %3417 = vmatprep.subr.mxu0 0.0
    %3418 = vmatpush1.msra.mxu0 0.0
    %3419 = vmatprep.subr.mxu0 0.0
    %3420 = vmatpush1.msra.mxu0 0.0
    %3421 = vmatprep.subr.mxu0 0.0
    %3422 = vmatpush1.msra.mxu0 0.0
    %3423 = vmatprep.subr.mxu0 0.0
    %3424 = vmatpush1.msra.mxu0 0.0
    %3425 = vmatprep.mubr.f32.mxu0 0.0
    %3426 = vmatmul.mubr.f32.gmra.mrb[0].mxu0 %v3359
    %v3427 = vpop.f32.mrb[0].mxu0
    %v3428 = vadd.f32 0.0, %v3427
    %v3429 = vpop.f32.mrb[0].mxu0
    %3430 = vdwg.mxu0
    %3431 = vrot.lane.b32.xlu0 %v2260, 104
    %v3432 = vpop.permute.xlu0 %3431
    %3433 = vrot.lane.b32.xlu0 %v2260, 72
    %v3434 = vpop.permute.xlu0 %3433
    %v3435 = vsel %vm438, %v3432, 0
    %v3437 = vsel %vm438, %v3434, 0
    %3439 = vmatprep.subr.mxu0 0.0
    %3440 = vmatpush1.xpose.msra.mxu0 %v3437
    %3441 = vmatprep.subr.mxu0 0.0
    %3442 = vmatpush1.xpose.msra.mxu0 0.0
    %3443 = vmatprep.subr.mxu0 0.0
    %3444 = vmatpush1.xpose.msra.mxu0 0.0
    %3445 = vmatprep.subr.mxu0 0.0
    %3446 = vmatpush1.xpose.msra.mxu0 0.0
    %3447 = vmatprep.subr.mxu0 0.0
    %3448 = vmatpush1.xpose.msra.mxu0 0.0
    %3449 = vmatprep.subr.mxu0 0.0
    %3450 = vmatpush1.xpose.msra.mxu0 0.0
    %3451 = vmatprep.subr.mxu0 0.0
    %3452 = vmatpush1.xpose.msra.mxu0 0.0
    %3453 = vmatprep.subr.mxu0 0.0
    %3454 = vmatpush1.xpose.msra.mxu0 0.0
    %3455 = vmatprep.subr.mxu0 0.0
    %3456 = vmatpush1.xpose.msra.mxu0 0.0
    %3457 = vmatprep.subr.mxu0 0.0
    %3458 = vmatpush1.xpose.msra.mxu0 0.0
    %3459 = vmatprep.subr.mxu0 0.0
    %3460 = vmatpush1.xpose.msra.mxu0 0.0
    %3461 = vmatprep.subr.mxu0 0.0
    %3462 = vmatpush1.xpose.msra.mxu0 0.0
    %3463 = vmatprep.subr.mxu0 0.0
    %3464 = vmatpush1.xpose.msra.mxu0 0.0
    %3465 = vmatprep.subr.mxu0 0.0
    %3466 = vmatpush1.xpose.msra.mxu0 0.0
    %3467 = vmatprep.subr.mxu0 0.0
    %3468 = vmatpush1.xpose.msra.mxu0 0.0
    %3469 = vmatprep.subr.mxu0 0.0
    %3470 = vmatpush1.xpose.msra.mxu0 0.0
    %3471 = vmatprep.subr.mxu0 0.0
    %3472 = vmatpush1.xpose.msra.mxu0 0.0
    %3473 = vmatprep.subr.mxu0 0.0
    %3474 = vmatpush1.xpose.msra.mxu0 0.0
    %3475 = vmatprep.subr.mxu0 0.0
    %3476 = vmatpush1.xpose.msra.mxu0 0.0
    %3477 = vmatprep.subr.mxu0 0.0
    %3478 = vmatpush1.xpose.msra.mxu0 0.0
    %3479 = vmatprep.subr.mxu0 0.0
    %3480 = vmatpush1.xpose.msra.mxu0 0.0
    %3481 = vmatprep.subr.mxu0 0.0
    %3482 = vmatpush1.xpose.msra.mxu0 0.0
    %3483 = vmatprep.subr.mxu0 0.0
    %3484 = vmatpush1.xpose.msra.mxu0 0.0
    %3485 = vmatprep.subr.mxu0 0.0
    %3486 = vmatpush1.xpose.msra.mxu0 0.0
    %3487 = vmatprep.subr.mxu0 0.0
    %3488 = vmatpush1.xpose.msra.mxu0 0.0
    %3489 = vmatprep.subr.mxu0 0.0
    %3490 = vmatpush1.xpose.msra.mxu0 0.0
    %3491 = vmatprep.subr.mxu0 0.0
    %3492 = vmatpush1.xpose.msra.mxu0 0.0
    %3493 = vmatprep.subr.mxu0 0.0
    %3494 = vmatpush1.xpose.msra.mxu0 0.0
    %3495 = vmatprep.subr.mxu0 0.0
    %3496 = vmatpush1.xpose.msra.mxu0 0.0
    %3497 = vmatprep.subr.mxu0 0.0
    %3498 = vmatpush1.xpose.msra.mxu0 0.0
    %3499 = vmatprep.subr.mxu0 0.0
    %3500 = vmatpush1.xpose.msra.mxu0 0.0
    %3501 = vmatprep.subr.mxu0 0.0
    %3502 = vmatpush1.xpose.msra.mxu0 0.0
    %3503 = vmatprep.mubr.f32.mxu0 0.0
    %3504 = vmatmul.mubr.f32.gmra.mrb[0].mxu0 %v3435
    %v3505 = vpop.f32.mrb[0].mxu0
    %v3506 = vadd.f32 %v342, %v3505
    %v3507 = vpop.f32.mrb[0].mxu0
    %3508 = vdwg.mxu0
    %v3509 = vsel %vm438, %v3506, -inf
    %3510 = vmax.xlane.f32.xlu0 %v3509
    %v3511 = vpop.xlane.xlu0 %3510
    %v3512 = vsub.f32 %v3506, %v3511
    %v3513 = vmul.f32 %v3512, 1.442695
    %v3514 = vpow.pop %v3513
    %v3515 = vsel %vm438, %v3514, 0.0
    %3516 = vadd.xlane.f32.xlu0 %v3515
    %v3517 = vpop.xlane.xlu0 %3516
    %v3518 = vrcp.pop %v3517
    %v3519 = vmul.f32 %v3514, %v3518
    %3520 = vrot.lane.b32.xlu0 %v2260, 40
    %v3521 = vpop.permute.xlu0 %3520
    %v3524 = vsel %vm438, %v3519, 0
    %3526 = vmatprep.subr.mxu0 0.0
    %3527 = vmatpush1.msra.mxu0 %v3521
    %3528 = vmatprep.subr.mxu0 0.0
    %3529 = vmatpush1.msra.mxu0 0.0
    %3530 = vmatprep.subr.mxu0 0.0
    %3531 = vmatpush1.msra.mxu0 0.0
    %3532 = vmatprep.subr.mxu0 0.0
    %3533 = vmatpush1.msra.mxu0 0.0
    %3534 = vmatprep.subr.mxu0 0.0
    %3535 = vmatpush1.msra.mxu0 0.0
    %3536 = vmatprep.subr.mxu0 0.0
    %3537 = vmatpush1.msra.mxu0 0.0
    %3538 = vmatprep.subr.mxu0 0.0
    %3539 = vmatpush1.msra.mxu0 0.0
    %3540 = vmatprep.subr.mxu0 0.0
    %3541 = vmatpush1.msra.mxu0 0.0
    %3542 = vmatprep.subr.mxu0 0.0
    %3543 = vmatpush1.msra.mxu0 0.0
    %3544 = vmatprep.subr.mxu0 0.0
    %3545 = vmatpush1.msra.mxu0 0.0
    %3546 = vmatprep.subr.mxu0 0.0
    %3547 = vmatpush1.msra.mxu0 0.0
    %3548 = vmatprep.subr.mxu0 0.0
    %3549 = vmatpush1.msra.mxu0 0.0
    %3550 = vmatprep.subr.mxu0 0.0
    %3551 = vmatpush1.msra.mxu0 0.0
    %3552 = vmatprep.subr.mxu0 0.0
    %3553 = vmatpush1.msra.mxu0 0.0
    %3554 = vmatprep.subr.mxu0 0.0
    %3555 = vmatpush1.msra.mxu0 0.0
    %3556 = vmatprep.subr.mxu0 0.0
    %3557 = vmatpush1.msra.mxu0 0.0
    %3558 = vmatprep.subr.mxu0 0.0
    %3559 = vmatpush1.msra.mxu0 0.0
    %3560 = vmatprep.subr.mxu0 0.0
    %3561 = vmatpush1.msra.mxu0 0.0
    %3562 = vmatprep.subr.mxu0 0.0
    %3563 = vmatpush1.msra.mxu0 0.0
    %3564 = vmatprep.subr.mxu0 0.0
    %3565 = vmatpush1.msra.mxu0 0.0
    %3566 = vmatprep.subr.mxu0 0.0
    %3567 = vmatpush1.msra.mxu0 0.0
    %3568 = vmatprep.subr.mxu0 0.0
    %3569 = vmatpush1.msra.mxu0 0.0
    %3570 = vmatprep.subr.mxu0 0.0
    %3571 = vmatpush1.msra.mxu0 0.0
    %3572 = vmatprep.subr.mxu0 0.0
    %3573 = vmatpush1.msra.mxu0 0.0
    %3574 = vmatprep.subr.mxu0 0.0
    %3575 = vmatpush1.msra.mxu0 0.0
    %3576 = vmatprep.subr.mxu0 0.0
    %3577 = vmatpush1.msra.mxu0 0.0
    %3578 = vmatprep.subr.mxu0 0.0
    %3579 = vmatpush1.msra.mxu0 0.0
    %3580 = vmatprep.subr.mxu0 0.0
    %3581 = vmatpush1.msra.mxu0 0.0
    %3582 = vmatprep.subr.mxu0 0.0
    %3583 = vmatpush1.msra.mxu0 0.0
    %3584 = vmatprep.subr.mxu0 0.0
    %3585 = vmatpush1.msra.mxu0 0.0
    %3586 = vmatprep.subr.mxu0 0.0
    %3587 = vmatpush1.msra.mxu0 0.0
    %3588 = vmatprep.subr.mxu0 0.0
    %3589 = vmatpush1.msra.mxu0 0.0
    %3590 = vmatprep.mubr.f32.mxu0 0.0
    %3591 = vmatmul.mubr.f32.gmra.mrb[0].mxu0 %v3524
    %v3592 = vpop.f32.mrb[0].mxu0
    %v3593 = vadd.f32 0.0, %v3592
    %v3594 = vpop.f32.mrb[0].mxu0
    %3595 = vdwg.mxu0
    %3597 = vrot.lane.b32.xlu0 %v3263, 8
    %v3598 = vpop.permute.xlu0 %3597
    %3601 = vrot.lane.b32.xlu0 %v3428, 16
    %v3602 = vpop.permute.xlu0 %3601
    %3605 = vrot.lane.b32.xlu0 %v3593, 24
    %v3606 = vpop.permute.xlu0 %3605
    %v3608 = vsel %vm438, %v3098, %v3598
    %v3609 = vsel %vm1108, %v3608, %v3602
    %v3610 = vsel %vm1110, %v3609, %v3606
    %s3611 = scalar_lea.vmem %s10, 32
    %v3612 = vld [vmem:[%s3611] sm:$0xff]
    %v3613 = vld [vmem:[%s3611 + $0x8] sm:$0xff]
    %v3614 = vld [vmem:[%s3611 + $0x10] sm:$0xff]
    %v3615 = vld [vmem:[%s3611 + $0x18] sm:$0xff]
    %s3616 = scalar_lea.vmem %s11, 1
    %v3617 = vld [vmem:[%s3616] sm:$0x1]
    %v3619 = vlaneseq
    %v3620 = vshrl.u32 %v3619, 7
    %v3621 = vsub.s32 0, %v3620
    %v3622 = vrot.slane %v3617, %v3621
    %v3625 = vsel %vm287, %v2936, 0
    %v3628 = vsel %vm287, %v3610, 0
    %3630 = vmatprep.subr.mxu0 0.0
    %3631 = vmatpush1.msra.mxu0 %v3612
    %3632 = vmatprep.subr.mxu0 0.0
    %3633 = vmatpush1.msra.mxu0 %v3613
    %3634 = vmatprep.subr.mxu0 0.0
    %3635 = vmatpush1.msra.mxu0 %v3614
    %3636 = vmatprep.subr.mxu0 0.0
    %3637 = vmatpush1.msra.mxu0 %v3615
    %3638 = vmatprep.subr.mxu0 0.0
    %3639 = vmatpush1.msra.mxu0 0.0
    %3640 = vmatprep.subr.mxu0 0.0
    %3641 = vmatpush1.msra.mxu0 0.0
    %3642 = vmatprep.subr.mxu0 0.0
    %3643 = vmatpush1.msra.mxu0 0.0
    %3644 = vmatprep.subr.mxu0 0.0
    %3645 = vmatpush1.msra.mxu0 0.0
    %3646 = vmatprep.subr.mxu0 0.0
    %3647 = vmatpush1.msra.mxu0 0.0
    %3648 = vmatprep.subr.mxu0 0.0
    %3649 = vmatpush1.msra.mxu0 0.0
    %3650 = vmatprep.subr.mxu0 0.0
    %3651 = vmatpush1.msra.mxu0 0.0
    %3652 = vmatprep.subr.mxu0 0.0
    %3653 = vmatpush1.msra.mxu0 0.0
    %3654 = vmatprep.subr.mxu0 0.0
    %3655 = vmatpush1.msra.mxu0 0.0
    %3656 = vmatprep.subr.mxu0 0.0
    %3657 = vmatpush1.msra.mxu0 0.0
    %3658 = vmatprep.subr.mxu0 0.0
    %3659 = vmatpush1.msra.mxu0 0.0
    %3660 = vmatprep.subr.mxu0 0.0
    %3661 = vmatpush1.msra.mxu0 0.0
    %3662 = vmatprep.subr.mxu0 0.0
    %3663 = vmatpush1.msra.mxu0 0.0
    %3664 = vmatprep.subr.mxu0 0.0
    %3665 = vmatpush1.msra.mxu0 0.0
    %3666 = vmatprep.subr.mxu0 0.0
    %3667 = vmatpush1.msra.mxu0 0.0
    %3668 = vmatprep.subr.mxu0 0.0
    %3669 = vmatpush1.msra.mxu0 0.0
    %3670 = vmatprep.subr.mxu0 0.0
    %3671 = vmatpush1.msra.mxu0 0.0
    %3672 = vmatprep.subr.mxu0 0.0
    %3673 = vmatpush1.msra.mxu0 0.0
    %3674 = vmatprep.subr.mxu0 0.0
    %3675 = vmatpush1.msra.mxu0 0.0
    %3676 = vmatprep.subr.mxu0 0.0
    %3677 = vmatpush1.msra.mxu0 0.0
    %3678 = vmatprep.subr.mxu0 0.0
    %3679 = vmatpush1.msra.mxu0 0.0
    %3680 = vmatprep.subr.mxu0 0.0
    %3681 = vmatpush1.msra.mxu0 0.0
    %3682 = vmatprep.subr.mxu0 0.0
    %3683 = vmatpush1.msra.mxu0 0.0
    %3684 = vmatprep.subr.mxu0 0.0
    %3685 = vmatpush1.msra.mxu0 0.0
    %3686 = vmatprep.subr.mxu0 0.0
    %3687 = vmatpush1.msra.mxu0 0.0
    %3688 = vmatprep.subr.mxu0 0.0
    %3689 = vmatpush1.msra.mxu0 0.0
    %3690 = vmatprep.subr.mxu0 0.0
    %3691 = vmatpush1.msra.mxu0 0.0
    %3692 = vmatprep.subr.mxu0 0.0
    %3693 = vmatpush1.msra.mxu0 0.0
    %3694 = vmatprep.mubr.f32.mxu0 0.0
    %3695 = vmatmul.mubr.f32.gmra.mrb[0].mxu0 %v3625
    %v3696 = vpop.f32.mrb[0].mxu0
    %v3697 = vadd.f32 %v3622, %v3696
    %v3698 = vpop.f32.mrb[0].mxu0
    %3699 = vmatprep.mubr.f32.mxu0 0.0
    %3700 = vmatmul.mubr.f32.gmra.mrb[0].mxu0 %v3628
    %v3701 = vpop.f32.mrb[0].mxu0
    %v3702 = vadd.f32 %v3622, %v3701
    %v3703 = vpop.f32.mrb[0].mxu0
    %3704 = vdwg.mxu0
    %v3705 = vadd.f32 %v3697, %v2167
    %v3706 = vadd.f32 %v3702, %v2168
    %s3707 = scalar_lea.vmem %s12, 1
    %v3708 = vld [vmem:[%s3707] sm:$0x1]
    %s3709 = scalar_lea.vmem %s13, 1
    %v3710 = vld [vmem:[%s3709] sm:$0x1]
    %v3711 = vsel %vm287, %v3705, 0.0
    %3712 = vadd.xlane.f32.xlu0 %v3711
    %v3713 = vpop.xlane.xlu0 %3712
    %v3714 = vsel %vm287, %v3706, 0.0
    %3715 = vadd.xlane.f32.xlu0 %v3714
    %v3716 = vpop.xlane.xlu0 %3715
    %v3717 = vmul.f32 %v3713, %v294
    %v3718 = vmul.f32 %v3716, %v294
    %v3719 = vsub.f32 %v3705, %v3717
    %v3720 = vsub.f32 %v3706, %v3718
    %v3721 = vmul.f32 %v3719, %v3719
    %v3722 = vmul.f32 %v3720, %v3720
    %v3723 = vsel %vm287, %v3721, 0.0
    %3724 = vadd.xlane.f32.xlu0 %v3723
    %v3725 = vpop.xlane.xlu0 %3724
    %v3726 = vsel %vm287, %v3722, 0.0
    %3727 = vadd.xlane.f32.xlu0 %v3726
    %v3728 = vpop.xlane.xlu0 %3727
    %v3729 = vmul.f32 %v3725, %v294
    %v3730 = vmul.f32 %v3728, %v294
    %v3731 = vadd.f32 %v3729, 1e-12
    %v3732 = vadd.f32 %v3730, 1e-12
    %v3733 = vrsqrt.pop %v3731
    %v3734 = vrsqrt.pop %v3732
    %v3735 = vmul.f32 %v3719, %v3733
    %v3736 = vmul.f32 %v3720, %v3734
    %v3738 = vlaneseq
    %v3739 = vshrl.u32 %v3738, 7
    %v3740 = vsub.s32 0, %v3739
    %v3741 = vrot.slane %v3708, %v3740
    %v3743 = vmul.f32 %v3735, %v3741
    %v3744 = vmul.f32 %v3736, %v3741
    %v3746 = vlaneseq
    %v3747 = vshrl.u32 %v3746, 7
    %v3748 = vsub.s32 0, %v3747
    %v3749 = vrot.slane %v3710, %v3748
    %v3751 = vadd.f32 %v3743, %v3749
    %v3752 = vadd.f32 %v3744, %v3749
    %s3753 = scalar_lea.vmem %s14, 32
    %v3754 = vld [vmem:[%s3753] sm:$0xff]
    %v3755 = vld [vmem:[%s3753 + $0x8] sm:$0xff]
    %v3756 = vld [vmem:[%s3753 + $0x10] sm:$0xff]
    %v3757 = vld [vmem:[%s3753 + $0x18] sm:$0xff]
    %s3758 = scalar_lea.vmem %s15, 1
    %v3759 = vld [vmem:[%s3758] sm:$0x1]
    %v3761 = vlaneseq
    %v3762 = vshrl.u32 %v3761, 7
    %v3763 = vsub.s32 0, %v3762
    %v3764 = vrot.slane %v3759, %v3763
    %v3767 = vsel %vm287, %v3751, 0
    %v3770 = vsel %vm287, %v3752, 0
    %3772 = vmatprep.subr.mxu0 0.0
    %3773 = vmatpush1.msra.mxu0 %v3754
    %3774 = vmatprep.subr.mxu0 0.0
    %3775 = vmatpush1.msra.mxu0 %v3755
    %3776 = vmatprep.subr.mxu0 0.0
    %3777 = vmatpush1.msra.mxu0 %v3756
    %3778 = vmatprep.subr.mxu0 0.0
    %3779 = vmatpush1.msra.mxu0 %v3757
    %3780 = vmatprep.subr.mxu0 0.0
    %3781 = vmatpush1.msra.mxu0 0.0
    %3782 = vmatprep.subr.mxu0 0.0
    %3783 = vmatpush1.msra.mxu0 0.0
    %3784 = vmatprep.subr.mxu0 0.0
    %3785 = vmatpush1.msra.mxu0 0.0
    %3786 = vmatprep.subr.mxu0 0.0
    %3787 = vmatpush1.msra.mxu0 0.0
    %3788 = vmatprep.subr.mxu0 0.0
    %3789 = vmatpush1.msra.mxu0 0.0
    %3790 = vmatprep.subr.mxu0 0.0
    %3791 = vmatpush1.msra.mxu0 0.0
    %3792 = vmatprep.subr.mxu0 0.0
    %3793 = vmatpush1.msra.mxu0 0.0
    %3794 = vmatprep.subr.mxu0 0.0
    %3795 = vmatpush1.msra.mxu0 0.0
    %3796 = vmatprep.subr.mxu0 0.0
    %3797 = vmatpush1.msra.mxu0 0.0
    %3798 = vmatprep.subr.mxu0 0.0
    %3799 = vmatpush1.msra.mxu0 0.0
    %3800 = vmatprep.subr.mxu0 0.0
    %3801 = vmatpush1.msra.mxu0 0.0
    %3802 = vmatprep.subr.mxu0 0.0
    %3803 = vmatpush1.msra.mxu0 0.0
    %3804 = vmatprep.subr.mxu0 0.0
    %3805 = vmatpush1.msra.mxu0 0.0
    %3806 = vmatprep.subr.mxu0 0.0
    %3807 = vmatpush1.msra.mxu0 0.0
    %3808 = vmatprep.subr.mxu0 0.0
    %3809 = vmatpush1.msra.mxu0 0.0
    %3810 = vmatprep.subr.mxu0 0.0
    %3811 = vmatpush1.msra.mxu0 0.0
    %3812 = vmatprep.subr.mxu0 0.0
    %3813 = vmatpush1.msra.mxu0 0.0
    %3814 = vmatprep.subr.mxu0 0.0
    %3815 = vmatpush1.msra.mxu0 0.0
    %3816 = vmatprep.subr.mxu0 0.0
    %3817 = vmatpush1.msra.mxu0 0.0
    %3818 = vmatprep.subr.mxu0 0.0
    %3819 = vmatpush1.msra.mxu0 0.0
    %3820 = vmatprep.subr.mxu0 0.0
    %3821 = vmatpush1.msra.mxu0 0.0
    %3822 = vmatprep.subr.mxu0 0.0
    %3823 = vmatpush1.msra.mxu0 0.0
    %3824 = vmatprep.subr.mxu0 0.0
    %3825 = vmatpush1.msra.mxu0 0.0
    %3826 = vmatprep.subr.mxu0 0.0
    %3827 = vmatpush1.msra.mxu0 0.0
    %3828 = vmatprep.subr.mxu0 0.0
    %3829 = vmatpush1.msra.mxu0 0.0
    %3830 = vmatprep.subr.mxu0 0.0
    %3831 = vmatpush1.msra.mxu0 0.0
    %3832 = vmatprep.subr.mxu0 0.0
    %3833 = vmatpush1.msra.mxu0 0.0
    %3834 = vmatprep.subr.mxu0 0.0
    %3835 = vmatpush1.msra.mxu0 0.0
    %3836 = vmatprep.mubr.f32.mxu0 0.0
    %3837 = vmatmul.mubr.f32.gmra.mrb[0].mxu0 %v3767
    %v3838 = vpop.f32.mrb[0].mxu0
    %v3839 = vadd.f32 %v3764, %v3838
    %v3840 = vpop.f32.mrb[0].mxu0
    %3841 = vmatprep.mubr.f32.mxu0 0.0
    %3842 = vmatmul.mubr.f32.gmra.mrb[0].mxu0 %v3770
    %v3843 = vpop.f32.mrb[0].mxu0
    %v3844 = vadd.f32 %v3764, %v3843
    %v3845 = vpop.f32.mrb[0].mxu0
    %3846 = vdwg.mxu0
    %v3847 = vmul.f32 %v3839, 0.5
    %v3848 = vmul.f32 %v3844, 0.5
    %v3849 = vmul.f32 %v3839, 0.70710677
    %v3850 = vmul.f32 %v3844, 0.70710677
    %v3851 = verf.f32.pop %v3849
    %v3852 = verf.f32.pop %v3850
    %v3853 = vadd.f32 %v3851, 1.0
    %v3854 = vadd.f32 %v3852, 1.0
    %v3855 = vmul.f32 %v3847, %v3853
    %v3856 = vmul.f32 %v3848, %v3854
    %s3857 = scalar_lea.vmem %s16, 64
    %v3858 = vld [vmem:[%s3857] sm:$0xff]
    %v3859 = vld [vmem:[%s3857 + $0x8] sm:$0xff]
    %v3860 = vld [vmem:[%s3857 + $0x10] sm:$0xff]
    %v3861 = vld [vmem:[%s3857 + $0x18] sm:$0xff]
    %v3862 = vld [vmem:[%s3857 + $0x20] sm:$0xff]
    %v3863 = vld [vmem:[%s3857 + $0x28] sm:$0xff]
    %v3864 = vld [vmem:[%s3857 + $0x30] sm:$0xff]
    %v3865 = vld [vmem:[%s3857 + $0x38] sm:$0xff]
    %s3866 = scalar_lea.vmem %s17, 1
    %v3867 = vld [vmem:[%s3866] sm:$0x1]
    %v3869 = vlaneseq
    %v3870 = vshrl.u32 %v3869, 7
    %v3871 = vsub.s32 0, %v3870
    %v3872 = vrot.slane %v3867, %v3871
    %v3875 = vsel %vm2041, %v3855, 0
    %v3878 = vsel %vm2041, %v3856, 0
    %3880 = vmatprep.subr.mxu0 0.0
    %3881 = vmatpush1.msra.mxu0 %v3858
    %3882 = vmatprep.subr.mxu0 0.0
    %3883 = vmatpush1.msra.mxu0 %v3859
    %3884 = vmatprep.subr.mxu0 0.0
    %3885 = vmatpush1.msra.mxu0 %v3860
    %3886 = vmatprep.subr.mxu0 0.0
    %3887 = vmatpush1.msra.mxu0 %v3861
    %3888 = vmatprep.subr.mxu0 0.0
    %3889 = vmatpush1.msra.mxu0 %v3862
    %3890 = vmatprep.subr.mxu0 0.0
    %3891 = vmatpush1.msra.mxu0 %v3863
    %3892 = vmatprep.subr.mxu0 0.0
    %3893 = vmatpush1.msra.mxu0 %v3864
    %3894 = vmatprep.subr.mxu0 0.0
    %3895 = vmatpush1.msra.mxu0 %v3865
    %3896 = vmatprep.subr.mxu0 0.0
    %3897 = vmatpush1.msra.mxu0 0.0
    %3898 = vmatprep.subr.mxu0 0.0
    %3899 = vmatpush1.msra.mxu0 0.0
    %3900 = vmatprep.subr.mxu0 0.0
    %3901 = vmatpush1.msra.mxu0 0.0
    %3902 = vmatprep.subr.mxu0 0.0
    %3903 = vmatpush1.msra.mxu0 0.0
    %3904 = vmatprep.subr.mxu0 0.0
    %3905 = vmatpush1.msra.mxu0 0.0
    %3906 = vmatprep.subr.mxu0 0.0
    %3907 = vmatpush1.msra.mxu0 0.0
    %3908 = vmatprep.subr.mxu0 0.0
    %3909 = vmatpush1.msra.mxu0 0.0
    %3910 = vmatprep.subr.mxu0 0.0
    %3911 = vmatpush1.msra.mxu0 0.0
    %3912 = vmatprep.subr.mxu0 0.0
    %3913 = vmatpush1.msra.mxu0 0.0
    %3914 = vmatprep.subr.mxu0 0.0
    %3915 = vmatpush1.msra.mxu0 0.0
    %3916 = vmatprep.subr.mxu0 0.0
    %3917 = vmatpush1.msra.mxu0 0.0
    %3918 = vmatprep.subr.mxu0 0.0
    %3919 = vmatpush1.msra.mxu0 0.0
    %3920 = vmatprep.subr.mxu0 0.0
    %3921 = vmatpush1.msra.mxu0 0.0
    %3922 = vmatprep.subr.mxu0 0.0
    %3923 = vmatpush1.msra.mxu0 0.0
    %3924 = vmatprep.subr.mxu0 0.0
    %3925 = vmatpush1.msra.mxu0 0.0
    %3926 = vmatprep.subr.mxu0 0.0
    %3927 = vmatpush1.msra.mxu0 0.0
    %3928 = vmatprep.subr.mxu0 0.0
    %3929 = vmatpush1.msra.mxu0 0.0
    %3930 = vmatprep.subr.mxu0 0.0
    %3931 = vmatpush1.msra.mxu0 0.0
    %3932 = vmatprep.subr.mxu0 0.0
    %3933 = vmatpush1.msra.mxu0 0.0
    %3934 = vmatprep.subr.mxu0 0.0
    %3935 = vmatpush1.msra.mxu0 0.0
    %3936 = vmatprep.subr.mxu0 0.0
    %3937 = vmatpush1.msra.mxu0 0.0
    %3938 = vmatprep.subr.mxu0 0.0
    %3939 = vmatpush1.msra.mxu0 0.0
    %3940 = vmatprep.subr.mxu0 0.0
    %3941 = vmatpush1.msra.mxu0 0.0
    %3942 = vmatprep.subr.mxu0 0.0
    %3943 = vmatpush1.msra.mxu0 0.0
    %3944 = vmatprep.mubr.f32.mxu0 0.0
    %3945 = vmatmul.mubr.f32.gmra.mrb[0].mxu0 %v3875
    %v3946 = vpop.f32.mrb[0].mxu0
    %v3947 = vadd.f32 %v3872, %v3946
    %v3948 = vpop.f32.mrb[0].mxu0
    %3949 = vmatprep.mubr.f32.mxu0 0.0
    %3950 = vmatmul.mubr.f32.gmra.mrb[0].mxu0 %v3878
    %v3951 = vpop.f32.mrb[0].mxu0
    %v3952 = vadd.f32 %v3872, %v3951
    %v3953 = vpop.f32.mrb[0].mxu0
    %3954 = vdwg.mxu0
    %v3955 = vadd.f32 %v3947, %v3751
    %v3956 = vadd.f32 %v3952, %v3752
    %s3957 = scalar_lea.vmem %s18, 1
    %v3958 = vld [vmem:[%s3957] sm:$0x1]
    %s3959 = scalar_lea.vmem %s19, 1
    %v3960 = vld [vmem:[%s3959] sm:$0x1]
    %v3961 = vsel %vm287, %v3955, 0.0
    %3962 = vadd.xlane.f32.xlu0 %v3961
    %v3963 = vpop.xlane.xlu0 %3962
    %v3964 = vsel %vm287, %v3956, 0.0
    %3965 = vadd.xlane.f32.xlu0 %v3964
    %v3966 = vpop.xlane.xlu0 %3965
    %v3967 = vmul.f32 %v3963, %v294
    %v3968 = vmul.f32 %v3966, %v294
    %v3969 = vsub.f32 %v3955, %v3967
    %v3970 = vsub.f32 %v3956, %v3968
    %v3971 = vmul.f32 %v3969, %v3969
    %v3972 = vmul.f32 %v3970, %v3970
    %v3973 = vsel %vm287, %v3971, 0.0
    %3974 = vadd.xlane.f32.xlu0 %v3973
    %v3975 = vpop.xlane.xlu0 %3974
    %v3976 = vsel %vm287, %v3972, 0.0
    %3977 = vadd.xlane.f32.xlu0 %v3976
    %v3978 = vpop.xlane.xlu0 %3977
    %v3979 = vmul.f32 %v3975, %v294
    %v3980 = vmul.f32 %v3978, %v294
    %v3981 = vadd.f32 %v3979, 1e-12
    %v3982 = vadd.f32 %v3980, 1e-12
    %v3983 = vrsqrt.pop %v3981
    %v3984 = vrsqrt.pop %v3982
    %v3985 = vmul.f32 %v3969, %v3983
    %v3986 = vmul.f32 %v3970, %v3984
    %v3988 = vlaneseq
    %v3989 = vshrl.u32 %v3988, 7
    %v3990 = vsub.s32 0, %v3989
    %v3991 = vrot.slane %v3958, %v3990
    %v3993 = vmul.f32 %v3985, %v3991
    %v3994 = vmul.f32 %v3986, %v3991
    %v3996 = vlaneseq
    %v3997 = vshrl.u32 %v3996, 7
    %v3998 = vsub.s32 0, %v3997
    %v3999 = vrot.slane %v3960, %v3998
    %v4001 = vadd.f32 %v3993, %v3999
    %v4002 = vadd.f32 %v3994, %v3999
    %4003 = vst.msk [vmem:[#allocation2] sm:$0xff] %vm287, %v4001
    %s4004 = scalar_lea.vmem [#allocation2], 8
    %4005 = vst.msk [vmem:[%s4004] sm:$0xff] %vm287, %v4002
    // Predicated region
    $region82: #{bert_forward.1} parent=1 // pred_check
      _
    $region83: #{bert_forward.1} parent=1 // pred_check_branch
      %4007 = sbr.rel (0) target = $region85
    $region84: #{bert_forward.1} parent=1 // pred_region
      %s4009 = ssub.s32 256, 256
      %4010 = vsyncadd [#allocation3], %s4009
      %s4011 = sshll.u32 [#allocation2], 4
      %s4012 = int_to_ptr.vmem [resolvable:$true] %s4011
      %4017 = dma.vmem_to_hbm [thread:$0]  %s4012, 256, %s20, [#allocation3], 128, 128, 8
    $region85: #{bert_forward.1} parent=1 // pred_fallthru
      _
    // Predicated region
    $region86: #{bert_forward.1} parent=1 // pred_check
      _
    $region87: #{bert_forward.1} parent=1 // pred_check_branch
      %4019 = sbr.rel (0) target = $region89
    $region88: #{bert_forward.1} parent=1 // pred_region
      %4020 = dma.done [#allocation3], 256
    $region89: #{bert_forward.1} parent=1 // pred_fallthru
      _
    %4021 = vsyncpa [#allocation3], 1

</llo_original>
